<compile_context>
chip_gen: v6e
topology: v6e:2x2x1
jax: 0.10.0
libtpu: 0.0.40
codegen_flags: <defaults>
</compile_context>

<pallas_src>
import numpy as np

import jax
import jax.numpy as jnp
from jax.experimental import pallas as pl
from jax.experimental.pallas import tpu as pltpu

# ----------------------------- config ----------------------------------------
B = 2                  # batch
IMG_H = 16             # small stand-in spatial size (EfficientNet-b4 uses 380)
IMG_W = 16
HW = IMG_H * IMG_W     # flattened per-image spatial
C_IN = 3               # RGB
C_IN_PAD = 8           # pad conv1 input channels so stacked K is sublane-aligned
C1, C2 = 32, 64        # intermediate backbone channels
FEATURE_NUM = 128      # stand-in for ec_model._fc.in_features (1792 for b4)
EXTRA_LENGTH = 8
LINEAR_HIDDEN = 32     # hyperparams['linear_hidden_length']
BIN_NUMBER = 3         # config.bin_number (out_dims)
DROP_OUT_RATE = 0.1    # hyperparams['drop_out_rate']

_TAPS = [(dy, dx) for dy in (-1, 0, 1) for dx in (-1, 0, 1)]   # 3x3 kernel, pad=1

# packed-bias segment offsets (all multiples of 8 -> clean sublane slices)
OFF_B1 = 0
OFF_B2 = OFF_B1 + C1                 # 32
OFF_B3 = OFF_B2 + C2                 # 96
OFF_FB1 = OFF_B3 + FEATURE_NUM       # 224
OFF_FB2 = OFF_FB1 + LINEAR_HIDDEN    # 256
BIAS_TOTAL = OFF_FB2 + BIN_NUMBER    # 259


def _tap_masks(h, w, b):
    """(9, 1, b*h*w) 0/1 masks implementing zero 'same'-padding per 3x3 tap.
    Tiled per image, so they also kill any roll bleed across image boundaries."""
    hh, ww = np.meshgrid(np.arange(h), np.arange(w), indexing="ij")
    m = [((hh + dy >= 0) & (hh + dy < h) & (ww + dx >= 0) & (ww + dx < w))
         .reshape(-1).astype(np.float32) for dy, dx in _TAPS]
    m = np.stack(m)[:, None, :]                 # (9, 1, HW)
    return jnp.asarray(np.tile(m, (1, 1, b)))   # (9, 1, b*HW)


def _pool_matrix(hw, b):
    """(b*hw, b) bf16 matrix s.t. feats @ P == per-image mean over hw."""
    p = np.zeros((b * hw, b), np.float32)
    for i in range(b):
        p[i * hw:(i + 1) * hw, i] = 1.0 / hw
    return jnp.asarray(p, jnp.bfloat16)


# ----------------------------- fused forward kernel --------------------------
def _picture_net_kernel(x_ref, mask_ref, w1_ref, w2_ref, w3_ref,
                        pool_ref, fcw_ref, bias_ref, extra_ref, logits_ref):
    """Whole batch in one step.  Layout: channels in sublanes, batch*spatial
    (B*HW = 512) in lanes -> every conv matmul output is lane-dense."""

    def conv3x3_swish(inp, w_ref, bias):
        # inp: (Cin, B*HW) f32 ; w_ref: (Cout, 9*Cin) bf16 ; bias: (Cout, 1) f32
        # Build the stacked-K operand: 9 rolled+masked copies of `inp`
        # concatenated along sublanes (each piece is 8-row aligned).
        n = inp.shape[1]
        pieces = []
        for t, (dy, dx) in enumerate(_TAPS):
            off = dy * IMG_W + dx
            tap = inp if off == 0 else pltpu.roll(inp, (-off) % n, axis=1)
            pieces.append(tap * mask_ref[t])           # kill padded borders
        stacked = jnp.concatenate(pieces, axis=0).astype(jnp.bfloat16)
        # one MXU matmul per conv layer: (Cout, 9*Cin) @ (9*Cin, B*HW)
        y = jnp.dot(w_ref[...], stacked,
                    preferred_element_type=jnp.float32) + bias
        # SiLU / swish with the divide routed through the EUP slot
        return y * pl.reciprocal(1.0 + jnp.exp(-y), approx=True)

    # unpack biases (static, 8-aligned sublane slices of one packed input)
    b1 = bias_ref[OFF_B1:OFF_B1 + C1]
    b2 = bias_ref[OFF_B2:OFF_B2 + C2]
    b3 = bias_ref[OFF_B3:OFF_B3 + FEATURE_NUM]
    fb1 = bias_ref[OFF_FB1:OFF_FB1 + LINEAR_HIDDEN]
    fb2 = bias_ref[OFF_FB2:OFF_FB2 + BIN_NUMBER]

    # --- stand-in for ec_model.extract_features ------------------------------
    f1 = conv3x3_swish(x_ref[...], w1_ref, b1)      # (C1, B*HW)
    f2 = conv3x3_swish(f1, w2_ref, b2)              # (C2, B*HW)
    f3 = conv3x3_swish(f2, w3_ref, b3)              # (FEATURE_NUM, B*HW)

    # --- _avg_pooling(img_feats).flatten(1): per-image mean via the MXU ------
    pooled = jnp.dot(f3.astype(jnp.bfloat16), pool_ref[...],
                     preferred_element_type=jnp.float32)   # (FEATURE_NUM, B)

    # --- fcs: Linear(feat+extra, LH) -> ReLU -> Dropout -> Linear(LH, BIN) ---
    # cat([pooled, extra], dim=1) handled as a sublane concat + one matmul.
    fc_in = jnp.concatenate([pooled, extra_ref[...]], axis=0)  # (FEAT+EXTRA, B)
    fc1_w = fcw_ref[0:LINEAR_HIDDEN, :].astype(jnp.bfloat16)
    fc2_w = fcw_ref[LINEAR_HIDDEN:LINEAR_HIDDEN + BIN_NUMBER,
                    0:LINEAR_HIDDEN].astype(jnp.bfloat16)

    h1 = jnp.dot(fc1_w, fc_in.astype(jnp.bfloat16),
                 preferred_element_type=jnp.float32) + fb1
    h1 = jnp.maximum(h1, 0.0)
    # TODO(synk): nn.Dropout(DROP_OUT_RATE) treated as identity (inference/eval).
    logits = jnp.dot(fc2_w, h1.astype(jnp.bfloat16),
                     preferred_element_type=jnp.float32) + fb2   # (BIN, B)

    logits_ref[...] = logits


# ----------------------------- wrapper ----------------------------------------
def picture_net_forward(params, img, extra, tag=None):
    b = img.shape[0]
    # NCHW -> channels-in-sublanes / (batch*spatial)-in-lanes; pad Cin 3 -> 8
    x = img.reshape(b, C_IN, HW)
    x = jnp.transpose(x, (1, 0, 2)).reshape(C_IN, b * HW)
    x = jnp.pad(x, ((0, C_IN_PAD - C_IN), (0, 0))).astype(jnp.float32)
    extra_t = jnp.transpose(extra).astype(jnp.float32)            # (EXTRA, B)

    masks = _tap_masks(IMG_H, IMG_W, b)                           # constants
    pool = _pool_matrix(HW, b)

    # Single fused launch, no grid: every operand is a whole-array VMEM block.
    logits_cb = pl.pallas_call(
        _picture_net_kernel,
        out_shape=jax.ShapeDtypeStruct((BIN_NUMBER, b), jnp.float32),
    )(x, masks,
      params["conv1_w"], params["conv2_w"], params["conv3_w"],
      pool, params["fc_w"], params["bias"], extra_t)

    logits = logits_cb.T                                          # (B, BIN)
    # Exact softmax in the wrapper (3-wide; removes approx-reciprocal drift).
    out_probs = jax.nn.softmax(logits, axis=-1)
    if tag is None:
        loss = jnp.float32(0.0)                                   # tag None -> 0
    else:
        logp = jax.nn.log_softmax(logits, axis=-1)
        loss = -jnp.mean(jnp.take_along_axis(logp, tag[:, None], axis=1))
    return out_probs, loss


# ----------------------------- parameter init ---------------------------------
def init_params(key):
    ks = list(jax.random.split(key, 10))

    def he(k, shape, fan_in):
        return (np.sqrt(2.0 / fan_in)
                * jax.random.normal(k, shape)).astype(jnp.float32)

    def conv_stacked(w_oihw, cin_pad):
        # PyTorch (O, I, KH, KW) -> (O, 9*cin_pad) with tap-major columns,
        # matching the kernel's stacked-K operand ordering.
        o, i, kh, kw = w_oihw.shape
        w = jnp.transpose(w_oihw, (2, 3, 0, 1)).reshape(kh * kw, o, i)
        w = jnp.pad(w, ((0, 0), (0, 0), (0, cin_pad - i)))
        return (jnp.transpose(w, (1, 0, 2))
                .reshape(o, kh * kw * cin_pad).astype(jnp.bfloat16))

    conv1 = he(ks[0], (C1, C_IN, 3, 3), 9 * C_IN)
    conv2 = he(ks[1], (C2, C1, 3, 3), 9 * C1)
    conv3 = he(ks[2], (FEATURE_NUM, C2, 3, 3), 9 * C2)
    fc1 = he(ks[3], (LINEAR_HIDDEN, FEATURE_NUM + EXTRA_LENGTH),
             FEATURE_NUM + EXTRA_LENGTH)
    fc2 = he(ks[4], (BIN_NUMBER, LINEAR_HIDDEN), LINEAR_HIDDEN)

    # Both fc weights packed into ONE matrix (fc1 rows 0:LH; fc2 in rows
    # LH:LH+BIN, cols 0:LH).  fc1's feature/extra halves need no split: the
    # kernel concatenates [pooled, extra] and does a single matmul.
    fcw = jnp.zeros((LINEAR_HIDDEN + BIN_NUMBER,
                     FEATURE_NUM + EXTRA_LENGTH), jnp.float32)
    fcw = fcw.at[:LINEAR_HIDDEN, :].set(fc1)
    fcw = fcw.at[LINEAR_HIDDEN:, :LINEAR_HIDDEN].set(fc2)

    # All biases packed into ONE column vector; every segment start is 8-aligned.
    bias = jnp.concatenate([
        0.01 * jax.random.normal(ks[5], (C1,)),
        0.01 * jax.random.normal(ks[6], (C2,)),
        0.01 * jax.random.normal(ks[7], (FEATURE_NUM,)),
        0.01 * jax.random.normal(ks[8], (LINEAR_HIDDEN,)),
        0.01 * jax.random.normal(ks[9], (BIN_NUMBER,)),
    ])[:, None].astype(jnp.float32)
    assert bias.shape == (BIAS_TOTAL, 1)

    return {
        "conv1_w": conv_stacked(conv1, C_IN_PAD),   # (32, 72)  bf16
        "conv2_w": conv_stacked(conv2, C1),         # (64, 288) bf16
        "conv3_w": conv_stacked(conv3, C2),         # (128, 576) bf16
        "fc_w": fcw,                                # (35, 136) f32
        "bias": bias,                               # (259, 1)  f32
    }


# ----------------------------- main --------------------------------------------
if __name__ == "__main__":
    key = jax.random.PRNGKey(0)
    k_param, k_img, k_extra = jax.random.split(key, 3)

    params = init_params(k_param)
    img = jax.random.normal(k_img, (B, C_IN, IMG_H, IMG_W), jnp.float32)  # NCHW
    extra = jax.random.normal(k_extra, (B, EXTRA_LENGTH), jnp.float32)

    forward = jax.jit(picture_net_forward)
    out_probs, loss = forward(params, img, extra)        # tag=None -> loss = 0
    out_probs = jax.block_until_ready(out_probs)
    loss = jax.block_until_ready(loss)

    assert out_probs.shape == (B, BIN_NUMBER)
    assert bool(jnp.all(jnp.isfinite(out_probs)))
    assert bool(jnp.allclose(jnp.sum(out_probs, axis=1), 1.0, atol=1e-5))
    assert float(loss) == 0.0
    print("KERNEL_OK")
</pallas_src>

<mosaic_0001>
module attributes {stable_mosaic.version = 11 : i64} {
  func.func @_picture_net_kernel(%arg0: memref<8x512xf32, #tpu.memory_space<vmem>>, %arg1: memref<9x1x512xf32, #tpu.memory_space<vmem>>, %arg2: memref<32x72xbf16, #tpu.memory_space<vmem>>, %arg3: memref<64x288xbf16, #tpu.memory_space<vmem>>, %arg4: memref<128x576xbf16, #tpu.memory_space<vmem>>, %arg5: memref<512x2xbf16, #tpu.memory_space<vmem>>, %arg6: memref<35x136xf32, #tpu.memory_space<vmem>>, %arg7: memref<259x1xf32, #tpu.memory_space<vmem>>, %arg8: memref<8x2xf32, #tpu.memory_space<vmem>>, %arg9: memref<3x2xf32, #tpu.memory_space<vmem>>) attributes {dimension_semantics = [], scalar_prefetch = 0 : i64, scratch_operands = 0 : i64, tpu.core_type = #tpu.core_type<tc>} {
    %c0 = arith.constant 0 : index
    %c0_0 = arith.constant 0 : index
    %0 = vector.load %arg7[%c0, %c0_0] : memref<259x1xf32, #tpu.memory_space<vmem>>, vector<32x1xf32>
    %c32 = arith.constant 32 : index
    %c0_1 = arith.constant 0 : index
    %1 = vector.load %arg7[%c32, %c0_1] : memref<259x1xf32, #tpu.memory_space<vmem>>, vector<64x1xf32>
    %c96 = arith.constant 96 : index
    %c0_2 = arith.constant 0 : index
    %2 = vector.load %arg7[%c96, %c0_2] : memref<259x1xf32, #tpu.memory_space<vmem>>, vector<128x1xf32>
    %c224 = arith.constant 224 : index
    %c0_3 = arith.constant 0 : index
    %3 = vector.load %arg7[%c224, %c0_3] : memref<259x1xf32, #tpu.memory_space<vmem>>, vector<32x1xf32>
    %c256 = arith.constant 256 : index
    %c0_4 = arith.constant 0 : index
    %4 = vector.load %arg7[%c256, %c0_4] : memref<259x1xf32, #tpu.memory_space<vmem>>, vector<3x1xf32>
    %c0_5 = arith.constant 0 : index
    %c0_6 = arith.constant 0 : index
    %5 = vector.load %arg0[%c0_5, %c0_6] : memref<8x512xf32, #tpu.memory_space<vmem>>, vector<8x512xf32>
    %c17_i32 = arith.constant 17 : i32
    %6 = tpu.dynamic_rotate %5 by %c17_i32 dim 1 : vector<8x512xf32>, i32 -> vector<8x512xf32>
    %c0_7 = arith.constant 0 : index
    %c0_8 = arith.constant 0 : index
    %c0_9 = arith.constant 0 : index
    %7 = vector.load %arg1[%c0_7, %c0_8, %c0_9] : memref<9x1x512xf32, #tpu.memory_space<vmem>>, vector<1x1x512xf32>
    %8 = vector.shape_cast %7 : vector<1x1x512xf32> to vector<1x512xf32>
    %9 = vector.broadcast %8 : vector<1x512xf32> to vector<8x512xf32>
    %10 = arith.mulf %6, %9 : vector<8x512xf32>
    %c16_i32 = arith.constant 16 : i32
    %11 = tpu.dynamic_rotate %5 by %c16_i32 dim 1 : vector<8x512xf32>, i32 -> vector<8x512xf32>
    %c1 = arith.constant 1 : index
    %c0_10 = arith.constant 0 : index
    %c0_11 = arith.constant 0 : index
    %12 = vector.load %arg1[%c1, %c0_10, %c0_11] : memref<9x1x512xf32, #tpu.memory_space<vmem>>, vector<1x1x512xf32>
    %13 = vector.shape_cast %12 : vector<1x1x512xf32> to vector<1x512xf32>
    %14 = vector.broadcast %13 : vector<1x512xf32> to vector<8x512xf32>
    %15 = arith.mulf %11, %14 : vector<8x512xf32>
    %c15_i32 = arith.constant 15 : i32
    %16 = tpu.dynamic_rotate %5 by %c15_i32 dim 1 : vector<8x512xf32>, i32 -> vector<8x512xf32>
    %c2 = arith.constant 2 : index
    %c0_12 = arith.constant 0 : index
    %c0_13 = arith.constant 0 : index
    %17 = vector.load %arg1[%c2, %c0_12, %c0_13] : memref<9x1x512xf32, #tpu.memory_space<vmem>>, vector<1x1x512xf32>
    %18 = vector.shape_cast %17 : vector<1x1x512xf32> to vector<1x512xf32>
    %19 = vector.broadcast %18 : vector<1x512xf32> to vector<8x512xf32>
    %20 = arith.mulf %16, %19 : vector<8x512xf32>
    %c1_i32 = arith.constant 1 : i32
    %21 = tpu.dynamic_rotate %5 by %c1_i32 dim 1 : vector<8x512xf32>, i32 -> vector<8x512xf32>
    %c3 = arith.constant 3 : index
    %c0_14 = arith.constant 0 : index
    %c0_15 = arith.constant 0 : index
    %22 = vector.load %arg1[%c3, %c0_14, %c0_15] : memref<9x1x512xf32, #tpu.memory_space<vmem>>, vector<1x1x512xf32>
    %23 = vector.shape_cast %22 : vector<1x1x512xf32> to vector<1x512xf32>
    %24 = vector.broadcast %23 : vector<1x512xf32> to vector<8x512xf32>
    %25 = arith.mulf %21, %24 : vector<8x512xf32>
    %c4 = arith.constant 4 : index
    %c0_16 = arith.constant 0 : index
    %c0_17 = arith.constant 0 : index
    %26 = vector.load %arg1[%c4, %c0_16, %c0_17] : memref<9x1x512xf32, #tpu.memory_space<vmem>>, vector<1x1x512xf32>
    %27 = vector.shape_cast %26 : vector<1x1x512xf32> to vector<1x512xf32>
    %28 = vector.broadcast %27 : vector<1x512xf32> to vector<8x512xf32>
    %29 = arith.mulf %5, %28 : vector<8x512xf32>
    %c511_i32 = arith.constant 511 : i32
    %30 = tpu.dynamic_rotate %5 by %c511_i32 dim 1 : vector<8x512xf32>, i32 -> vector<8x512xf32>
    %c5 = arith.constant 5 : index
    %c0_18 = arith.constant 0 : index
    %c0_19 = arith.constant 0 : index
    %31 = vector.load %arg1[%c5, %c0_18, %c0_19] : memref<9x1x512xf32, #tpu.memory_space<vmem>>, vector<1x1x512xf32>
    %32 = vector.shape_cast %31 : vector<1x1x512xf32> to vector<1x512xf32>
    %33 = vector.broadcast %32 : vector<1x512xf32> to vector<8x512xf32>
    %34 = arith.mulf %30, %33 : vector<8x512xf32>
    %c497_i32 = arith.constant 497 : i32
    %35 = tpu.dynamic_rotate %5 by %c497_i32 dim 1 : vector<8x512xf32>, i32 -> vector<8x512xf32>
    %c6 = arith.constant 6 : index
    %c0_20 = arith.constant 0 : index
    %c0_21 = arith.constant 0 : index
    %36 = vector.load %arg1[%c6, %c0_20, %c0_21] : memref<9x1x512xf32, #tpu.memory_space<vmem>>, vector<1x1x512xf32>
    %37 = vector.shape_cast %36 : vector<1x1x512xf32> to vector<1x512xf32>
    %38 = vector.broadcast %37 : vector<1x512xf32> to vector<8x512xf32>
    %39 = arith.mulf %35, %38 : vector<8x512xf32>
    %c496_i32 = arith.constant 496 : i32
    %40 = tpu.dynamic_rotate %5 by %c496_i32 dim 1 : vector<8x512xf32>, i32 -> vector<8x512xf32>
    %c7 = arith.constant 7 : index
    %c0_22 = arith.constant 0 : index
    %c0_23 = arith.constant 0 : index
    %41 = vector.load %arg1[%c7, %c0_22, %c0_23] : memref<9x1x512xf32, #tpu.memory_space<vmem>>, vector<1x1x512xf32>
    %42 = vector.shape_cast %41 : vector<1x1x512xf32> to vector<1x512xf32>
    %43 = vector.broadcast %42 : vector<1x512xf32> to vector<8x512xf32>
    %44 = arith.mulf %40, %43 : vector<8x512xf32>
    %c495_i32 = arith.constant 495 : i32
    %45 = tpu.dynamic_rotate %5 by %c495_i32 dim 1 : vector<8x512xf32>, i32 -> vector<8x512xf32>
    %c8 = arith.constant 8 : index
    %c0_24 = arith.constant 0 : index
    %c0_25 = arith.constant 0 : index
    %46 = vector.load %arg1[%c8, %c0_24, %c0_25] : memref<9x1x512xf32, #tpu.memory_space<vmem>>, vector<1x1x512xf32>
    %47 = vector.shape_cast %46 : vector<1x1x512xf32> to vector<1x512xf32>
    %48 = vector.broadcast %47 : vector<1x512xf32> to vector<8x512xf32>
    %49 = arith.mulf %45, %48 : vector<8x512xf32>
    %50 = tpu.concatenate %10, %15, %20, %25, %29, %34, %39, %44, %49 in 0 : vector<8x512xf32>, vector<8x512xf32>, vector<8x512xf32>, vector<8x512xf32>, vector<8x512xf32>, vector<8x512xf32>, vector<8x512xf32>, vector<8x512xf32>, vector<8x512xf32> -> vector<72x512xf32>
    %51 = arith.truncf %50 : vector<72x512xf32> to vector<72x512xbf16>
    %c0_26 = arith.constant 0 : index
    %c0_27 = arith.constant 0 : index
    %52 = vector.load %arg2[%c0_26, %c0_27] : memref<32x72xbf16, #tpu.memory_space<vmem>>, vector<32x72xbf16>
    %cst = arith.constant dense<0.000000e+00> : vector<32x512xf32>
    %53 = tpu.matmul %52, %51, %cst {dimension_numbers = #tpu.dot_dimension_numbers<[1], [0], [0], [1], [0, 0, 1, 1], [], []>} : vector<32x72xbf16>, vector<72x512xbf16>, vector<32x512xf32> -> vector<32x512xf32>
    %54 = vector.broadcast %0 : vector<32x1xf32> to vector<32x512xf32>
    %55 = arith.addf %53, %54 : vector<32x512xf32>
    %cst_28 = arith.constant 0.000000e+00 : f32
    %56 = vector.broadcast %cst_28 : f32 to vector<32x512xf32>
    %57 = arith.subf %56, %55 : vector<32x512xf32>
    %58 = math.exp %57 : vector<32x512xf32>
    %cst_29 = arith.constant 1.000000e+00 : f32
    %59 = vector.broadcast %cst_29 : f32 to vector<32x512xf32>
    %60 = arith.addf %59, %58 : vector<32x512xf32>
    %61 = tpu.reciprocal %60 {approx = true} : vector<32x512xf32> -> vector<32x512xf32>
    %62 = arith.mulf %55, %61 : vector<32x512xf32>
    %c17_i32_30 = arith.constant 17 : i32
    %63 = tpu.dynamic_rotate %62 by %c17_i32_30 dim 1 : vector<32x512xf32>, i32 -> vector<32x512xf32>
    %c0_31 = arith.constant 0 : index
    %c0_32 = arith.constant 0 : index
    %c0_33 = arith.constant 0 : index
    %64 = vector.load %arg1[%c0_31, %c0_32, %c0_33] : memref<9x1x512xf32, #tpu.memory_space<vmem>>, vector<1x1x512xf32>
    %65 = vector.shape_cast %64 : vector<1x1x512xf32> to vector<1x512xf32>
    %66 = vector.broadcast %65 : vector<1x512xf32> to vector<32x512xf32>
    %67 = arith.mulf %63, %66 : vector<32x512xf32>
    %c16_i32_34 = arith.constant 16 : i32
    %68 = tpu.dynamic_rotate %62 by %c16_i32_34 dim 1 : vector<32x512xf32>, i32 -> vector<32x512xf32>
    %c1_35 = arith.constant 1 : index
    %c0_36 = arith.constant 0 : index
    %c0_37 = arith.constant 0 : index
    %69 = vector.load %arg1[%c1_35, %c0_36, %c0_37] : memref<9x1x512xf32, #tpu.memory_space<vmem>>, vector<1x1x512xf32>
    %70 = vector.shape_cast %69 : vector<1x1x512xf32> to vector<1x512xf32>
    %71 = vector.broadcast %70 : vector<1x512xf32> to vector<32x512xf32>
    %72 = arith.mulf %68, %71 : vector<32x512xf32>
    %c15_i32_38 = arith.constant 15 : i32
    %73 = tpu.dynamic_rotate %62 by %c15_i32_38 dim 1 : vector<32x512xf32>, i32 -> vector<32x512xf32>
    %c2_39 = arith.constant 2 : index
    %c0_40 = arith.constant 0 : index
    %c0_41 = arith.constant 0 : index
    %74 = vector.load %arg1[%c2_39, %c0_40, %c0_41] : memref<9x1x512xf32, #tpu.memory_space<vmem>>, vector<1x1x512xf32>
    %75 = vector.shape_cast %74 : vector<1x1x512xf32> to vector<1x512xf32>
    %76 = vector.broadcast %75 : vector<1x512xf32> to vector<32x512xf32>
    %77 = arith.mulf %73, %76 : vector<32x512xf32>
    %c1_i32_42 = arith.constant 1 : i32
    %78 = tpu.dynamic_rotate %62 by %c1_i32_42 dim 1 : vector<32x512xf32>, i32 -> vector<32x512xf32>
    %c3_43 = arith.constant 3 : index
    %c0_44 = arith.constant 0 : index
    %c0_45 = arith.constant 0 : index
    %79 = vector.load %arg1[%c3_43, %c0_44, %c0_45] : memref<9x1x512xf32, #tpu.memory_space<vmem>>, vector<1x1x512xf32>
    %80 = vector.shape_cast %79 : vector<1x1x512xf32> to vector<1x512xf32>
    %81 = vector.broadcast %80 : vector<1x512xf32> to vector<32x512xf32>
    %82 = arith.mulf %78, %81 : vector<32x512xf32>
    %c4_46 = arith.constant 4 : index
    %c0_47 = arith.constant 0 : index
    %c0_48 = arith.constant 0 : index
    %83 = vector.load %arg1[%c4_46, %c0_47, %c0_48] : memref<9x1x512xf32, #tpu.memory_space<vmem>>, vector<1x1x512xf32>
    %84 = vector.shape_cast %83 : vector<1x1x512xf32> to vector<1x512xf32>
    %85 = vector.broadcast %84 : vector<1x512xf32> to vector<32x512xf32>
    %86 = arith.mulf %62, %85 : vector<32x512xf32>
    %c511_i32_49 = arith.constant 511 : i32
    %87 = tpu.dynamic_rotate %62 by %c511_i32_49 dim 1 : vector<32x512xf32>, i32 -> vector<32x512xf32>
    %c5_50 = arith.constant 5 : index
    %c0_51 = arith.constant 0 : index
    %c0_52 = arith.constant 0 : index
    %88 = vector.load %arg1[%c5_50, %c0_51, %c0_52] : memref<9x1x512xf32, #tpu.memory_space<vmem>>, vector<1x1x512xf32>
    %89 = vector.shape_cast %88 : vector<1x1x512xf32> to vector<1x512xf32>
    %90 = vector.broadcast %89 : vector<1x512xf32> to vector<32x512xf32>
    %91 = arith.mulf %87, %90 : vector<32x512xf32>
    %c497_i32_53 = arith.constant 497 : i32
    %92 = tpu.dynamic_rotate %62 by %c497_i32_53 dim 1 : vector<32x512xf32>, i32 -> vector<32x512xf32>
    %c6_54 = arith.constant 6 : index
    %c0_55 = arith.constant 0 : index
    %c0_56 = arith.constant 0 : index
    %93 = vector.load %arg1[%c6_54, %c0_55, %c0_56] : memref<9x1x512xf32, #tpu.memory_space<vmem>>, vector<1x1x512xf32>
    %94 = vector.shape_cast %93 : vector<1x1x512xf32> to vector<1x512xf32>
    %95 = vector.broadcast %94 : vector<1x512xf32> to vector<32x512xf32>
    %96 = arith.mulf %92, %95 : vector<32x512xf32>
    %c496_i32_57 = arith.constant 496 : i32
    %97 = tpu.dynamic_rotate %62 by %c496_i32_57 dim 1 : vector<32x512xf32>, i32 -> vector<32x512xf32>
    %c7_58 = arith.constant 7 : index
    %c0_59 = arith.constant 0 : index
    %c0_60 = arith.constant 0 : index
    %98 = vector.load %arg1[%c7_58, %c0_59, %c0_60] : memref<9x1x512xf32, #tpu.memory_space<vmem>>, vector<1x1x512xf32>
    %99 = vector.shape_cast %98 : vector<1x1x512xf32> to vector<1x512xf32>
    %100 = vector.broadcast %99 : vector<1x512xf32> to vector<32x512xf32>
    %101 = arith.mulf %97, %100 : vector<32x512xf32>
    %c495_i32_61 = arith.constant 495 : i32
    %102 = tpu.dynamic_rotate %62 by %c495_i32_61 dim 1 : vector<32x512xf32>, i32 -> vector<32x512xf32>
    %c8_62 = arith.constant 8 : index
    %c0_63 = arith.constant 0 : index
    %c0_64 = arith.constant 0 : index
    %103 = vector.load %arg1[%c8_62, %c0_63, %c0_64] : memref<9x1x512xf32, #tpu.memory_space<vmem>>, vector<1x1x512xf32>
    %104 = vector.shape_cast %103 : vector<1x1x512xf32> to vector<1x512xf32>
    %105 = vector.broadcast %104 : vector<1x512xf32> to vector<32x512xf32>
    %106 = arith.mulf %102, %105 : vector<32x512xf32>
    %107 = tpu.concatenate %67, %72, %77, %82, %86, %91, %96, %101, %106 in 0 : vector<32x512xf32>, vector<32x512xf32>, vector<32x512xf32>, vector<32x512xf32>, vector<32x512xf32>, vector<32x512xf32>, vector<32x512xf32>, vector<32x512xf32>, vector<32x512xf32> -> vector<288x512xf32>
    %108 = arith.truncf %107 : vector<288x512xf32> to vector<288x512xbf16>
    %c0_65 = arith.constant 0 : index
    %c0_66 = arith.constant 0 : index
    %109 = vector.load %arg3[%c0_65, %c0_66] : memref<64x288xbf16, #tpu.memory_space<vmem>>, vector<64x288xbf16>
    %cst_67 = arith.constant dense<0.000000e+00> : vector<64x512xf32>
    %110 = tpu.matmul %109, %108, %cst_67 {dimension_numbers = #tpu.dot_dimension_numbers<[1], [0], [0], [1], [0, 0, 1, 1], [], []>} : vector<64x288xbf16>, vector<288x512xbf16>, vector<64x512xf32> -> vector<64x512xf32>
    %111 = vector.broadcast %1 : vector<64x1xf32> to vector<64x512xf32>
    %112 = arith.addf %110, %111 : vector<64x512xf32>
    %cst_68 = arith.constant 0.000000e+00 : f32
    %113 = vector.broadcast %cst_68 : f32 to vector<64x512xf32>
    %114 = arith.subf %113, %112 : vector<64x512xf32>
    %115 = math.exp %114 : vector<64x512xf32>
    %cst_69 = arith.constant 1.000000e+00 : f32
    %116 = vector.broadcast %cst_69 : f32 to vector<64x512xf32>
    %117 = arith.addf %116, %115 : vector<64x512xf32>
    %118 = tpu.reciprocal %117 {approx = true} : vector<64x512xf32> -> vector<64x512xf32>
    %119 = arith.mulf %112, %118 : vector<64x512xf32>
    %c17_i32_70 = arith.constant 17 : i32
    %120 = tpu.dynamic_rotate %119 by %c17_i32_70 dim 1 : vector<64x512xf32>, i32 -> vector<64x512xf32>
    %c0_71 = arith.constant 0 : index
    %c0_72 = arith.constant 0 : index
    %c0_73 = arith.constant 0 : index
    %121 = vector.load %arg1[%c0_71, %c0_72, %c0_73] : memref<9x1x512xf32, #tpu.memory_space<vmem>>, vector<1x1x512xf32>
    %122 = vector.shape_cast %121 : vector<1x1x512xf32> to vector<1x512xf32>
    %123 = vector.broadcast %122 : vector<1x512xf32> to vector<64x512xf32>
    %124 = arith.mulf %120, %123 : vector<64x512xf32>
    %c16_i32_74 = arith.constant 16 : i32
    %125 = tpu.dynamic_rotate %119 by %c16_i32_74 dim 1 : vector<64x512xf32>, i32 -> vector<64x512xf32>
    %c1_75 = arith.constant 1 : index
    %c0_76 = arith.constant 0 : index
    %c0_77 = arith.constant 0 : index
    %126 = vector.load %arg1[%c1_75, %c0_76, %c0_77] : memref<9x1x512xf32, #tpu.memory_space<vmem>>, vector<1x1x512xf32>
    %127 = vector.shape_cast %126 : vector<1x1x512xf32> to vector<1x512xf32>
    %128 = vector.broadcast %127 : vector<1x512xf32> to vector<64x512xf32>
    %129 = arith.mulf %125, %128 : vector<64x512xf32>
    %c15_i32_78 = arith.constant 15 : i32
    %130 = tpu.dynamic_rotate %119 by %c15_i32_78 dim 1 : vector<64x512xf32>, i32 -> vector<64x512xf32>
    %c2_79 = arith.constant 2 : index
    %c0_80 = arith.constant 0 : index
    %c0_81 = arith.constant 0 : index
    %131 = vector.load %arg1[%c2_79, %c0_80, %c0_81] : memref<9x1x512xf32, #tpu.memory_space<vmem>>, vector<1x1x512xf32>
    %132 = vector.shape_cast %131 : vector<1x1x512xf32> to vector<1x512xf32>
    %133 = vector.broadcast %132 : vector<1x512xf32> to vector<64x512xf32>
    %134 = arith.mulf %130, %133 : vector<64x512xf32>
    %c1_i32_82 = arith.constant 1 : i32
    %135 = tpu.dynamic_rotate %119 by %c1_i32_82 dim 1 : vector<64x512xf32>, i32 -> vector<64x512xf32>
    %c3_83 = arith.constant 3 : index
    %c0_84 = arith.constant 0 : index
    %c0_85 = arith.constant 0 : index
    %136 = vector.load %arg1[%c3_83, %c0_84, %c0_85] : memref<9x1x512xf32, #tpu.memory_space<vmem>>, vector<1x1x512xf32>
    %137 = vector.shape_cast %136 : vector<1x1x512xf32> to vector<1x512xf32>
    %138 = vector.broadcast %137 : vector<1x512xf32> to vector<64x512xf32>
    %139 = arith.mulf %135, %138 : vector<64x512xf32>
    %c4_86 = arith.constant 4 : index
    %c0_87 = arith.constant 0 : index
    %c0_88 = arith.constant 0 : index
    %140 = vector.load %arg1[%c4_86, %c0_87, %c0_88] : memref<9x1x512xf32, #tpu.memory_space<vmem>>, vector<1x1x512xf32>
    %141 = vector.shape_cast %140 : vector<1x1x512xf32> to vector<1x512xf32>
    %142 = vector.broadcast %141 : vector<1x512xf32> to vector<64x512xf32>
    %143 = arith.mulf %119, %142 : vector<64x512xf32>
    %c511_i32_89 = arith.constant 511 : i32
    %144 = tpu.dynamic_rotate %119 by %c511_i32_89 dim 1 : vector<64x512xf32>, i32 -> vector<64x512xf32>
    %c5_90 = arith.constant 5 : index
    %c0_91 = arith.constant 0 : index
    %c0_92 = arith.constant 0 : index
    %145 = vector.load %arg1[%c5_90, %c0_91, %c0_92] : memref<9x1x512xf32, #tpu.memory_space<vmem>>, vector<1x1x512xf32>
    %146 = vector.shape_cast %145 : vector<1x1x512xf32> to vector<1x512xf32>
    %147 = vector.broadcast %146 : vector<1x512xf32> to vector<64x512xf32>
    %148 = arith.mulf %144, %147 : vector<64x512xf32>
    %c497_i32_93 = arith.constant 497 : i32
    %149 = tpu.dynamic_rotate %119 by %c497_i32_93 dim 1 : vector<64x512xf32>, i32 -> vector<64x512xf32>
    %c6_94 = arith.constant 6 : index
    %c0_95 = arith.constant 0 : index
    %c0_96 = arith.constant 0 : index
    %150 = vector.load %arg1[%c6_94, %c0_95, %c0_96] : memref<9x1x512xf32, #tpu.memory_space<vmem>>, vector<1x1x512xf32>
    %151 = vector.shape_cast %150 : vector<1x1x512xf32> to vector<1x512xf32>
    %152 = vector.broadcast %151 : vector<1x512xf32> to vector<64x512xf32>
    %153 = arith.mulf %149, %152 : vector<64x512xf32>
    %c496_i32_97 = arith.constant 496 : i32
    %154 = tpu.dynamic_rotate %119 by %c496_i32_97 dim 1 : vector<64x512xf32>, i32 -> vector<64x512xf32>
    %c7_98 = arith.constant 7 : index
    %c0_99 = arith.constant 0 : index
    %c0_100 = arith.constant 0 : index
    %155 = vector.load %arg1[%c7_98, %c0_99, %c0_100] : memref<9x1x512xf32, #tpu.memory_space<vmem>>, vector<1x1x512xf32>
    %156 = vector.shape_cast %155 : vector<1x1x512xf32> to vector<1x512xf32>
    %157 = vector.broadcast %156 : vector<1x512xf32> to vector<64x512xf32>
    %158 = arith.mulf %154, %157 : vector<64x512xf32>
    %c495_i32_101 = arith.constant 495 : i32
    %159 = tpu.dynamic_rotate %119 by %c495_i32_101 dim 1 : vector<64x512xf32>, i32 -> vector<64x512xf32>
    %c8_102 = arith.constant 8 : index
    %c0_103 = arith.constant 0 : index
    %c0_104 = arith.constant 0 : index
    %160 = vector.load %arg1[%c8_102, %c0_103, %c0_104] : memref<9x1x512xf32, #tpu.memory_space<vmem>>, vector<1x1x512xf32>
    %161 = vector.shape_cast %160 : vector<1x1x512xf32> to vector<1x512xf32>
    %162 = vector.broadcast %161 : vector<1x512xf32> to vector<64x512xf32>
    %163 = arith.mulf %159, %162 : vector<64x512xf32>
    %164 = tpu.concatenate %124, %129, %134, %139, %143, %148, %153, %158, %163 in 0 : vector<64x512xf32>, vector<64x512xf32>, vector<64x512xf32>, vector<64x512xf32>, vector<64x512xf32>, vector<64x512xf32>, vector<64x512xf32>, vector<64x512xf32>, vector<64x512xf32> -> vector<576x512xf32>
    %165 = arith.truncf %164 : vector<576x512xf32> to vector<576x512xbf16>
    %c0_105 = arith.constant 0 : index
    %c0_106 = arith.constant 0 : index
    %166 = vector.load %arg4[%c0_105, %c0_106] : memref<128x576xbf16, #tpu.memory_space<vmem>>, vector<128x576xbf16>
    %cst_107 = arith.constant dense<0.000000e+00> : vector<128x512xf32>
    %167 = tpu.matmul %166, %165, %cst_107 {dimension_numbers = #tpu.dot_dimension_numbers<[1], [0], [0], [1], [0, 0, 1, 1], [], []>} : vector<128x576xbf16>, vector<576x512xbf16>, vector<128x512xf32> -> vector<128x512xf32>
    %168 = vector.broadcast %2 : vector<128x1xf32> to vector<128x512xf32>
    %169 = arith.addf %167, %168 : vector<128x512xf32>
    %cst_108 = arith.constant 0.000000e+00 : f32
    %170 = vector.broadcast %cst_108 : f32 to vector<128x512xf32>
    %171 = arith.subf %170, %169 : vector<128x512xf32>
    %172 = math.exp %171 : vector<128x512xf32>
    %cst_109 = arith.constant 1.000000e+00 : f32
    %173 = vector.broadcast %cst_109 : f32 to vector<128x512xf32>
    %174 = arith.addf %173, %172 : vector<128x512xf32>
    %175 = tpu.reciprocal %174 {approx = true} : vector<128x512xf32> -> vector<128x512xf32>
    %176 = arith.mulf %169, %175 : vector<128x512xf32>
    %177 = arith.truncf %176 : vector<128x512xf32> to vector<128x512xbf16>
    %c0_110 = arith.constant 0 : index
    %c0_111 = arith.constant 0 : index
    %178 = vector.load %arg5[%c0_110, %c0_111] : memref<512x2xbf16, #tpu.memory_space<vmem>>, vector<512x2xbf16>
    %cst_112 = arith.constant dense<0.000000e+00> : vector<128x2xf32>
    %179 = tpu.matmul %177, %178, %cst_112 {dimension_numbers = #tpu.dot_dimension_numbers<[1], [0], [0], [1], [0, 0, 1, 1], [], []>} : vector<128x512xbf16>, vector<512x2xbf16>, vector<128x2xf32> -> vector<128x2xf32>
    %c0_113 = arith.constant 0 : index
    %c0_114 = arith.constant 0 : index
    %180 = vector.load %arg8[%c0_113, %c0_114] : memref<8x2xf32, #tpu.memory_space<vmem>>, vector<8x2xf32>
    %181 = tpu.concatenate %179, %180 in 0 : vector<128x2xf32>, vector<8x2xf32> -> vector<136x2xf32>
    %c0_115 = arith.constant 0 : index
    %c0_116 = arith.constant 0 : index
    %182 = vector.load %arg6[%c0_115, %c0_116] : memref<35x136xf32, #tpu.memory_space<vmem>>, vector<32x136xf32>
    %183 = arith.truncf %182 : vector<32x136xf32> to vector<32x136xbf16>
    %c32_117 = arith.constant 32 : index
    %c0_118 = arith.constant 0 : index
    %184 = vector.load %arg6[%c32_117, %c0_118] : memref<35x136xf32, #tpu.memory_space<vmem>>, vector<3x32xf32>
    %185 = arith.truncf %184 : vector<3x32xf32> to vector<3x32xbf16>
    %186 = arith.truncf %181 : vector<136x2xf32> to vector<136x2xbf16>
    %cst_119 = arith.constant dense<0.000000e+00> : vector<32x2xf32>
    %187 = tpu.matmul %183, %186, %cst_119 {dimension_numbers = #tpu.dot_dimension_numbers<[1], [0], [0], [1], [0, 0, 1, 1], [], []>} : vector<32x136xbf16>, vector<136x2xbf16>, vector<32x2xf32> -> vector<32x2xf32>
    %188 = vector.broadcast %3 : vector<32x1xf32> to vector<32x2xf32>
    %189 = arith.addf %187, %188 : vector<32x2xf32>
    %cst_120 = arith.constant 0.000000e+00 : f32
    %190 = vector.broadcast %cst_120 : f32 to vector<32x2xf32>
    %191 = arith.maximumf %189, %190 : vector<32x2xf32>
    %192 = arith.truncf %191 : vector<32x2xf32> to vector<32x2xbf16>
    %cst_121 = arith.constant dense<0.000000e+00> : vector<3x2xf32>
    %193 = tpu.matmul %185, %192, %cst_121 {dimension_numbers = #tpu.dot_dimension_numbers<[1], [0], [0], [1], [0, 0, 1, 1], [], []>} : vector<3x32xbf16>, vector<32x2xbf16>, vector<3x2xf32> -> vector<3x2xf32>
    %194 = vector.broadcast %4 : vector<3x1xf32> to vector<3x2xf32>
    %195 = arith.addf %193, %194 : vector<3x2xf32>
    %c0_122 = arith.constant 0 : index
    %c0_123 = arith.constant 0 : index
    %196 = vector.load %arg9[%c0_122, %c0_123] : memref<3x2xf32, #tpu.memory_space<vmem>>, vector<3x2xf32>
    tpu.vector_store %arg9[%c0_122, %c0_123], %195 {strides = array<i32>} : memref<3x2xf32, #tpu.memory_space<vmem>>, vector<3x2xf32>,
    return
  }
}

</mosaic_0001>

<llo_original>
// kernel: picture_net_forward.1
$region0: #{picture_net_forward.1}
  #allocation0 [shape = 'u32[]', space=smem, size = 0x4, offset = 0x4, fixed_abs, tag = 'smem constant byte address 0x4 - core index']
  #allocation1 [shape = 'u32[144,128]{1,0:T(1,128)}', space=vmem, size = 0x12000, scoped, tag = 'internal scratch']
  %s0 = inlined_call_operand.vmem [shape: f32[8,512], index: 0, kind: input, shape index: {}]
  %s1 = inlined_call_operand.vmem [shape: f32[9,1,512], index: 1, kind: input, shape index: {}]
  %s2 = inlined_call_operand.vmem [shape: bf16[32,72], index: 2, kind: input, shape index: {}]
  %s3 = inlined_call_operand.vmem [shape: bf16[64,288], index: 3, kind: input, shape index: {}]
  %s4 = inlined_call_operand.vmem [shape: bf16[128,576], index: 4, kind: input, shape index: {}]
  %s5 = inlined_call_operand.vmem [shape: bf16[512,2], index: 5, kind: input, shape index: {}]
  %s6 = inlined_call_operand.vmem [shape: f32[35,136], index: 6, kind: input, shape index: {}]
  %s7 = inlined_call_operand.vmem [shape: f32[259,1], index: 7, kind: input, shape index: {}]
  %s8 = inlined_call_operand.vmem [shape: f32[8,2], index: 8, kind: input, shape index: {}]
  %s9 = inlined_call_operand.vmem [shape: f32[3,2], index: 9, kind: output, shape index: {}]
  %s10 = sld [smem:[#allocation0]]
  $region46: #{picture_net_forward.1} parent=0
    _
  %s12 = ssub.s32 1, %s10
  %s13 = scalar_select 0, %s12, %s10
  // Predicated region
  $region2: #{picture_net_forward.1} parent=0 // pred_check
    _
  $region3: #{picture_net_forward.1} parent=0 // pred_check_branch
    %15 = sbr.rel (0) target = $region5
  $region4: #{picture_net_forward.1} parent=0 // pred_region
    _
  $region5: #{picture_net_forward.1} parent=0 // pred_fallthru
    _
  // Predicated region
  $region6: #{picture_net_forward.1} parent=0 // pred_check
    _
  $region7: #{picture_net_forward.1} parent=0 // pred_check_branch
    %17 = sbr.rel (0) target = $region9
  $region8: #{picture_net_forward.1} parent=0 // pred_region
    _
  $region9: #{picture_net_forward.1} parent=0 // pred_fallthru
    _
  // Predicated region
  $region10: #{picture_net_forward.1} parent=0 // pred_check
    _
  $region11: #{picture_net_forward.1} parent=0 // pred_check_branch
    %19 = sbr.rel (0) target = $region13
  $region12: #{picture_net_forward.1} parent=0 // pred_region
    _
  $region13: #{picture_net_forward.1} parent=0 // pred_fallthru
    _
  // Predicated region
  $region14: #{picture_net_forward.1} parent=0 // pred_check
    _
  $region15: #{picture_net_forward.1} parent=0 // pred_check_branch
    %21 = sbr.rel (0) target = $region17
  $region16: #{picture_net_forward.1} parent=0 // pred_region
    _
  $region17: #{picture_net_forward.1} parent=0 // pred_fallthru
    _
  // Predicated region
  $region18: #{picture_net_forward.1} parent=0 // pred_check
    _
  $region19: #{picture_net_forward.1} parent=0 // pred_check_branch
    %23 = sbr.rel (0) target = $region21
  $region20: #{picture_net_forward.1} parent=0 // pred_region
    _
  $region21: #{picture_net_forward.1} parent=0 // pred_fallthru
    _
  // Predicated region
  $region22: #{picture_net_forward.1} parent=0 // pred_check
    _
  $region23: #{picture_net_forward.1} parent=0 // pred_check_branch
    %25 = sbr.rel (0) target = $region25
  $region24: #{picture_net_forward.1} parent=0 // pred_region
    _
  $region25: #{picture_net_forward.1} parent=0 // pred_fallthru
    _
  // Predicated region
  $region26: #{picture_net_forward.1} parent=0 // pred_check
    _
  $region27: #{picture_net_forward.1} parent=0 // pred_check_branch
    %27 = sbr.rel (0) target = $region29
  $region28: #{picture_net_forward.1} parent=0 // pred_region
    _
  $region29: #{picture_net_forward.1} parent=0 // pred_fallthru
    _
  // Predicated region
  $region30: #{picture_net_forward.1} parent=0 // pred_check
    _
  $region31: #{picture_net_forward.1} parent=0 // pred_check_branch
    %29 = sbr.rel (0) target = $region33
  $region32: #{picture_net_forward.1} parent=0 // pred_region
    _
  $region33: #{picture_net_forward.1} parent=0 // pred_fallthru
    _
  // Predicated region
  $region34: #{picture_net_forward.1} parent=0 // pred_check
    _
  $region35: #{picture_net_forward.1} parent=0 // pred_check_branch
    %31 = sbr.rel (0) target = $region37
  $region36: #{picture_net_forward.1} parent=0 // pred_region
    _
  $region37: #{picture_net_forward.1} parent=0 // pred_fallthru
    _
  %v33 = vld [vmem:[%s7] sm:$0xff]
  %v34 = vld [vmem:[%s7 + $0x8] sm:$0xff]
  %v35 = vld [vmem:[%s7 + $0x10] sm:$0xff]
  %v36 = vld [vmem:[%s7 + $0x18] sm:$0xff]
  %v37 = vld [vmem:[%s7 + $0x20] sm:$0xff]
  %v38 = vld [vmem:[%s7 + $0x28] sm:$0xff]
  %v39 = vld [vmem:[%s7 + $0x30] sm:$0xff]
  %v40 = vld [vmem:[%s7 + $0x38] sm:$0xff]
  %v41 = vld [vmem:[%s7 + $0x40] sm:$0xff]
  %v42 = vld [vmem:[%s7 + $0x48] sm:$0xff]
  %v43 = vld [vmem:[%s7 + $0x50] sm:$0xff]
  %v44 = vld [vmem:[%s7 + $0x58] sm:$0xff]
  %v45 = vld [vmem:[%s7 + $0x60] sm:$0xff]
  %v46 = vld [vmem:[%s7 + $0x68] sm:$0xff]
  %v47 = vld [vmem:[%s7 + $0x70] sm:$0xff]
  %v48 = vld [vmem:[%s7 + $0x78] sm:$0xff]
  %v49 = vld [vmem:[%s7 + $0x80] sm:$0xff]
  %v50 = vld [vmem:[%s7 + $0x88] sm:$0xff]
  %v51 = vld [vmem:[%s7 + $0x90] sm:$0xff]
  %v52 = vld [vmem:[%s7 + $0x98] sm:$0xff]
  %v53 = vld [vmem:[%s7 + $0xa0] sm:$0xff]
  %v54 = vld [vmem:[%s7 + $0xa8] sm:$0xff]
  %v55 = vld [vmem:[%s7 + $0xb0] sm:$0xff]
  %v56 = vld [vmem:[%s7 + $0xb8] sm:$0xff]
  %v57 = vld [vmem:[%s7 + $0xc0] sm:$0xff]
  %v58 = vld [vmem:[%s7 + $0xc8] sm:$0xff]
  %v59 = vld [vmem:[%s7 + $0xd0] sm:$0xff]
  %v60 = vld [vmem:[%s7 + $0xd8] sm:$0xff]
  %v61 = vld [vmem:[%s7 + $0xe0] sm:$0xff]
  %v62 = vld [vmem:[%s7 + $0xe8] sm:$0xff]
  %v63 = vld [vmem:[%s7 + $0xf0] sm:$0xff]
  %v64 = vld [vmem:[%s7 + $0xf8] sm:$0xff]
  %v65 = vld [vmem:[%s7 + $0x100] sm:$0x7]
  %v66 = vld [vmem:[%s0] sm:$0xff]
  %v67 = vld [vmem:[%s0 + $0x8] sm:$0xff]
  %v68 = vld [vmem:[%s0 + $0x10] sm:$0xff]
  %v69 = vld [vmem:[%s0 + $0x18] sm:$0xff]
  %70 = vrot.lane.b32.xlu0 %v66, 17
  %v71 = vpop.permute.xlu0 %70
  %72 = vrot.lane.b32.xlu0 %v67, 17
  %v73 = vpop.permute.xlu0 %72
  %74 = vrot.lane.b32.xlu0 %v68, 17
  %v75 = vpop.permute.xlu0 %74
  %76 = vrot.lane.b32.xlu0 %v69, 17
  %v77 = vpop.permute.xlu0 %76
  %v78 = vlaneseq
  %v79 = vand.u32 %v78, 127
  %vm80 = vcmp.lt.s32.totalorder %v79, 17
  %v81 = vsel %vm80, %v75, %v77
  %v82 = vsel %vm80, %v73, %v75
  %v83 = vsel %vm80, %v71, %v73
  %v84 = vsel %vm80, %v77, %v71
  %v85 = vld [vmem:[%s1] sm:$0xf]
  %v87 = vlaneseq
  %v88 = vshrl.u32 %v87, 7
  %v89 = vsub.s32 0, %v88
  %v90 = vrot.slane %v85, %v89
  %v91 = vlaneseq
  %v92 = vshrl.u32 %v91, 7
  %v93 = vsub.s32 1, %v92
  %v94 = vrot.slane %v85, %v93
  %v95 = vlaneseq
  %v96 = vshrl.u32 %v95, 7
  %v97 = vsub.s32 2, %v96
  %v98 = vrot.slane %v85, %v97
  %v99 = vlaneseq
  %v100 = vshrl.u32 %v99, 7
  %v101 = vsub.s32 3, %v100
  %v102 = vrot.slane %v85, %v101
  %v107 = vmul.f32 %v84, %v90
  %v108 = vmul.f32 %v83, %v94
  %v109 = vmul.f32 %v82, %v98
  %v110 = vmul.f32 %v81, %v102
  %111 = vrot.lane.b32.xlu0 %v66, 16
  %v112 = vpop.permute.xlu0 %111
  %113 = vrot.lane.b32.xlu0 %v67, 16
  %v114 = vpop.permute.xlu0 %113
  %115 = vrot.lane.b32.xlu0 %v68, 16
  %v116 = vpop.permute.xlu0 %115
  %117 = vrot.lane.b32.xlu0 %v69, 16
  %v118 = vpop.permute.xlu0 %117
  %vm119 = vcmp.lt.s32.totalorder %v79, 16
  %v120 = vsel %vm119, %v116, %v118
  %v121 = vsel %vm119, %v114, %v116
  %v122 = vsel %vm119, %v112, %v114
  %v123 = vsel %vm119, %v118, %v112
  %s124 = scalar_lea.vmem %s1, 4
  %v125 = vld [vmem:[%s124] sm:$0xf]
  %v127 = vlaneseq
  %v128 = vshrl.u32 %v127, 7
  %v129 = vsub.s32 0, %v128
  %v130 = vrot.slane %v125, %v129
  %v131 = vlaneseq
  %v132 = vshrl.u32 %v131, 7
  %v133 = vsub.s32 1, %v132
  %v134 = vrot.slane %v125, %v133
  %v135 = vlaneseq
  %v136 = vshrl.u32 %v135, 7
  %v137 = vsub.s32 2, %v136
  %v138 = vrot.slane %v125, %v137
  %v139 = vlaneseq
  %v140 = vshrl.u32 %v139, 7
  %v141 = vsub.s32 3, %v140
  %v142 = vrot.slane %v125, %v141
  %v147 = vmul.f32 %v123, %v130
  %v148 = vmul.f32 %v122, %v134
  %v149 = vmul.f32 %v121, %v138
  %v150 = vmul.f32 %v120, %v142
  %151 = vrot.lane.b32.xlu0 %v66, 15
  %v152 = vpop.permute.xlu0 %151
  %153 = vrot.lane.b32.xlu0 %v67, 15
  %v154 = vpop.permute.xlu0 %153
  %155 = vrot.lane.b32.xlu0 %v68, 15
  %v156 = vpop.permute.xlu0 %155
  %157 = vrot.lane.b32.xlu0 %v69, 15
  %v158 = vpop.permute.xlu0 %157
  %vm159 = vcmp.lt.s32.totalorder %v79, 15
  %v160 = vsel %vm159, %v156, %v158
  %v161 = vsel %vm159, %v154, %v156
  %v162 = vsel %vm159, %v152, %v154
  %v163 = vsel %vm159, %v158, %v152
  %s164 = scalar_lea.vmem %s1, 8
  %v165 = vld [vmem:[%s164] sm:$0xf]
  %v167 = vlaneseq
  %v168 = vshrl.u32 %v167, 7
  %v169 = vsub.s32 0, %v168
  %v170 = vrot.slane %v165, %v169
  %v171 = vlaneseq
  %v172 = vshrl.u32 %v171, 7
  %v173 = vsub.s32 1, %v172
  %v174 = vrot.slane %v165, %v173
  %v175 = vlaneseq
  %v176 = vshrl.u32 %v175, 7
  %v177 = vsub.s32 2, %v176
  %v178 = vrot.slane %v165, %v177
  %v179 = vlaneseq
  %v180 = vshrl.u32 %v179, 7
  %v181 = vsub.s32 3, %v180
  %v182 = vrot.slane %v165, %v181
  %v187 = vmul.f32 %v163, %v170
  %v188 = vmul.f32 %v162, %v174
  %v189 = vmul.f32 %v161, %v178
  %v190 = vmul.f32 %v160, %v182
  %191 = vrot.lane.b32.xlu0 %v66, 1
  %v192 = vpop.permute.xlu0 %191
  %193 = vrot.lane.b32.xlu0 %v67, 1
  %v194 = vpop.permute.xlu0 %193
  %195 = vrot.lane.b32.xlu0 %v68, 1
  %v196 = vpop.permute.xlu0 %195
  %197 = vrot.lane.b32.xlu0 %v69, 1
  %v198 = vpop.permute.xlu0 %197
  %vm199 = vcmp.lt.s32.totalorder %v79, 1
  %v200 = vsel %vm199, %v196, %v198
  %v201 = vsel %vm199, %v194, %v196
  %v202 = vsel %vm199, %v192, %v194
  %v203 = vsel %vm199, %v198, %v192
  %s204 = scalar_lea.vmem %s1, 12
  %v205 = vld [vmem:[%s204] sm:$0xf]
  %v207 = vlaneseq
  %v208 = vshrl.u32 %v207, 7
  %v209 = vsub.s32 0, %v208
  %v210 = vrot.slane %v205, %v209
  %v211 = vlaneseq
  %v212 = vshrl.u32 %v211, 7
  %v213 = vsub.s32 1, %v212
  %v214 = vrot.slane %v205, %v213
  %v215 = vlaneseq
  %v216 = vshrl.u32 %v215, 7
  %v217 = vsub.s32 2, %v216
  %v218 = vrot.slane %v205, %v217
  %v219 = vlaneseq
  %v220 = vshrl.u32 %v219, 7
  %v221 = vsub.s32 3, %v220
  %v222 = vrot.slane %v205, %v221
  %v227 = vmul.f32 %v203, %v210
  %v228 = vmul.f32 %v202, %v214
  %v229 = vmul.f32 %v201, %v218
  %v230 = vmul.f32 %v200, %v222
  %s231 = scalar_lea.vmem %s1, 16
  %v232 = vld [vmem:[%s231] sm:$0xf]
  %v234 = vlaneseq
  %v235 = vshrl.u32 %v234, 7
  %v236 = vsub.s32 0, %v235
  %v237 = vrot.slane %v232, %v236
  %v238 = vlaneseq
  %v239 = vshrl.u32 %v238, 7
  %v240 = vsub.s32 1, %v239
  %v241 = vrot.slane %v232, %v240
  %v242 = vlaneseq
  %v243 = vshrl.u32 %v242, 7
  %v244 = vsub.s32 2, %v243
  %v245 = vrot.slane %v232, %v244
  %v246 = vlaneseq
  %v247 = vshrl.u32 %v246, 7
  %v248 = vsub.s32 3, %v247
  %v249 = vrot.slane %v232, %v248
  %v254 = vmul.f32 %v66, %v237
  %v255 = vmul.f32 %v67, %v241
  %v256 = vmul.f32 %v68, %v245
  %v257 = vmul.f32 %v69, %v249
  %258 = vrot.lane.b32.xlu0 %v66, 127
  %v259 = vpop.permute.xlu0 %258
  %260 = vrot.lane.b32.xlu0 %v67, 127
  %v261 = vpop.permute.xlu0 %260
  %262 = vrot.lane.b32.xlu0 %v68, 127
  %v263 = vpop.permute.xlu0 %262
  %264 = vrot.lane.b32.xlu0 %v69, 127
  %v265 = vpop.permute.xlu0 %264
  %vm266 = vcmp.lt.s32.totalorder %v79, 127
  %v267 = vsel %vm266, %v263, %v265
  %v268 = vsel %vm266, %v261, %v263
  %v269 = vsel %vm266, %v259, %v261
  %v270 = vsel %vm266, %v265, %v259
  %s271 = scalar_lea.vmem %s1, 20
  %v272 = vld [vmem:[%s271] sm:$0xf]
  %v274 = vlaneseq
  %v275 = vshrl.u32 %v274, 7
  %v276 = vsub.s32 0, %v275
  %v277 = vrot.slane %v272, %v276
  %v278 = vlaneseq
  %v279 = vshrl.u32 %v278, 7
  %v280 = vsub.s32 1, %v279
  %v281 = vrot.slane %v272, %v280
  %v282 = vlaneseq
  %v283 = vshrl.u32 %v282, 7
  %v284 = vsub.s32 2, %v283
  %v285 = vrot.slane %v272, %v284
  %v286 = vlaneseq
  %v287 = vshrl.u32 %v286, 7
  %v288 = vsub.s32 3, %v287
  %v289 = vrot.slane %v272, %v288
  %v294 = vmul.f32 %v269, %v277
  %v295 = vmul.f32 %v268, %v281
  %v296 = vmul.f32 %v267, %v285
  %v297 = vmul.f32 %v270, %v289
  %298 = vrot.lane.b32.xlu0 %v66, 113
  %v299 = vpop.permute.xlu0 %298
  %300 = vrot.lane.b32.xlu0 %v67, 113
  %v301 = vpop.permute.xlu0 %300
  %302 = vrot.lane.b32.xlu0 %v68, 113
  %v303 = vpop.permute.xlu0 %302
  %304 = vrot.lane.b32.xlu0 %v69, 113
  %v305 = vpop.permute.xlu0 %304
  %vm306 = vcmp.lt.s32.totalorder %v79, 113
  %v307 = vsel %vm306, %v303, %v305
  %v308 = vsel %vm306, %v301, %v303
  %v309 = vsel %vm306, %v299, %v301
  %v310 = vsel %vm306, %v305, %v299
  %s311 = scalar_lea.vmem %s1, 24
  %v312 = vld [vmem:[%s311] sm:$0xf]
  %v314 = vlaneseq
  %v315 = vshrl.u32 %v314, 7
  %v316 = vsub.s32 0, %v315
  %v317 = vrot.slane %v312, %v316
  %v318 = vlaneseq
  %v319 = vshrl.u32 %v318, 7
  %v320 = vsub.s32 1, %v319
  %v321 = vrot.slane %v312, %v320
  %v322 = vlaneseq
  %v323 = vshrl.u32 %v322, 7
  %v324 = vsub.s32 2, %v323
  %v325 = vrot.slane %v312, %v324
  %v326 = vlaneseq
  %v327 = vshrl.u32 %v326, 7
  %v328 = vsub.s32 3, %v327
  %v329 = vrot.slane %v312, %v328
  %v334 = vmul.f32 %v309, %v317
  %v335 = vmul.f32 %v308, %v321
  %v336 = vmul.f32 %v307, %v325
  %v337 = vmul.f32 %v310, %v329
  %338 = vrot.lane.b32.xlu0 %v66, 112
  %v339 = vpop.permute.xlu0 %338
  %340 = vrot.lane.b32.xlu0 %v67, 112
  %v341 = vpop.permute.xlu0 %340
  %342 = vrot.lane.b32.xlu0 %v68, 112
  %v343 = vpop.permute.xlu0 %342
  %344 = vrot.lane.b32.xlu0 %v69, 112
  %v345 = vpop.permute.xlu0 %344
  %vm346 = vcmp.lt.s32.totalorder %v79, 112
  %v347 = vsel %vm346, %v343, %v345
  %v348 = vsel %vm346, %v341, %v343
  %v349 = vsel %vm346, %v339, %v341
  %v350 = vsel %vm346, %v345, %v339
  %s351 = scalar_lea.vmem %s1, 28
  %v352 = vld [vmem:[%s351] sm:$0xf]
  %v354 = vlaneseq
  %v355 = vshrl.u32 %v354, 7
  %v356 = vsub.s32 0, %v355
  %v357 = vrot.slane %v352, %v356
  %v358 = vlaneseq
  %v359 = vshrl.u32 %v358, 7
  %v360 = vsub.s32 1, %v359
  %v361 = vrot.slane %v352, %v360
  %v362 = vlaneseq
  %v363 = vshrl.u32 %v362, 7
  %v364 = vsub.s32 2, %v363
  %v365 = vrot.slane %v352, %v364
  %v366 = vlaneseq
  %v367 = vshrl.u32 %v366, 7
  %v368 = vsub.s32 3, %v367
  %v369 = vrot.slane %v352, %v368
  %v374 = vmul.f32 %v349, %v357
  %v375 = vmul.f32 %v348, %v361
  %v376 = vmul.f32 %v347, %v365
  %v377 = vmul.f32 %v350, %v369
  %378 = vrot.lane.b32.xlu0 %v66, 111
  %v379 = vpop.permute.xlu0 %378
  %380 = vrot.lane.b32.xlu0 %v67, 111
  %v381 = vpop.permute.xlu0 %380
  %382 = vrot.lane.b32.xlu0 %v68, 111
  %v383 = vpop.permute.xlu0 %382
  %384 = vrot.lane.b32.xlu0 %v69, 111
  %v385 = vpop.permute.xlu0 %384
  %vm386 = vcmp.lt.s32.totalorder %v79, 111
  %v387 = vsel %vm386, %v383, %v385
  %v388 = vsel %vm386, %v381, %v383
  %v389 = vsel %vm386, %v379, %v381
  %v390 = vsel %vm386, %v385, %v379
  %s391 = scalar_lea.vmem %s1, 32
  %v392 = vld [vmem:[%s391] sm:$0xf]
  %v394 = vlaneseq
  %v395 = vshrl.u32 %v394, 7
  %v396 = vsub.s32 0, %v395
  %v397 = vrot.slane %v392, %v396
  %v398 = vlaneseq
  %v399 = vshrl.u32 %v398, 7
  %v400 = vsub.s32 1, %v399
  %v401 = vrot.slane %v392, %v400
  %v402 = vlaneseq
  %v403 = vshrl.u32 %v402, 7
  %v404 = vsub.s32 2, %v403
  %v405 = vrot.slane %v392, %v404
  %v406 = vlaneseq
  %v407 = vshrl.u32 %v406, 7
  %v408 = vsub.s32 3, %v407
  %v409 = vrot.slane %v392, %v408
  %v414 = vmul.f32 %v389, %v397
  %v415 = vmul.f32 %v388, %v401
  %v416 = vmul.f32 %v387, %v405
  %v417 = vmul.f32 %v390, %v409
  %v418 = vpack.c.bf16 %v147, %v107
  %v419 = vpack.c.bf16 %v148, %v108
  %v420 = vpack.c.bf16 %v149, %v109
  %v421 = vpack.c.bf16 %v150, %v110
  %v422 = vpack.c.bf16 %v227, %v187
  %v423 = vpack.c.bf16 %v228, %v188
  %v424 = vpack.c.bf16 %v229, %v189
  %v425 = vpack.c.bf16 %v230, %v190
  %v426 = vpack.c.bf16 %v294, %v254
  %v427 = vpack.c.bf16 %v295, %v255
  %v428 = vpack.c.bf16 %v296, %v256
  %v429 = vpack.c.bf16 %v297, %v257
  %v430 = vpack.c.bf16 %v374, %v334
  %v431 = vpack.c.bf16 %v375, %v335
  %v432 = vpack.c.bf16 %v376, %v336
  %v433 = vpack.c.bf16 %v377, %v337
  %v434 = vpack.c.bf16 %v414, %v414
  %v435 = vpack.c.bf16 %v415, %v415
  %v436 = vpack.c.bf16 %v416, %v416
  %v437 = vpack.c.bf16 %v417, %v417
  %v438 = vld [vmem:[%s2] sm:$0xf]
  %v439 = vld [vmem:[%s2 + $0x4] sm:$0xf]
  %v440 = vld [vmem:[%s2 + $0x8] sm:$0xf]
  %v441 = vld [vmem:[%s2 + $0xc] sm:$0xf]
  %443 = vset.pattern.permute.xlu0 0
  %444 = vperm.xlu0 %443, %v33
  %v445 = vpop.permute.xlu0 %444
  %448 = vset.pattern.permute.xlu0 0
  %449 = vperm.xlu0 %448, %v34
  %v450 = vpop.permute.xlu0 %449
  %453 = vset.pattern.permute.xlu0 0
  %454 = vperm.xlu0 %453, %v35
  %v455 = vpop.permute.xlu0 %454
  %458 = vset.pattern.permute.xlu0 0
  %459 = vperm.xlu0 %458, %v36
  %v460 = vpop.permute.xlu0 %459
  %v466 = vunpack.c.l.b16 %v438
  %v467 = vunpack.c.l.b16 %v439
  %v468 = vunpack.c.l.b16 %v440
  %v469 = vunpack.c.l.b16 %v441
  %v470 = vpack.c.b16 %v467, %v466
  %v471 = vpack.c.b16 %v469, %v468
  %vm472 = vcmask 588800
  %v474 = vsel %vm472, %v470, 0
  %v477 = vsel %vm472, %v471, 0
  %vm479 = vcmask 1043456
  %v481 = vsel %vm479, %v434, 0
  %v484 = vsel %vm479, %v435, 0
  %v487 = vsel %vm479, %v436, 0
  %v490 = vsel %vm479, %v437, 0
  %492 = vmatprep.subr.bf16.mxu0 0
  %493 = vmatpush1.bf16.msra.mxu0 0
  %494 = vmatprep.subr.bf16.mxu0 0
  %495 = vmatpush1.bf16.msra.mxu0 0
  %496 = vmatprep.subr.bf16.mxu0 0
  %497 = vmatpush1.bf16.msra.mxu0 0
  %498 = vmatprep.subr.bf16.mxu0 %v484
  %499 = vmatpush1.bf16.msra.mxu0 %v481
  %500 = vmatprep.subr.bf16.mxu0 %v431
  %501 = vmatpush1.bf16.msra.mxu0 %v430
  %502 = vmatprep.subr.bf16.mxu0 %v427
  %503 = vmatpush1.bf16.msra.mxu0 %v426
  %504 = vmatprep.subr.bf16.mxu0 %v423
  %505 = vmatpush1.bf16.msra.mxu0 %v422
  %506 = vmatprep.subr.bf16.mxu0 %v419
  %507 = vmatpush1.bf16.msra.mxu0 %v418
  %508 = vmatprep.subr.bf16.mxu0 0
  %509 = vmatpush2.bf16.msra.mxu0 0
  %510 = vmatprep.subr.bf16.mxu0 0
  %511 = vmatpush2.bf16.msra.mxu0 0
  %512 = vmatprep.subr.bf16.mxu0 0
  %513 = vmatpush2.bf16.msra.mxu0 0
  %514 = vmatprep.subr.bf16.mxu0 0
  %515 = vmatpush2.bf16.msra.mxu0 0
  %516 = vmatprep.subr.bf16.mxu0 0
  %517 = vmatpush2.bf16.msra.mxu0 0
  %518 = vmatprep.subr.bf16.mxu0 0
  %519 = vmatpush2.bf16.msra.mxu0 0
  %520 = vmatprep.subr.bf16.mxu0 0
  %521 = vmatpush2.bf16.msra.mxu0 0
  %522 = vmatprep.subr.bf16.mxu0 0
  %523 = vmatpush2.bf16.msra.mxu0 0
  %524 = vmatprep.mubr.bf16.mxu0 0
  %525 = vmatmul.mubr.bf16.gmra.mxu0 %v474
  %v526 = vpop.f32.mrf.mxu0
  %v527 = vadd.f32 %v445, %v526
  %v528 = vpop.f32.mrf.mxu0
  %v529 = vadd.f32 %v445, %v528
  %v530 = vpop.f32.mrf.mxu0
  %v531 = vadd.f32 %v450, %v530
  %v532 = vpop.f32.mrf.mxu0
  %v533 = vadd.f32 %v450, %v532
  %534 = vmatprep.mubr.bf16.mxu0 0
  %535 = vmatmul.mubr.bf16.gmra.mxu0 %v477
  %v536 = vpop.f32.mrf.mxu0
  %v537 = vadd.f32 %v455, %v536
  %v538 = vpop.f32.mrf.mxu0
  %v539 = vadd.f32 %v455, %v538
  %v540 = vpop.f32.mrf.mxu0
  %v541 = vadd.f32 %v460, %v540
  %v542 = vpop.f32.mrf.mxu0
  %v543 = vadd.f32 %v460, %v542
  %544 = vdwg.mxu0
  %545 = vmatprep.subr.bf16.mxu0 0
  %546 = vmatpush1.bf16.msra.mxu0 0
  %547 = vmatprep.subr.bf16.mxu0 0
  %548 = vmatpush1.bf16.msra.mxu0 0
  %549 = vmatprep.subr.bf16.mxu0 0
  %550 = vmatpush1.bf16.msra.mxu0 0
  %551 = vmatprep.subr.bf16.mxu0 %v490
  %552 = vmatpush1.bf16.msra.mxu0 %v487
  %553 = vmatprep.subr.bf16.mxu0 %v433
  %554 = vmatpush1.bf16.msra.mxu0 %v432
  %555 = vmatprep.subr.bf16.mxu0 %v429
  %556 = vmatpush1.bf16.msra.mxu0 %v428
  %557 = vmatprep.subr.bf16.mxu0 %v425
  %558 = vmatpush1.bf16.msra.mxu0 %v424
  %559 = vmatprep.subr.bf16.mxu0 %v421
  %560 = vmatpush1.bf16.msra.mxu0 %v420
  %561 = vmatprep.subr.bf16.mxu0 0
  %562 = vmatpush2.bf16.msra.mxu0 0
  %563 = vmatprep.subr.bf16.mxu0 0
  %564 = vmatpush2.bf16.msra.mxu0 0
  %565 = vmatprep.subr.bf16.mxu0 0
  %566 = vmatpush2.bf16.msra.mxu0 0
  %567 = vmatprep.subr.bf16.mxu0 0
  %568 = vmatpush2.bf16.msra.mxu0 0
  %569 = vmatprep.subr.bf16.mxu0 0
  %570 = vmatpush2.bf16.msra.mxu0 0
  %571 = vmatprep.subr.bf16.mxu0 0
  %572 = vmatpush2.bf16.msra.mxu0 0
  %573 = vmatprep.subr.bf16.mxu0 0
  %574 = vmatpush2.bf16.msra.mxu0 0
  %575 = vmatprep.subr.bf16.mxu0 0
  %576 = vmatpush2.bf16.msra.mxu0 0
  %577 = vmatprep.mubr.bf16.mxu0 0
  %578 = vmatmul.mubr.bf16.gmra.mxu0 %v474
  %v579 = vpop.f32.mrf.mxu0
  %v580 = vadd.f32 %v445, %v579
  %v581 = vpop.f32.mrf.mxu0
  %v582 = vadd.f32 %v445, %v581
  %v583 = vpop.f32.mrf.mxu0
  %v584 = vadd.f32 %v450, %v583
  %v585 = vpop.f32.mrf.mxu0
  %v586 = vadd.f32 %v450, %v585
  %587 = vmatprep.mubr.bf16.mxu0 0
  %588 = vmatmul.mubr.bf16.gmra.mxu0 %v477
  %v589 = vpop.f32.mrf.mxu0
  %v590 = vadd.f32 %v455, %v589
  %v591 = vpop.f32.mrf.mxu0
  %v592 = vadd.f32 %v455, %v591
  %v593 = vpop.f32.mrf.mxu0
  %v594 = vadd.f32 %v460, %v593
  %v595 = vpop.f32.mrf.mxu0
  %v596 = vadd.f32 %v460, %v595
  %597 = vdwg.mxu0
  %v598 = vsub.f32 0.0, %v527
  %v599 = vsub.f32 0.0, %v529
  %v600 = vsub.f32 0.0, %v580
  %v601 = vsub.f32 0.0, %v582
  %v602 = vsub.f32 0.0, %v531
  %v603 = vsub.f32 0.0, %v533
  %v604 = vsub.f32 0.0, %v584
  %v605 = vsub.f32 0.0, %v586
  %v606 = vsub.f32 0.0, %v537
  %v607 = vsub.f32 0.0, %v539
  %v608 = vsub.f32 0.0, %v590
  %v609 = vsub.f32 0.0, %v592
  %v610 = vsub.f32 0.0, %v541
  %v611 = vsub.f32 0.0, %v543
  %v612 = vsub.f32 0.0, %v594
  %v613 = vsub.f32 0.0, %v596
  %v614 = vmul.f32 %v598, 1.442695
  %v615 = vpow.pop %v614
  %v616 = vmul.f32 %v599, 1.442695
  %v617 = vpow.pop %v616
  %v618 = vmul.f32 %v600, 1.442695
  %v619 = vpow.pop %v618
  %v620 = vmul.f32 %v601, 1.442695
  %v621 = vpow.pop %v620
  %v622 = vmul.f32 %v602, 1.442695
  %v623 = vpow.pop %v622
  %v624 = vmul.f32 %v603, 1.442695
  %v625 = vpow.pop %v624
  %v626 = vmul.f32 %v604, 1.442695
  %v627 = vpow.pop %v626
  %v628 = vmul.f32 %v605, 1.442695
  %v629 = vpow.pop %v628
  %v630 = vmul.f32 %v606, 1.442695
  %v631 = vpow.pop %v630
  %v632 = vmul.f32 %v607, 1.442695
  %v633 = vpow.pop %v632
  %v634 = vmul.f32 %v608, 1.442695
  %v635 = vpow.pop %v634
  %v636 = vmul.f32 %v609, 1.442695
  %v637 = vpow.pop %v636
  %v638 = vmul.f32 %v610, 1.442695
  %v639 = vpow.pop %v638
  %v640 = vmul.f32 %v611, 1.442695
  %v641 = vpow.pop %v640
  %v642 = vmul.f32 %v612, 1.442695
  %v643 = vpow.pop %v642
  %v644 = vmul.f32 %v613, 1.442695
  %v645 = vpow.pop %v644
  %v646 = vadd.f32 %v615, 1.0
  %v647 = vadd.f32 %v617, 1.0
  %v648 = vadd.f32 %v619, 1.0
  %v649 = vadd.f32 %v621, 1.0
  %v650 = vadd.f32 %v623, 1.0
  %v651 = vadd.f32 %v625, 1.0
  %v652 = vadd.f32 %v627, 1.0
  %v653 = vadd.f32 %v629, 1.0
  %v654 = vadd.f32 %v631, 1.0
  %v655 = vadd.f32 %v633, 1.0
  %v656 = vadd.f32 %v635, 1.0
  %v657 = vadd.f32 %v637, 1.0
  %v658 = vadd.f32 %v639, 1.0
  %v659 = vadd.f32 %v641, 1.0
  %v660 = vadd.f32 %v643, 1.0
  %v661 = vadd.f32 %v645, 1.0
  %v662 = vrcp.pop %v646
  %v663 = vrcp.pop %v647
  %v664 = vrcp.pop %v648
  %v665 = vrcp.pop %v649
  %v666 = vrcp.pop %v650
  %v667 = vrcp.pop %v651
  %v668 = vrcp.pop %v652
  %v669 = vrcp.pop %v653
  %v670 = vrcp.pop %v654
  %v671 = vrcp.pop %v655
  %v672 = vrcp.pop %v656
  %v673 = vrcp.pop %v657
  %v674 = vrcp.pop %v658
  %v675 = vrcp.pop %v659
  %v676 = vrcp.pop %v660
  %v677 = vrcp.pop %v661
  %v678 = vmul.f32 %v527, %v662
  %v679 = vmul.f32 %v529, %v663
  %v680 = vmul.f32 %v580, %v664
  %v681 = vmul.f32 %v582, %v665
  %v682 = vmul.f32 %v531, %v666
  %v683 = vmul.f32 %v533, %v667
  %v684 = vmul.f32 %v584, %v668
  %v685 = vmul.f32 %v586, %v669
  %v686 = vmul.f32 %v537, %v670
  %v687 = vmul.f32 %v539, %v671
  %v688 = vmul.f32 %v590, %v672
  %v689 = vmul.f32 %v592, %v673
  %v690 = vmul.f32 %v541, %v674
  %v691 = vmul.f32 %v543, %v675
  %v692 = vmul.f32 %v594, %v676
  %v693 = vmul.f32 %v596, %v677
  %694 = vrot.lane.b32.xlu0 %v678, 17
  %v695 = vpop.permute.xlu0 %694
  %696 = vrot.lane.b32.xlu0 %v682, 17
  %v697 = vpop.permute.xlu0 %696
  %698 = vrot.lane.b32.xlu0 %v686, 17
  %v699 = vpop.permute.xlu0 %698
  %700 = vrot.lane.b32.xlu0 %v690, 17
  %v701 = vpop.permute.xlu0 %700
  %702 = vrot.lane.b32.xlu0 %v679, 17
  %v703 = vpop.permute.xlu0 %702
  %704 = vrot.lane.b32.xlu0 %v683, 17
  %v705 = vpop.permute.xlu0 %704
  %706 = vrot.lane.b32.xlu0 %v687, 17
  %v707 = vpop.permute.xlu0 %706
  %708 = vrot.lane.b32.xlu0 %v691, 17
  %v709 = vpop.permute.xlu0 %708
  %710 = vrot.lane.b32.xlu0 %v680, 17
  %v711 = vpop.permute.xlu0 %710
  %712 = vrot.lane.b32.xlu0 %v684, 17
  %v713 = vpop.permute.xlu0 %712
  %714 = vrot.lane.b32.xlu0 %v688, 17
  %v715 = vpop.permute.xlu0 %714
  %716 = vrot.lane.b32.xlu0 %v692, 17
  %v717 = vpop.permute.xlu0 %716
  %718 = vrot.lane.b32.xlu0 %v681, 17
  %v719 = vpop.permute.xlu0 %718
  %720 = vrot.lane.b32.xlu0 %v685, 17
  %v721 = vpop.permute.xlu0 %720
  %722 = vrot.lane.b32.xlu0 %v689, 17
  %v723 = vpop.permute.xlu0 %722
  %724 = vrot.lane.b32.xlu0 %v693, 17
  %v725 = vpop.permute.xlu0 %724
  %v726 = vsel %vm80, %v711, %v719
  %v727 = vsel %vm80, %v713, %v721
  %v728 = vsel %vm80, %v715, %v723
  %v729 = vsel %vm80, %v717, %v725
  %v730 = vsel %vm80, %v703, %v711
  %v731 = vsel %vm80, %v705, %v713
  %v732 = vsel %vm80, %v707, %v715
  %v733 = vsel %vm80, %v709, %v717
  %v734 = vsel %vm80, %v695, %v703
  %v735 = vsel %vm80, %v697, %v705
  %v736 = vsel %vm80, %v699, %v707
  %v737 = vsel %vm80, %v701, %v709
  %v738 = vsel %vm80, %v719, %v695
  %v739 = vsel %vm80, %v721, %v697
  %v740 = vsel %vm80, %v723, %v699
  %v741 = vsel %vm80, %v725, %v701
  %v742 = vmul.f32 %v738, %v90
  %v743 = vmul.f32 %v734, %v94
  %v744 = vmul.f32 %v730, %v98
  %v745 = vmul.f32 %v726, %v102
  %v746 = vmul.f32 %v739, %v90
  %v747 = vmul.f32 %v735, %v94
  %v748 = vmul.f32 %v731, %v98
  %v749 = vmul.f32 %v727, %v102
  %v750 = vmul.f32 %v740, %v90
  %v751 = vmul.f32 %v736, %v94
  %v752 = vmul.f32 %v732, %v98
  %v753 = vmul.f32 %v728, %v102
  %v754 = vmul.f32 %v741, %v90
  %v755 = vmul.f32 %v737, %v94
  %v756 = vmul.f32 %v733, %v98
  %v757 = vmul.f32 %v729, %v102
  %758 = vrot.lane.b32.xlu0 %v678, 16
  %v759 = vpop.permute.xlu0 %758
  %760 = vrot.lane.b32.xlu0 %v682, 16
  %v761 = vpop.permute.xlu0 %760
  %762 = vrot.lane.b32.xlu0 %v686, 16
  %v763 = vpop.permute.xlu0 %762
  %764 = vrot.lane.b32.xlu0 %v690, 16
  %v765 = vpop.permute.xlu0 %764
  %766 = vrot.lane.b32.xlu0 %v679, 16
  %v767 = vpop.permute.xlu0 %766
  %768 = vrot.lane.b32.xlu0 %v683, 16
  %v769 = vpop.permute.xlu0 %768
  %770 = vrot.lane.b32.xlu0 %v687, 16
  %v771 = vpop.permute.xlu0 %770
  %772 = vrot.lane.b32.xlu0 %v691, 16
  %v773 = vpop.permute.xlu0 %772
  %774 = vrot.lane.b32.xlu0 %v680, 16
  %v775 = vpop.permute.xlu0 %774
  %776 = vrot.lane.b32.xlu0 %v684, 16
  %v777 = vpop.permute.xlu0 %776
  %778 = vrot.lane.b32.xlu0 %v688, 16
  %v779 = vpop.permute.xlu0 %778
  %780 = vrot.lane.b32.xlu0 %v692, 16
  %v781 = vpop.permute.xlu0 %780
  %782 = vrot.lane.b32.xlu0 %v681, 16
  %v783 = vpop.permute.xlu0 %782
  %784 = vrot.lane.b32.xlu0 %v685, 16
  %v785 = vpop.permute.xlu0 %784
  %786 = vrot.lane.b32.xlu0 %v689, 16
  %v787 = vpop.permute.xlu0 %786
  %788 = vrot.lane.b32.xlu0 %v693, 16
  %v789 = vpop.permute.xlu0 %788
  %v790 = vsel %vm119, %v775, %v783
  %v791 = vsel %vm119, %v777, %v785
  %v792 = vsel %vm119, %v779, %v787
  %v793 = vsel %vm119, %v781, %v789
  %v794 = vsel %vm119, %v767, %v775
  %v795 = vsel %vm119, %v769, %v777
  %v796 = vsel %vm119, %v771, %v779
  %v797 = vsel %vm119, %v773, %v781
  %v798 = vsel %vm119, %v759, %v767
  %v799 = vsel %vm119, %v761, %v769
  %v800 = vsel %vm119, %v763, %v771
  %v801 = vsel %vm119, %v765, %v773
  %v802 = vsel %vm119, %v783, %v759
  %v803 = vsel %vm119, %v785, %v761
  %v804 = vsel %vm119, %v787, %v763
  %v805 = vsel %vm119, %v789, %v765
  %v806 = vmul.f32 %v802, %v130
  %v807 = vmul.f32 %v798, %v134
  %v808 = vmul.f32 %v794, %v138
  %v809 = vmul.f32 %v790, %v142
  %v810 = vmul.f32 %v803, %v130
  %v811 = vmul.f32 %v799, %v134
  %v812 = vmul.f32 %v795, %v138
  %v813 = vmul.f32 %v791, %v142
  %v814 = vmul.f32 %v804, %v130
  %v815 = vmul.f32 %v800, %v134
  %v816 = vmul.f32 %v796, %v138
  %v817 = vmul.f32 %v792, %v142
  %v818 = vmul.f32 %v805, %v130
  %v819 = vmul.f32 %v801, %v134
  %v820 = vmul.f32 %v797, %v138
  %v821 = vmul.f32 %v793, %v142
  %822 = vrot.lane.b32.xlu0 %v678, 15
  %v823 = vpop.permute.xlu0 %822
  %824 = vrot.lane.b32.xlu0 %v682, 15
  %v825 = vpop.permute.xlu0 %824
  %826 = vrot.lane.b32.xlu0 %v686, 15
  %v827 = vpop.permute.xlu0 %826
  %828 = vrot.lane.b32.xlu0 %v690, 15
  %v829 = vpop.permute.xlu0 %828
  %830 = vrot.lane.b32.xlu0 %v679, 15
  %v831 = vpop.permute.xlu0 %830
  %832 = vrot.lane.b32.xlu0 %v683, 15
  %v833 = vpop.permute.xlu0 %832
  %834 = vrot.lane.b32.xlu0 %v687, 15
  %v835 = vpop.permute.xlu0 %834
  %836 = vrot.lane.b32.xlu0 %v691, 15
  %v837 = vpop.permute.xlu0 %836
  %838 = vrot.lane.b32.xlu0 %v680, 15
  %v839 = vpop.permute.xlu0 %838
  %840 = vrot.lane.b32.xlu0 %v684, 15
  %v841 = vpop.permute.xlu0 %840
  %842 = vrot.lane.b32.xlu0 %v688, 15
  %v843 = vpop.permute.xlu0 %842
  %844 = vrot.lane.b32.xlu0 %v692, 15
  %v845 = vpop.permute.xlu0 %844
  %846 = vrot.lane.b32.xlu0 %v681, 15
  %v847 = vpop.permute.xlu0 %846
  %848 = vrot.lane.b32.xlu0 %v685, 15
  %v849 = vpop.permute.xlu0 %848
  %850 = vrot.lane.b32.xlu0 %v689, 15
  %v851 = vpop.permute.xlu0 %850
  %852 = vrot.lane.b32.xlu0 %v693, 15
  %v853 = vpop.permute.xlu0 %852
  %v854 = vsel %vm159, %v839, %v847
  %v855 = vsel %vm159, %v841, %v849
  %v856 = vsel %vm159, %v843, %v851
  %v857 = vsel %vm159, %v845, %v853
  %v858 = vsel %vm159, %v831, %v839
  %v859 = vsel %vm159, %v833, %v841
  %v860 = vsel %vm159, %v835, %v843
  %v861 = vsel %vm159, %v837, %v845
  %v862 = vsel %vm159, %v823, %v831
  %v863 = vsel %vm159, %v825, %v833
  %v864 = vsel %vm159, %v827, %v835
  %v865 = vsel %vm159, %v829, %v837
  %v866 = vsel %vm159, %v847, %v823
  %v867 = vsel %vm159, %v849, %v825
  %v868 = vsel %vm159, %v851, %v827
  %v869 = vsel %vm159, %v853, %v829
  %v870 = vmul.f32 %v866, %v170
  %v871 = vmul.f32 %v862, %v174
  %v872 = vmul.f32 %v858, %v178
  %v873 = vmul.f32 %v854, %v182
  %v874 = vmul.f32 %v867, %v170
  %v875 = vmul.f32 %v863, %v174
  %v876 = vmul.f32 %v859, %v178
  %v877 = vmul.f32 %v855, %v182
  %v878 = vmul.f32 %v868, %v170
  %v879 = vmul.f32 %v864, %v174
  %v880 = vmul.f32 %v860, %v178
  %v881 = vmul.f32 %v856, %v182
  %v882 = vmul.f32 %v869, %v170
  %v883 = vmul.f32 %v865, %v174
  %v884 = vmul.f32 %v861, %v178
  %v885 = vmul.f32 %v857, %v182
  %886 = vrot.lane.b32.xlu0 %v678, 1
  %v887 = vpop.permute.xlu0 %886
  %888 = vrot.lane.b32.xlu0 %v682, 1
  %v889 = vpop.permute.xlu0 %888
  %890 = vrot.lane.b32.xlu0 %v686, 1
  %v891 = vpop.permute.xlu0 %890
  %892 = vrot.lane.b32.xlu0 %v690, 1
  %v893 = vpop.permute.xlu0 %892
  %894 = vrot.lane.b32.xlu0 %v679, 1
  %v895 = vpop.permute.xlu0 %894
  %896 = vrot.lane.b32.xlu0 %v683, 1
  %v897 = vpop.permute.xlu0 %896
  %898 = vrot.lane.b32.xlu0 %v687, 1
  %v899 = vpop.permute.xlu0 %898
  %900 = vrot.lane.b32.xlu0 %v691, 1
  %v901 = vpop.permute.xlu0 %900
  %902 = vrot.lane.b32.xlu0 %v680, 1
  %v903 = vpop.permute.xlu0 %902
  %904 = vrot.lane.b32.xlu0 %v684, 1
  %v905 = vpop.permute.xlu0 %904
  %906 = vrot.lane.b32.xlu0 %v688, 1
  %v907 = vpop.permute.xlu0 %906
  %908 = vrot.lane.b32.xlu0 %v692, 1
  %v909 = vpop.permute.xlu0 %908
  %910 = vrot.lane.b32.xlu0 %v681, 1
  %v911 = vpop.permute.xlu0 %910
  %912 = vrot.lane.b32.xlu0 %v685, 1
  %v913 = vpop.permute.xlu0 %912
  %914 = vrot.lane.b32.xlu0 %v689, 1
  %v915 = vpop.permute.xlu0 %914
  %916 = vrot.lane.b32.xlu0 %v693, 1
  %v917 = vpop.permute.xlu0 %916
  %v918 = vsel %vm199, %v903, %v911
  %v919 = vsel %vm199, %v905, %v913
  %v920 = vsel %vm199, %v907, %v915
  %v921 = vsel %vm199, %v909, %v917
  %v922 = vsel %vm199, %v895, %v903
  %v923 = vsel %vm199, %v897, %v905
  %v924 = vsel %vm199, %v899, %v907
  %v925 = vsel %vm199, %v901, %v909
  %v926 = vsel %vm199, %v887, %v895
  %v927 = vsel %vm199, %v889, %v897
  %v928 = vsel %vm199, %v891, %v899
  %v929 = vsel %vm199, %v893, %v901
  %v930 = vsel %vm199, %v911, %v887
  %v931 = vsel %vm199, %v913, %v889
  %v932 = vsel %vm199, %v915, %v891
  %v933 = vsel %vm199, %v917, %v893
  %v934 = vmul.f32 %v930, %v210
  %v935 = vmul.f32 %v926, %v214
  %v936 = vmul.f32 %v922, %v218
  %v937 = vmul.f32 %v918, %v222
  %v938 = vmul.f32 %v931, %v210
  %v939 = vmul.f32 %v927, %v214
  %v940 = vmul.f32 %v923, %v218
  %v941 = vmul.f32 %v919, %v222
  %v942 = vmul.f32 %v932, %v210
  %v943 = vmul.f32 %v928, %v214
  %v944 = vmul.f32 %v924, %v218
  %v945 = vmul.f32 %v920, %v222
  %v946 = vmul.f32 %v933, %v210
  %v947 = vmul.f32 %v929, %v214
  %v948 = vmul.f32 %v925, %v218
  %v949 = vmul.f32 %v921, %v222
  %v950 = vmul.f32 %v678, %v237
  %v951 = vmul.f32 %v679, %v241
  %v952 = vmul.f32 %v680, %v245
  %v953 = vmul.f32 %v681, %v249
  %v954 = vmul.f32 %v682, %v237
  %v955 = vmul.f32 %v683, %v241
  %v956 = vmul.f32 %v684, %v245
  %v957 = vmul.f32 %v685, %v249
  %v958 = vmul.f32 %v686, %v237
  %v959 = vmul.f32 %v687, %v241
  %v960 = vmul.f32 %v688, %v245
  %v961 = vmul.f32 %v689, %v249
  %v962 = vmul.f32 %v690, %v237
  %v963 = vmul.f32 %v691, %v241
  %v964 = vmul.f32 %v692, %v245
  %v965 = vmul.f32 %v693, %v249
  %966 = vrot.lane.b32.xlu0 %v678, 127
  %v967 = vpop.permute.xlu0 %966
  %968 = vrot.lane.b32.xlu0 %v682, 127
  %v969 = vpop.permute.xlu0 %968
  %970 = vrot.lane.b32.xlu0 %v686, 127
  %v971 = vpop.permute.xlu0 %970
  %972 = vrot.lane.b32.xlu0 %v690, 127
  %v973 = vpop.permute.xlu0 %972
  %974 = vrot.lane.b32.xlu0 %v679, 127
  %v975 = vpop.permute.xlu0 %974
  %976 = vrot.lane.b32.xlu0 %v683, 127
  %v977 = vpop.permute.xlu0 %976
  %978 = vrot.lane.b32.xlu0 %v687, 127
  %v979 = vpop.permute.xlu0 %978
  %980 = vrot.lane.b32.xlu0 %v691, 127
  %v981 = vpop.permute.xlu0 %980
  %982 = vrot.lane.b32.xlu0 %v680, 127
  %v983 = vpop.permute.xlu0 %982
  %984 = vrot.lane.b32.xlu0 %v684, 127
  %v985 = vpop.permute.xlu0 %984
  %986 = vrot.lane.b32.xlu0 %v688, 127
  %v987 = vpop.permute.xlu0 %986
  %988 = vrot.lane.b32.xlu0 %v692, 127
  %v989 = vpop.permute.xlu0 %988
  %990 = vrot.lane.b32.xlu0 %v681, 127
  %v991 = vpop.permute.xlu0 %990
  %992 = vrot.lane.b32.xlu0 %v685, 127
  %v993 = vpop.permute.xlu0 %992
  %994 = vrot.lane.b32.xlu0 %v689, 127
  %v995 = vpop.permute.xlu0 %994
  %996 = vrot.lane.b32.xlu0 %v693, 127
  %v997 = vpop.permute.xlu0 %996
  %v998 = vsel %vm266, %v983, %v991
  %v999 = vsel %vm266, %v985, %v993
  %v1000 = vsel %vm266, %v987, %v995
  %v1001 = vsel %vm266, %v989, %v997
  %v1002 = vsel %vm266, %v975, %v983
  %v1003 = vsel %vm266, %v977, %v985
  %v1004 = vsel %vm266, %v979, %v987
  %v1005 = vsel %vm266, %v981, %v989
  %v1006 = vsel %vm266, %v967, %v975
  %v1007 = vsel %vm266, %v969, %v977
  %v1008 = vsel %vm266, %v971, %v979
  %v1009 = vsel %vm266, %v973, %v981
  %v1010 = vsel %vm266, %v991, %v967
  %v1011 = vsel %vm266, %v993, %v969
  %v1012 = vsel %vm266, %v995, %v971
  %v1013 = vsel %vm266, %v997, %v973
  %v1014 = vmul.f32 %v1006, %v277
  %v1015 = vmul.f32 %v1002, %v281
  %v1016 = vmul.f32 %v998, %v285
  %v1017 = vmul.f32 %v1010, %v289
  %v1018 = vmul.f32 %v1007, %v277
  %v1019 = vmul.f32 %v1003, %v281
  %v1020 = vmul.f32 %v999, %v285
  %v1021 = vmul.f32 %v1011, %v289
  %v1022 = vmul.f32 %v1008, %v277
  %v1023 = vmul.f32 %v1004, %v281
  %v1024 = vmul.f32 %v1000, %v285
  %v1025 = vmul.f32 %v1012, %v289
  %v1026 = vmul.f32 %v1009, %v277
  %v1027 = vmul.f32 %v1005, %v281
  %v1028 = vmul.f32 %v1001, %v285
  %v1029 = vmul.f32 %v1013, %v289
  %1030 = vrot.lane.b32.xlu0 %v678, 113
  %v1031 = vpop.permute.xlu0 %1030
  %1032 = vrot.lane.b32.xlu0 %v682, 113
  %v1033 = vpop.permute.xlu0 %1032
  %1034 = vrot.lane.b32.xlu0 %v686, 113
  %v1035 = vpop.permute.xlu0 %1034
  %1036 = vrot.lane.b32.xlu0 %v690, 113
  %v1037 = vpop.permute.xlu0 %1036
  %1038 = vrot.lane.b32.xlu0 %v679, 113
  %v1039 = vpop.permute.xlu0 %1038
  %1040 = vrot.lane.b32.xlu0 %v683, 113
  %v1041 = vpop.permute.xlu0 %1040
  %1042 = vrot.lane.b32.xlu0 %v687, 113
  %v1043 = vpop.permute.xlu0 %1042
  %1044 = vrot.lane.b32.xlu0 %v691, 113
  %v1045 = vpop.permute.xlu0 %1044
  %1046 = vrot.lane.b32.xlu0 %v680, 113
  %v1047 = vpop.permute.xlu0 %1046
  %1048 = vrot.lane.b32.xlu0 %v684, 113
  %v1049 = vpop.permute.xlu0 %1048
  %1050 = vrot.lane.b32.xlu0 %v688, 113
  %v1051 = vpop.permute.xlu0 %1050
  %1052 = vrot.lane.b32.xlu0 %v692, 113
  %v1053 = vpop.permute.xlu0 %1052
  %1054 = vrot.lane.b32.xlu0 %v681, 113
  %v1055 = vpop.permute.xlu0 %1054
  %1056 = vrot.lane.b32.xlu0 %v685, 113
  %v1057 = vpop.permute.xlu0 %1056
  %1058 = vrot.lane.b32.xlu0 %v689, 113
  %v1059 = vpop.permute.xlu0 %1058
  %1060 = vrot.lane.b32.xlu0 %v693, 113
  %v1061 = vpop.permute.xlu0 %1060
  %v1062 = vsel %vm306, %v1047, %v1055
  %v1063 = vsel %vm306, %v1049, %v1057
  %v1064 = vsel %vm306, %v1051, %v1059
  %v1065 = vsel %vm306, %v1053, %v1061
  %v1066 = vsel %vm306, %v1039, %v1047
  %v1067 = vsel %vm306, %v1041, %v1049
  %v1068 = vsel %vm306, %v1043, %v1051
  %v1069 = vsel %vm306, %v1045, %v1053
  %v1070 = vsel %vm306, %v1031, %v1039
  %v1071 = vsel %vm306, %v1033, %v1041
  %v1072 = vsel %vm306, %v1035, %v1043
  %v1073 = vsel %vm306, %v1037, %v1045
  %v1074 = vsel %vm306, %v1055, %v1031
  %v1075 = vsel %vm306, %v1057, %v1033
  %v1076 = vsel %vm306, %v1059, %v1035
  %v1077 = vsel %vm306, %v1061, %v1037
  %v1078 = vmul.f32 %v1070, %v317
  %v1079 = vmul.f32 %v1066, %v321
  %v1080 = vmul.f32 %v1062, %v325
  %v1081 = vmul.f32 %v1074, %v329
  %v1082 = vmul.f32 %v1071, %v317
  %v1083 = vmul.f32 %v1067, %v321
  %v1084 = vmul.f32 %v1063, %v325
  %v1085 = vmul.f32 %v1075, %v329
  %v1086 = vmul.f32 %v1072, %v317
  %v1087 = vmul.f32 %v1068, %v321
  %v1088 = vmul.f32 %v1064, %v325
  %v1089 = vmul.f32 %v1076, %v329
  %v1090 = vmul.f32 %v1073, %v317
  %v1091 = vmul.f32 %v1069, %v321
  %v1092 = vmul.f32 %v1065, %v325
  %v1093 = vmul.f32 %v1077, %v329
  %1094 = vrot.lane.b32.xlu0 %v678, 112
  %v1095 = vpop.permute.xlu0 %1094
  %1096 = vrot.lane.b32.xlu0 %v682, 112
  %v1097 = vpop.permute.xlu0 %1096
  %1098 = vrot.lane.b32.xlu0 %v686, 112
  %v1099 = vpop.permute.xlu0 %1098
  %1100 = vrot.lane.b32.xlu0 %v690, 112
  %v1101 = vpop.permute.xlu0 %1100
  %1102 = vrot.lane.b32.xlu0 %v679, 112
  %v1103 = vpop.permute.xlu0 %1102
  %1104 = vrot.lane.b32.xlu0 %v683, 112
  %v1105 = vpop.permute.xlu0 %1104
  %1106 = vrot.lane.b32.xlu0 %v687, 112
  %v1107 = vpop.permute.xlu0 %1106
  %1108 = vrot.lane.b32.xlu0 %v691, 112
  %v1109 = vpop.permute.xlu0 %1108
  %1110 = vrot.lane.b32.xlu0 %v680, 112
  %v1111 = vpop.permute.xlu0 %1110
  %1112 = vrot.lane.b32.xlu0 %v684, 112
  %v1113 = vpop.permute.xlu0 %1112
  %1114 = vrot.lane.b32.xlu0 %v688, 112
  %v1115 = vpop.permute.xlu0 %1114
  %1116 = vrot.lane.b32.xlu0 %v692, 112
  %v1117 = vpop.permute.xlu0 %1116
  %1118 = vrot.lane.b32.xlu0 %v681, 112
  %v1119 = vpop.permute.xlu0 %1118
  %1120 = vrot.lane.b32.xlu0 %v685, 112
  %v1121 = vpop.permute.xlu0 %1120
  %1122 = vrot.lane.b32.xlu0 %v689, 112
  %v1123 = vpop.permute.xlu0 %1122
  %1124 = vrot.lane.b32.xlu0 %v693, 112
  %v1125 = vpop.permute.xlu0 %1124
  %v1126 = vsel %vm346, %v1111, %v1119
  %v1127 = vsel %vm346, %v1113, %v1121
  %v1128 = vsel %vm346, %v1115, %v1123
  %v1129 = vsel %vm346, %v1117, %v1125
  %v1130 = vsel %vm346, %v1103, %v1111
  %v1131 = vsel %vm346, %v1105, %v1113
  %v1132 = vsel %vm346, %v1107, %v1115
  %v1133 = vsel %vm346, %v1109, %v1117
  %v1134 = vsel %vm346, %v1095, %v1103
  %v1135 = vsel %vm346, %v1097, %v1105
  %v1136 = vsel %vm346, %v1099, %v1107
  %v1137 = vsel %vm346, %v1101, %v1109
  %v1138 = vsel %vm346, %v1119, %v1095
  %v1139 = vsel %vm346, %v1121, %v1097
  %v1140 = vsel %vm346, %v1123, %v1099
  %v1141 = vsel %vm346, %v1125, %v1101
  %v1142 = vmul.f32 %v1134, %v357
  %v1143 = vmul.f32 %v1130, %v361
  %v1144 = vmul.f32 %v1126, %v365
  %v1145 = vmul.f32 %v1138, %v369
  %v1146 = vmul.f32 %v1135, %v357
  %v1147 = vmul.f32 %v1131, %v361
  %v1148 = vmul.f32 %v1127, %v365
  %v1149 = vmul.f32 %v1139, %v369
  %v1150 = vmul.f32 %v1136, %v357
  %v1151 = vmul.f32 %v1132, %v361
  %v1152 = vmul.f32 %v1128, %v365
  %v1153 = vmul.f32 %v1140, %v369
  %v1154 = vmul.f32 %v1137, %v357
  %v1155 = vmul.f32 %v1133, %v361
  %v1156 = vmul.f32 %v1129, %v365
  %v1157 = vmul.f32 %v1141, %v369
  %1158 = vrot.lane.b32.xlu0 %v678, 111
  %v1159 = vpop.permute.xlu0 %1158
  %1160 = vrot.lane.b32.xlu0 %v682, 111
  %v1161 = vpop.permute.xlu0 %1160
  %1162 = vrot.lane.b32.xlu0 %v686, 111
  %v1163 = vpop.permute.xlu0 %1162
  %1164 = vrot.lane.b32.xlu0 %v690, 111
  %v1165 = vpop.permute.xlu0 %1164
  %1166 = vrot.lane.b32.xlu0 %v679, 111
  %v1167 = vpop.permute.xlu0 %1166
  %1168 = vrot.lane.b32.xlu0 %v683, 111
  %v1169 = vpop.permute.xlu0 %1168
  %1170 = vrot.lane.b32.xlu0 %v687, 111
  %v1171 = vpop.permute.xlu0 %1170
  %1172 = vrot.lane.b32.xlu0 %v691, 111
  %v1173 = vpop.permute.xlu0 %1172
  %1174 = vrot.lane.b32.xlu0 %v680, 111
  %v1175 = vpop.permute.xlu0 %1174
  %1176 = vrot.lane.b32.xlu0 %v684, 111
  %v1177 = vpop.permute.xlu0 %1176
  %1178 = vrot.lane.b32.xlu0 %v688, 111
  %v1179 = vpop.permute.xlu0 %1178
  %1180 = vrot.lane.b32.xlu0 %v692, 111
  %v1181 = vpop.permute.xlu0 %1180
  %1182 = vrot.lane.b32.xlu0 %v681, 111
  %v1183 = vpop.permute.xlu0 %1182
  %1184 = vrot.lane.b32.xlu0 %v685, 111
  %v1185 = vpop.permute.xlu0 %1184
  %1186 = vrot.lane.b32.xlu0 %v689, 111
  %v1187 = vpop.permute.xlu0 %1186
  %1188 = vrot.lane.b32.xlu0 %v693, 111
  %v1189 = vpop.permute.xlu0 %1188
  %v1190 = vsel %vm386, %v1175, %v1183
  %v1191 = vsel %vm386, %v1177, %v1185
  %v1192 = vsel %vm386, %v1179, %v1187
  %v1193 = vsel %vm386, %v1181, %v1189
  %v1194 = vsel %vm386, %v1167, %v1175
  %v1195 = vsel %vm386, %v1169, %v1177
  %v1196 = vsel %vm386, %v1171, %v1179
  %v1197 = vsel %vm386, %v1173, %v1181
  %v1198 = vsel %vm386, %v1159, %v1167
  %v1199 = vsel %vm386, %v1161, %v1169
  %v1200 = vsel %vm386, %v1163, %v1171
  %v1201 = vsel %vm386, %v1165, %v1173
  %v1202 = vsel %vm386, %v1183, %v1159
  %v1203 = vsel %vm386, %v1185, %v1161
  %v1204 = vsel %vm386, %v1187, %v1163
  %v1205 = vsel %vm386, %v1189, %v1165
  %v1206 = vmul.f32 %v1198, %v397
  %v1207 = vmul.f32 %v1194, %v401
  %v1208 = vmul.f32 %v1190, %v405
  %v1209 = vmul.f32 %v1202, %v409
  %v1210 = vmul.f32 %v1199, %v397
  %v1211 = vmul.f32 %v1195, %v401
  %v1212 = vmul.f32 %v1191, %v405
  %v1213 = vmul.f32 %v1203, %v409
  %v1214 = vmul.f32 %v1200, %v397
  %v1215 = vmul.f32 %v1196, %v401
  %v1216 = vmul.f32 %v1192, %v405
  %v1217 = vmul.f32 %v1204, %v409
  %v1218 = vmul.f32 %v1201, %v397
  %v1219 = vmul.f32 %v1197, %v401
  %v1220 = vmul.f32 %v1193, %v405
  %v1221 = vmul.f32 %v1205, %v409
  %v1222 = vpack.c.bf16 %v746, %v742
  %v1223 = vpack.c.bf16 %v747, %v743
  %v1224 = vpack.c.bf16 %v748, %v744
  %v1225 = vpack.c.bf16 %v749, %v745
  %v1226 = vpack.c.bf16 %v754, %v750
  %v1227 = vpack.c.bf16 %v755, %v751
  %v1228 = vpack.c.bf16 %v756, %v752
  %v1229 = vpack.c.bf16 %v757, %v753
  %v1230 = vpack.c.bf16 %v810, %v806
  %v1231 = vpack.c.bf16 %v811, %v807
  %v1232 = vpack.c.bf16 %v812, %v808
  %v1233 = vpack.c.bf16 %v813, %v809
  %v1234 = vpack.c.bf16 %v818, %v814
  %v1235 = vpack.c.bf16 %v819, %v815
  %v1236 = vpack.c.bf16 %v820, %v816
  %v1237 = vpack.c.bf16 %v821, %v817
  %v1238 = vpack.c.bf16 %v874, %v870
  %v1239 = vpack.c.bf16 %v875, %v871
  %v1240 = vpack.c.bf16 %v876, %v872
  %v1241 = vpack.c.bf16 %v877, %v873
  %v1242 = vpack.c.bf16 %v882, %v878
  %v1243 = vpack.c.bf16 %v883, %v879
  %v1244 = vpack.c.bf16 %v884, %v880
  %v1245 = vpack.c.bf16 %v885, %v881
  %v1246 = vpack.c.bf16 %v938, %v934
  %v1247 = vpack.c.bf16 %v939, %v935
  %v1248 = vpack.c.bf16 %v940, %v936
  %v1249 = vpack.c.bf16 %v941, %v937
  %v1250 = vpack.c.bf16 %v946, %v942
  %v1251 = vpack.c.bf16 %v947, %v943
  %v1252 = vpack.c.bf16 %v948, %v944
  %v1253 = vpack.c.bf16 %v949, %v945
  %v1254 = vpack.c.bf16 %v954, %v950
  %v1255 = vpack.c.bf16 %v955, %v951
  %v1256 = vpack.c.bf16 %v956, %v952
  %v1257 = vpack.c.bf16 %v957, %v953
  %v1258 = vpack.c.bf16 %v962, %v958
  %v1259 = vpack.c.bf16 %v963, %v959
  %v1260 = vpack.c.bf16 %v964, %v960
  %v1261 = vpack.c.bf16 %v965, %v961
  %v1262 = vpack.c.bf16 %v1018, %v1014
  %v1263 = vpack.c.bf16 %v1019, %v1015
  %v1264 = vpack.c.bf16 %v1020, %v1016
  %v1265 = vpack.c.bf16 %v1021, %v1017
  %v1266 = vpack.c.bf16 %v1026, %v1022
  %v1267 = vpack.c.bf16 %v1027, %v1023
  %v1268 = vpack.c.bf16 %v1028, %v1024
  %v1269 = vpack.c.bf16 %v1029, %v1025
  %v1270 = vpack.c.bf16 %v1082, %v1078
  %v1271 = vpack.c.bf16 %v1083, %v1079
  %v1272 = vpack.c.bf16 %v1084, %v1080
  %v1273 = vpack.c.bf16 %v1085, %v1081
  %v1274 = vpack.c.bf16 %v1090, %v1086
  %v1275 = vpack.c.bf16 %v1091, %v1087
  %v1276 = vpack.c.bf16 %v1092, %v1088
  %v1277 = vpack.c.bf16 %v1093, %v1089
  %v1278 = vpack.c.bf16 %v1146, %v1142
  %v1279 = vpack.c.bf16 %v1147, %v1143
  %v1280 = vpack.c.bf16 %v1148, %v1144
  %v1281 = vpack.c.bf16 %v1149, %v1145
  %v1282 = vpack.c.bf16 %v1154, %v1150
  %v1283 = vpack.c.bf16 %v1155, %v1151
  %v1284 = vpack.c.bf16 %v1156, %v1152
  %v1285 = vpack.c.bf16 %v1157, %v1153
  %v1286 = vpack.c.bf16 %v1210, %v1206
  %v1287 = vpack.c.bf16 %v1211, %v1207
  %v1288 = vpack.c.bf16 %v1212, %v1208
  %v1289 = vpack.c.bf16 %v1213, %v1209
  %v1290 = vpack.c.bf16 %v1218, %v1214
  %v1291 = vpack.c.bf16 %v1219, %v1215
  %v1292 = vpack.c.bf16 %v1220, %v1216
  %v1293 = vpack.c.bf16 %v1221, %v1217
  %v1294 = vld [vmem:[%s3] sm:$0xff]
  %v1295 = vld [vmem:[%s3 + $0x8] sm:$0xf]
  %v1296 = vld [vmem:[%s3 + $0xc] sm:$0xff]
  %v1297 = vld [vmem:[%s3 + $0x14] sm:$0xf]
  %v1298 = vld [vmem:[%s3 + $0x18] sm:$0xff]
  %v1299 = vld [vmem:[%s3 + $0x20] sm:$0xf]
  %v1300 = vld [vmem:[%s3 + $0x24] sm:$0xff]
  %v1301 = vld [vmem:[%s3 + $0x2c] sm:$0xf]
  %v1302 = vld [vmem:[%s3 + $0x30] sm:$0xff]
  %v1303 = vld [vmem:[%s3 + $0x38] sm:$0xf]
  %v1304 = vld [vmem:[%s3 + $0x3c] sm:$0xff]
  %v1305 = vld [vmem:[%s3 + $0x44] sm:$0xf]
  %v1306 = vld [vmem:[%s3 + $0x48] sm:$0xff]
  %v1307 = vld [vmem:[%s3 + $0x50] sm:$0xf]
  %v1308 = vld [vmem:[%s3 + $0x54] sm:$0xff]
  %v1309 = vld [vmem:[%s3 + $0x5c] sm:$0xf]
  %1311 = vset.pattern.permute.xlu0 0
  %1312 = vperm.xlu0 %1311, %v37
  %v1313 = vpop.permute.xlu0 %1312
  %1316 = vset.pattern.permute.xlu0 0
  %1317 = vperm.xlu0 %1316, %v38
  %v1318 = vpop.permute.xlu0 %1317
  %1321 = vset.pattern.permute.xlu0 0
  %1322 = vperm.xlu0 %1321, %v39
  %v1323 = vpop.permute.xlu0 %1322
  %1326 = vset.pattern.permute.xlu0 0
  %1327 = vperm.xlu0 %1326, %v40
  %v1328 = vpop.permute.xlu0 %1327
  %1331 = vset.pattern.permute.xlu0 0
  %1332 = vperm.xlu0 %1331, %v41
  %v1333 = vpop.permute.xlu0 %1332
  %1336 = vset.pattern.permute.xlu0 0
  %1337 = vperm.xlu0 %1336, %v42
  %v1338 = vpop.permute.xlu0 %1337
  %1341 = vset.pattern.permute.xlu0 0
  %1342 = vperm.xlu0 %1341, %v43
  %v1343 = vpop.permute.xlu0 %1342
  %1346 = vset.pattern.permute.xlu0 0
  %1347 = vperm.xlu0 %1346, %v44
  %v1348 = vpop.permute.xlu0 %1347
  %v1366 = vunpack.c.l.b16 %v1294
  %v1367 = vunpack.c.h.b16 %v1294
  %v1368 = vunpack.c.l.b16 %v1295
  %v1369 = vunpack.c.l.b16 %v1296
  %v1370 = vunpack.c.h.b16 %v1296
  %v1371 = vunpack.c.l.b16 %v1297
  %v1372 = vunpack.c.l.b16 %v1298
  %v1373 = vunpack.c.h.b16 %v1298
  %v1374 = vunpack.c.l.b16 %v1299
  %v1375 = vunpack.c.l.b16 %v1300
  %v1376 = vunpack.c.h.b16 %v1300
  %v1377 = vunpack.c.l.b16 %v1301
  %v1378 = vunpack.c.l.b16 %v1302
  %v1379 = vunpack.c.h.b16 %v1302
  %v1380 = vunpack.c.l.b16 %v1303
  %v1381 = vunpack.c.l.b16 %v1304
  %v1382 = vunpack.c.h.b16 %v1304
  %v1383 = vunpack.c.l.b16 %v1305
  %v1384 = vunpack.c.l.b16 %v1306
  %v1385 = vunpack.c.h.b16 %v1306
  %v1386 = vunpack.c.l.b16 %v1307
  %v1387 = vunpack.c.l.b16 %v1308
  %v1388 = vunpack.c.h.b16 %v1308
  %v1389 = vunpack.c.l.b16 %v1309
  %v1390 = vpack.c.b16 %v1369, %v1366
  %v1391 = vpack.c.b16 %v1370, %v1367
  %v1392 = vpack.c.b16 %v1371, %v1368
  %v1393 = vpack.c.b16 %v1375, %v1372
  %v1394 = vpack.c.b16 %v1376, %v1373
  %v1395 = vpack.c.b16 %v1377, %v1374
  %v1396 = vpack.c.b16 %v1381, %v1378
  %v1397 = vpack.c.b16 %v1382, %v1379
  %v1398 = vpack.c.b16 %v1383, %v1380
  %v1399 = vpack.c.b16 %v1387, %v1384
  %v1400 = vpack.c.b16 %v1388, %v1385
  %v1401 = vpack.c.b16 %v1389, %v1386
  %vm1410 = vcmask 261120
  %v1412 = vsel %vm1410, %v1392, 0
  %v1415 = vsel %vm1410, %v1395, 0
  %v1418 = vsel %vm1410, %v1398, 0
  %v1421 = vsel %vm1410, %v1401, 0
  %1423 = vmatprep.subr.bf16.mxu0 %v1251
  %1424 = vmatpush1.bf16.msra.mxu0 %v1250
  %1425 = vmatprep.subr.bf16.mxu0 %v1247
  %1426 = vmatpush1.bf16.msra.mxu0 %v1246
  %1427 = vmatprep.subr.bf16.mxu0 %v1243
  %1428 = vmatpush1.bf16.msra.mxu0 %v1242
  %1429 = vmatprep.subr.bf16.mxu0 %v1239
  %1430 = vmatpush1.bf16.msra.mxu0 %v1238
  %1431 = vmatprep.subr.bf16.mxu0 %v1235
  %1432 = vmatpush1.bf16.msra.mxu0 %v1234
  %1433 = vmatprep.subr.bf16.mxu0 %v1231
  %1434 = vmatpush1.bf16.msra.mxu0 %v1230
  %1435 = vmatprep.subr.bf16.mxu0 %v1227
  %1436 = vmatpush1.bf16.msra.mxu0 %v1226
  %1437 = vmatprep.subr.bf16.mxu0 %v1223
  %1438 = vmatpush1.bf16.msra.mxu0 %v1222
  %1439 = vmatprep.subr.bf16.mxu0 %v1283
  %1440 = vmatpush2.bf16.msra.mxu0 %v1282
  %1441 = vmatprep.subr.bf16.mxu0 %v1279
  %1442 = vmatpush2.bf16.msra.mxu0 %v1278
  %1443 = vmatprep.subr.bf16.mxu0 %v1275
  %1444 = vmatpush2.bf16.msra.mxu0 %v1274
  %1445 = vmatprep.subr.bf16.mxu0 %v1271
  %1446 = vmatpush2.bf16.msra.mxu0 %v1270
  %1447 = vmatprep.subr.bf16.mxu0 %v1267
  %1448 = vmatpush2.bf16.msra.mxu0 %v1266
  %1449 = vmatprep.subr.bf16.mxu0 %v1263
  %1450 = vmatpush2.bf16.msra.mxu0 %v1262
  %1451 = vmatprep.subr.bf16.mxu0 %v1259
  %1452 = vmatpush2.bf16.msra.mxu0 %v1258
  %1453 = vmatprep.subr.bf16.mxu0 %v1255
  %1454 = vmatpush2.bf16.msra.mxu0 %v1254
  %1455 = vmatprep.mubr.bf16.mxu0 %v1391
  %1456 = vmatmul.mubr.bf16.gmra.mxu0 %v1390
  %v1457 = vpop.f32.mrf.mxu0
  %v1458 = vadd.f32 %v1313, %v1457
  %v1459 = vpop.f32.mrf.mxu0
  %v1460 = vadd.f32 %v1313, %v1459
  %v1461 = vpop.f32.mrf.mxu0
  %v1462 = vadd.f32 %v1318, %v1461
  %v1463 = vpop.f32.mrf.mxu0
  %v1464 = vadd.f32 %v1318, %v1463
  %1465 = vmatprep.mubr.bf16.mxu0 %v1394
  %1466 = vmatmul.mubr.bf16.gmra.mxu0 %v1393
  %v1467 = vpop.f32.mrf.mxu0
  %v1468 = vadd.f32 %v1323, %v1467
  %v1469 = vpop.f32.mrf.mxu0
  %v1470 = vadd.f32 %v1323, %v1469
  %v1471 = vpop.f32.mrf.mxu0
  %v1472 = vadd.f32 %v1328, %v1471
  %v1473 = vpop.f32.mrf.mxu0
  %v1474 = vadd.f32 %v1328, %v1473
  %1475 = vmatprep.mubr.bf16.mxu0 %v1397
  %1476 = vmatmul.mubr.bf16.gmra.mxu0 %v1396
  %v1477 = vpop.f32.mrf.mxu0
  %v1478 = vadd.f32 %v1333, %v1477
  %v1479 = vpop.f32.mrf.mxu0
  %v1480 = vadd.f32 %v1333, %v1479
  %v1481 = vpop.f32.mrf.mxu0
  %v1482 = vadd.f32 %v1338, %v1481
  %v1483 = vpop.f32.mrf.mxu0
  %v1484 = vadd.f32 %v1338, %v1483
  %1485 = vmatprep.mubr.bf16.mxu0 %v1400
  %1486 = vmatmul.mubr.bf16.gmra.mxu0 %v1399
  %v1487 = vpop.f32.mrf.mxu0
  %v1488 = vadd.f32 %v1343, %v1487
  %v1489 = vpop.f32.mrf.mxu0
  %v1490 = vadd.f32 %v1343, %v1489
  %v1491 = vpop.f32.mrf.mxu0
  %v1492 = vadd.f32 %v1348, %v1491
  %v1493 = vpop.f32.mrf.mxu0
  %v1494 = vadd.f32 %v1348, %v1493
  %1495 = vdwg.mxu0
  %1496 = vmatprep.subr.bf16.mxu0 0
  %1497 = vmatpush1.bf16.msra.mxu0 0
  %1498 = vmatprep.subr.bf16.mxu0 0
  %1499 = vmatpush1.bf16.msra.mxu0 0
  %1500 = vmatprep.subr.bf16.mxu0 0
  %1501 = vmatpush1.bf16.msra.mxu0 0
  %1502 = vmatprep.subr.bf16.mxu0 0
  %1503 = vmatpush1.bf16.msra.mxu0 0
  %1504 = vmatprep.subr.bf16.mxu0 0
  %1505 = vmatpush1.bf16.msra.mxu0 0
  %1506 = vmatprep.subr.bf16.mxu0 0
  %1507 = vmatpush1.bf16.msra.mxu0 0
  %1508 = vmatprep.subr.bf16.mxu0 %v1291
  %1509 = vmatpush1.bf16.msra.mxu0 %v1290
  %1510 = vmatprep.subr.bf16.mxu0 %v1287
  %1511 = vmatpush1.bf16.msra.mxu0 %v1286
  %1512 = vmatprep.subr.bf16.mxu0 0
  %1513 = vmatpush2.bf16.msra.mxu0 0
  %1514 = vmatprep.subr.bf16.mxu0 0
  %1515 = vmatpush2.bf16.msra.mxu0 0
  %1516 = vmatprep.subr.bf16.mxu0 0
  %1517 = vmatpush2.bf16.msra.mxu0 0
  %1518 = vmatprep.subr.bf16.mxu0 0
  %1519 = vmatpush2.bf16.msra.mxu0 0
  %1520 = vmatprep.subr.bf16.mxu0 0
  %1521 = vmatpush2.bf16.msra.mxu0 0
  %1522 = vmatprep.subr.bf16.mxu0 0
  %1523 = vmatpush2.bf16.msra.mxu0 0
  %1524 = vmatprep.subr.bf16.mxu0 0
  %1525 = vmatpush2.bf16.msra.mxu0 0
  %1526 = vmatprep.subr.bf16.mxu0 0
  %1527 = vmatpush2.bf16.msra.mxu0 0
  %1528 = vmatprep.mubr.bf16.mxu0 0
  %1529 = vmatmul.mubr.bf16.gmra.mxu0 %v1412
  %v1530 = vpop.f32.mrf.mxu0
  %v1531 = vadd.f32 %v1458, %v1530
  %v1532 = vpop.f32.mrf.mxu0
  %v1533 = vadd.f32 %v1460, %v1532
  %v1534 = vpop.f32.mrf.mxu0
  %v1535 = vadd.f32 %v1462, %v1534
  %v1536 = vpop.f32.mrf.mxu0
  %v1537 = vadd.f32 %v1464, %v1536
  %1538 = vmatprep.mubr.bf16.mxu0 0
  %1539 = vmatmul.mubr.bf16.gmra.mxu0 %v1415
  %v1540 = vpop.f32.mrf.mxu0
  %v1541 = vadd.f32 %v1468, %v1540
  %v1542 = vpop.f32.mrf.mxu0
  %v1543 = vadd.f32 %v1470, %v1542
  %v1544 = vpop.f32.mrf.mxu0
  %v1545 = vadd.f32 %v1472, %v1544
  %v1546 = vpop.f32.mrf.mxu0
  %v1547 = vadd.f32 %v1474, %v1546
  %1548 = vmatprep.mubr.bf16.mxu0 0
  %1549 = vmatmul.mubr.bf16.gmra.mxu0 %v1418
  %v1550 = vpop.f32.mrf.mxu0
  %v1551 = vadd.f32 %v1478, %v1550
  %v1552 = vpop.f32.mrf.mxu0
  %v1553 = vadd.f32 %v1480, %v1552
  %v1554 = vpop.f32.mrf.mxu0
  %v1555 = vadd.f32 %v1482, %v1554
  %v1556 = vpop.f32.mrf.mxu0
  %v1557 = vadd.f32 %v1484, %v1556
  %1558 = vmatprep.mubr.bf16.mxu0 0
  %1559 = vmatmul.mubr.bf16.gmra.mxu0 %v1421
  %v1560 = vpop.f32.mrf.mxu0
  %v1561 = vadd.f32 %v1488, %v1560
  %v1562 = vpop.f32.mrf.mxu0
  %v1563 = vadd.f32 %v1490, %v1562
  %v1564 = vpop.f32.mrf.mxu0
  %v1565 = vadd.f32 %v1492, %v1564
  %v1566 = vpop.f32.mrf.mxu0
  %v1567 = vadd.f32 %v1494, %v1566
  %1568 = vdwg.mxu0
  %1569 = vmatprep.subr.bf16.mxu0 %v1253
  %1570 = vmatpush1.bf16.msra.mxu0 %v1252
  %1571 = vmatprep.subr.bf16.mxu0 %v1249
  %1572 = vmatpush1.bf16.msra.mxu0 %v1248
  %1573 = vmatprep.subr.bf16.mxu0 %v1245
  %1574 = vmatpush1.bf16.msra.mxu0 %v1244
  %1575 = vmatprep.subr.bf16.mxu0 %v1241
  %1576 = vmatpush1.bf16.msra.mxu0 %v1240
  %1577 = vmatprep.subr.bf16.mxu0 %v1237
  %1578 = vmatpush1.bf16.msra.mxu0 %v1236
  %1579 = vmatprep.subr.bf16.mxu0 %v1233
  %1580 = vmatpush1.bf16.msra.mxu0 %v1232
  %1581 = vmatprep.subr.bf16.mxu0 %v1229
  %1582 = vmatpush1.bf16.msra.mxu0 %v1228
  %1583 = vmatprep.subr.bf16.mxu0 %v1225
  %1584 = vmatpush1.bf16.msra.mxu0 %v1224
  %1585 = vmatprep.subr.bf16.mxu0 %v1285
  %1586 = vmatpush2.bf16.msra.mxu0 %v1284
  %1587 = vmatprep.subr.bf16.mxu0 %v1281
  %1588 = vmatpush2.bf16.msra.mxu0 %v1280
  %1589 = vmatprep.subr.bf16.mxu0 %v1277
  %1590 = vmatpush2.bf16.msra.mxu0 %v1276
  %1591 = vmatprep.subr.bf16.mxu0 %v1273
  %1592 = vmatpush2.bf16.msra.mxu0 %v1272
  %1593 = vmatprep.subr.bf16.mxu0 %v1269
  %1594 = vmatpush2.bf16.msra.mxu0 %v1268
  %1595 = vmatprep.subr.bf16.mxu0 %v1265
  %1596 = vmatpush2.bf16.msra.mxu0 %v1264
  %1597 = vmatprep.subr.bf16.mxu0 %v1261
  %1598 = vmatpush2.bf16.msra.mxu0 %v1260
  %1599 = vmatprep.subr.bf16.mxu0 %v1257
  %1600 = vmatpush2.bf16.msra.mxu0 %v1256
  %1601 = vmatprep.mubr.bf16.mxu0 %v1391
  %1602 = vmatmul.mubr.bf16.gmra.mxu0 %v1390
  %v1603 = vpop.f32.mrf.mxu0
  %v1604 = vadd.f32 %v1313, %v1603
  %v1605 = vpop.f32.mrf.mxu0
  %v1606 = vadd.f32 %v1313, %v1605
  %v1607 = vpop.f32.mrf.mxu0
  %v1608 = vadd.f32 %v1318, %v1607
  %v1609 = vpop.f32.mrf.mxu0
  %v1610 = vadd.f32 %v1318, %v1609
  %1611 = vmatprep.mubr.bf16.mxu0 %v1394
  %1612 = vmatmul.mubr.bf16.gmra.mxu0 %v1393
  %v1613 = vpop.f32.mrf.mxu0
  %v1614 = vadd.f32 %v1323, %v1613
  %v1615 = vpop.f32.mrf.mxu0
  %v1616 = vadd.f32 %v1323, %v1615
  %v1617 = vpop.f32.mrf.mxu0
  %v1618 = vadd.f32 %v1328, %v1617
  %v1619 = vpop.f32.mrf.mxu0
  %v1620 = vadd.f32 %v1328, %v1619
  %1621 = vmatprep.mubr.bf16.mxu0 %v1397
  %1622 = vmatmul.mubr.bf16.gmra.mxu0 %v1396
  %v1623 = vpop.f32.mrf.mxu0
  %v1624 = vadd.f32 %v1333, %v1623
  %v1625 = vpop.f32.mrf.mxu0
  %v1626 = vadd.f32 %v1333, %v1625
  %v1627 = vpop.f32.mrf.mxu0
  %v1628 = vadd.f32 %v1338, %v1627
  %v1629 = vpop.f32.mrf.mxu0
  %v1630 = vadd.f32 %v1338, %v1629
  %1631 = vmatprep.mubr.bf16.mxu0 %v1400
  %1632 = vmatmul.mubr.bf16.gmra.mxu0 %v1399
  %v1633 = vpop.f32.mrf.mxu0
  %v1634 = vadd.f32 %v1343, %v1633
  %v1635 = vpop.f32.mrf.mxu0
  %v1636 = vadd.f32 %v1343, %v1635
  %v1637 = vpop.f32.mrf.mxu0
  %v1638 = vadd.f32 %v1348, %v1637
  %v1639 = vpop.f32.mrf.mxu0
  %v1640 = vadd.f32 %v1348, %v1639
  %1641 = vdwg.mxu0
  %1642 = vmatprep.subr.bf16.mxu0 0
  %1643 = vmatpush1.bf16.msra.mxu0 0
  %1644 = vmatprep.subr.bf16.mxu0 0
  %1645 = vmatpush1.bf16.msra.mxu0 0
  %1646 = vmatprep.subr.bf16.mxu0 0
  %1647 = vmatpush1.bf16.msra.mxu0 0
  %1648 = vmatprep.subr.bf16.mxu0 0
  %1649 = vmatpush1.bf16.msra.mxu0 0
  %1650 = vmatprep.subr.bf16.mxu0 0
  %1651 = vmatpush1.bf16.msra.mxu0 0
  %1652 = vmatprep.subr.bf16.mxu0 0
  %1653 = vmatpush1.bf16.msra.mxu0 0
  %1654 = vmatprep.subr.bf16.mxu0 %v1293
  %1655 = vmatpush1.bf16.msra.mxu0 %v1292
  %1656 = vmatprep.subr.bf16.mxu0 %v1289
  %1657 = vmatpush1.bf16.msra.mxu0 %v1288
  %1658 = vmatprep.subr.bf16.mxu0 0
  %1659 = vmatpush2.bf16.msra.mxu0 0
  %1660 = vmatprep.subr.bf16.mxu0 0
  %1661 = vmatpush2.bf16.msra.mxu0 0
  %1662 = vmatprep.subr.bf16.mxu0 0
  %1663 = vmatpush2.bf16.msra.mxu0 0
  %1664 = vmatprep.subr.bf16.mxu0 0
  %1665 = vmatpush2.bf16.msra.mxu0 0
  %1666 = vmatprep.subr.bf16.mxu0 0
  %1667 = vmatpush2.bf16.msra.mxu0 0
  %1668 = vmatprep.subr.bf16.mxu0 0
  %1669 = vmatpush2.bf16.msra.mxu0 0
  %1670 = vmatprep.subr.bf16.mxu0 0
  %1671 = vmatpush2.bf16.msra.mxu0 0
  %1672 = vmatprep.subr.bf16.mxu0 0
  %1673 = vmatpush2.bf16.msra.mxu0 0
  %1674 = vmatprep.mubr.bf16.mxu0 0
  %1675 = vmatmul.mubr.bf16.gmra.mxu0 %v1412
  %v1676 = vpop.f32.mrf.mxu0
  %v1677 = vadd.f32 %v1604, %v1676
  %v1678 = vpop.f32.mrf.mxu0
  %v1679 = vadd.f32 %v1606, %v1678
  %v1680 = vpop.f32.mrf.mxu0
  %v1681 = vadd.f32 %v1608, %v1680
  %v1682 = vpop.f32.mrf.mxu0
  %v1683 = vadd.f32 %v1610, %v1682
  %1684 = vmatprep.mubr.bf16.mxu0 0
  %1685 = vmatmul.mubr.bf16.gmra.mxu0 %v1415
  %v1686 = vpop.f32.mrf.mxu0
  %v1687 = vadd.f32 %v1614, %v1686
  %v1688 = vpop.f32.mrf.mxu0
  %v1689 = vadd.f32 %v1616, %v1688
  %v1690 = vpop.f32.mrf.mxu0
  %v1691 = vadd.f32 %v1618, %v1690
  %v1692 = vpop.f32.mrf.mxu0
  %v1693 = vadd.f32 %v1620, %v1692
  %1694 = vmatprep.mubr.bf16.mxu0 0
  %1695 = vmatmul.mubr.bf16.gmra.mxu0 %v1418
  %v1696 = vpop.f32.mrf.mxu0
  %v1697 = vadd.f32 %v1624, %v1696
  %v1698 = vpop.f32.mrf.mxu0
  %v1699 = vadd.f32 %v1626, %v1698
  %v1700 = vpop.f32.mrf.mxu0
  %v1701 = vadd.f32 %v1628, %v1700
  %v1702 = vpop.f32.mrf.mxu0
  %v1703 = vadd.f32 %v1630, %v1702
  %1704 = vmatprep.mubr.bf16.mxu0 0
  %1705 = vmatmul.mubr.bf16.gmra.mxu0 %v1421
  %v1706 = vpop.f32.mrf.mxu0
  %v1707 = vadd.f32 %v1634, %v1706
  %v1708 = vpop.f32.mrf.mxu0
  %v1709 = vadd.f32 %v1636, %v1708
  %v1710 = vpop.f32.mrf.mxu0
  %v1711 = vadd.f32 %v1638, %v1710
  %v1712 = vpop.f32.mrf.mxu0
  %v1713 = vadd.f32 %v1640, %v1712
  %1714 = vdwg.mxu0
  %v1715 = vsub.f32 0.0, %v1531
  %v1716 = vsub.f32 0.0, %v1533
  %v1717 = vsub.f32 0.0, %v1677
  %v1718 = vsub.f32 0.0, %v1679
  %v1719 = vsub.f32 0.0, %v1535
  %v1720 = vsub.f32 0.0, %v1537
  %v1721 = vsub.f32 0.0, %v1681
  %v1722 = vsub.f32 0.0, %v1683
  %v1723 = vsub.f32 0.0, %v1541
  %v1724 = vsub.f32 0.0, %v1543
  %v1725 = vsub.f32 0.0, %v1687
  %v1726 = vsub.f32 0.0, %v1689
  %v1727 = vsub.f32 0.0, %v1545
  %v1728 = vsub.f32 0.0, %v1547
  %v1729 = vsub.f32 0.0, %v1691
  %v1730 = vsub.f32 0.0, %v1693
  %v1731 = vsub.f32 0.0, %v1551
  %v1732 = vsub.f32 0.0, %v1553
  %v1733 = vsub.f32 0.0, %v1697
  %v1734 = vsub.f32 0.0, %v1699
  %v1735 = vsub.f32 0.0, %v1555
  %v1736 = vsub.f32 0.0, %v1557
  %v1737 = vsub.f32 0.0, %v1701
  %v1738 = vsub.f32 0.0, %v1703
  %v1739 = vsub.f32 0.0, %v1561
  %v1740 = vsub.f32 0.0, %v1563
  %v1741 = vsub.f32 0.0, %v1707
  %v1742 = vsub.f32 0.0, %v1709
  %v1743 = vsub.f32 0.0, %v1565
  %v1744 = vsub.f32 0.0, %v1567
  %v1745 = vsub.f32 0.0, %v1711
  %v1746 = vsub.f32 0.0, %v1713
  %v1747 = vmul.f32 %v1715, 1.442695
  %v1748 = vpow.pop %v1747
  %v1749 = vmul.f32 %v1716, 1.442695
  %v1750 = vpow.pop %v1749
  %v1751 = vmul.f32 %v1717, 1.442695
  %v1752 = vpow.pop %v1751
  %v1753 = vmul.f32 %v1718, 1.442695
  %v1754 = vpow.pop %v1753
  %v1755 = vmul.f32 %v1719, 1.442695
  %v1756 = vpow.pop %v1755
  %v1757 = vmul.f32 %v1720, 1.442695
  %v1758 = vpow.pop %v1757
  %v1759 = vmul.f32 %v1721, 1.442695
  %v1760 = vpow.pop %v1759
  %v1761 = vmul.f32 %v1722, 1.442695
  %v1762 = vpow.pop %v1761
  %v1763 = vmul.f32 %v1723, 1.442695
  %v1764 = vpow.pop %v1763
  %v1765 = vmul.f32 %v1724, 1.442695
  %v1766 = vpow.pop %v1765
  %v1767 = vmul.f32 %v1725, 1.442695
  %v1768 = vpow.pop %v1767
  %v1769 = vmul.f32 %v1726, 1.442695
  %v1770 = vpow.pop %v1769
  %v1771 = vmul.f32 %v1727, 1.442695
  %v1772 = vpow.pop %v1771
  %v1773 = vmul.f32 %v1728, 1.442695
  %v1774 = vpow.pop %v1773
  %v1775 = vmul.f32 %v1729, 1.442695
  %v1776 = vpow.pop %v1775
  %v1777 = vmul.f32 %v1730, 1.442695
  %v1778 = vpow.pop %v1777
  %v1779 = vmul.f32 %v1731, 1.442695
  %v1780 = vpow.pop %v1779
  %v1781 = vmul.f32 %v1732, 1.442695
  %v1782 = vpow.pop %v1781
  %v1783 = vmul.f32 %v1733, 1.442695
  %v1784 = vpow.pop %v1783
  %v1785 = vmul.f32 %v1734, 1.442695
  %v1786 = vpow.pop %v1785
  %v1787 = vmul.f32 %v1735, 1.442695
  %v1788 = vpow.pop %v1787
  %v1789 = vmul.f32 %v1736, 1.442695
  %v1790 = vpow.pop %v1789
  %v1791 = vmul.f32 %v1737, 1.442695
  %v1792 = vpow.pop %v1791
  %v1793 = vmul.f32 %v1738, 1.442695
  %v1794 = vpow.pop %v1793
  %v1795 = vmul.f32 %v1739, 1.442695
  %v1796 = vpow.pop %v1795
  %v1797 = vmul.f32 %v1740, 1.442695
  %v1798 = vpow.pop %v1797
  %v1799 = vmul.f32 %v1741, 1.442695
  %v1800 = vpow.pop %v1799
  %v1801 = vmul.f32 %v1742, 1.442695
  %v1802 = vpow.pop %v1801
  %v1803 = vmul.f32 %v1743, 1.442695
  %v1804 = vpow.pop %v1803
  %v1805 = vmul.f32 %v1744, 1.442695
  %v1806 = vpow.pop %v1805
  %v1807 = vmul.f32 %v1745, 1.442695
  %v1808 = vpow.pop %v1807
  %v1809 = vmul.f32 %v1746, 1.442695
  %v1810 = vpow.pop %v1809
  %v1811 = vadd.f32 %v1748, 1.0
  %v1812 = vadd.f32 %v1750, 1.0
  %v1813 = vadd.f32 %v1752, 1.0
  %v1814 = vadd.f32 %v1754, 1.0
  %v1815 = vadd.f32 %v1756, 1.0
  %v1816 = vadd.f32 %v1758, 1.0
  %v1817 = vadd.f32 %v1760, 1.0
  %v1818 = vadd.f32 %v1762, 1.0
  %v1819 = vadd.f32 %v1764, 1.0
  %v1820 = vadd.f32 %v1766, 1.0
  %v1821 = vadd.f32 %v1768, 1.0
  %v1822 = vadd.f32 %v1770, 1.0
  %v1823 = vadd.f32 %v1772, 1.0
  %v1824 = vadd.f32 %v1774, 1.0
  %v1825 = vadd.f32 %v1776, 1.0
  %v1826 = vadd.f32 %v1778, 1.0
  %v1827 = vadd.f32 %v1780, 1.0
  %v1828 = vadd.f32 %v1782, 1.0
  %v1829 = vadd.f32 %v1784, 1.0
  %v1830 = vadd.f32 %v1786, 1.0
  %v1831 = vadd.f32 %v1788, 1.0
  %v1832 = vadd.f32 %v1790, 1.0
  %v1833 = vadd.f32 %v1792, 1.0
  %v1834 = vadd.f32 %v1794, 1.0
  %v1835 = vadd.f32 %v1796, 1.0
  %v1836 = vadd.f32 %v1798, 1.0
  %v1837 = vadd.f32 %v1800, 1.0
  %v1838 = vadd.f32 %v1802, 1.0
  %v1839 = vadd.f32 %v1804, 1.0
  %v1840 = vadd.f32 %v1806, 1.0
  %v1841 = vadd.f32 %v1808, 1.0
  %v1842 = vadd.f32 %v1810, 1.0
  %v1843 = vrcp.pop %v1811
  %v1844 = vrcp.pop %v1812
  %v1845 = vrcp.pop %v1813
  %v1846 = vrcp.pop %v1814
  %v1847 = vrcp.pop %v1815
  %v1848 = vrcp.pop %v1816
  %v1849 = vrcp.pop %v1817
  %v1850 = vrcp.pop %v1818
  %v1851 = vrcp.pop %v1819
  %v1852 = vrcp.pop %v1820
  %v1853 = vrcp.pop %v1821
  %v1854 = vrcp.pop %v1822
  %v1855 = vrcp.pop %v1823
  %v1856 = vrcp.pop %v1824
  %v1857 = vrcp.pop %v1825
  %v1858 = vrcp.pop %v1826
  %v1859 = vrcp.pop %v1827
  %v1860 = vrcp.pop %v1828
  %v1861 = vrcp.pop %v1829
  %v1862 = vrcp.pop %v1830
  %v1863 = vrcp.pop %v1831
  %v1864 = vrcp.pop %v1832
  %v1865 = vrcp.pop %v1833
  %v1866 = vrcp.pop %v1834
  %v1867 = vrcp.pop %v1835
  %v1868 = vrcp.pop %v1836
  %v1869 = vrcp.pop %v1837
  %v1870 = vrcp.pop %v1838
  %v1871 = vrcp.pop %v1839
  %v1872 = vrcp.pop %v1840
  %v1873 = vrcp.pop %v1841
  %v1874 = vrcp.pop %v1842
  %v1875 = vmul.f32 %v1531, %v1843
  %v1876 = vmul.f32 %v1533, %v1844
  %v1877 = vmul.f32 %v1677, %v1845
  %v1878 = vmul.f32 %v1679, %v1846
  %v1879 = vmul.f32 %v1535, %v1847
  %v1880 = vmul.f32 %v1537, %v1848
  %v1881 = vmul.f32 %v1681, %v1849
  %v1882 = vmul.f32 %v1683, %v1850
  %v1883 = vmul.f32 %v1541, %v1851
  %v1884 = vmul.f32 %v1543, %v1852
  %v1885 = vmul.f32 %v1687, %v1853
  %v1886 = vmul.f32 %v1689, %v1854
  %v1887 = vmul.f32 %v1545, %v1855
  %v1888 = vmul.f32 %v1547, %v1856
  %v1889 = vmul.f32 %v1691, %v1857
  %v1890 = vmul.f32 %v1693, %v1858
  %v1891 = vmul.f32 %v1551, %v1859
  %v1892 = vmul.f32 %v1553, %v1860
  %v1893 = vmul.f32 %v1697, %v1861
  %v1894 = vmul.f32 %v1699, %v1862
  %v1895 = vmul.f32 %v1555, %v1863
  %v1896 = vmul.f32 %v1557, %v1864
  %v1897 = vmul.f32 %v1701, %v1865
  %v1898 = vmul.f32 %v1703, %v1866
  %v1899 = vmul.f32 %v1561, %v1867
  %v1900 = vmul.f32 %v1563, %v1868
  %v1901 = vmul.f32 %v1707, %v1869
  %v1902 = vmul.f32 %v1709, %v1870
  %v1903 = vmul.f32 %v1565, %v1871
  %v1904 = vmul.f32 %v1567, %v1872
  %v1905 = vmul.f32 %v1711, %v1873
  %v1906 = vmul.f32 %v1713, %v1874
  %1907 = vrot.lane.b32.xlu0 %v1875, 17
  %v1908 = vpop.permute.xlu0 %1907
  %1909 = vrot.lane.b32.xlu0 %v1879, 17
  %v1910 = vpop.permute.xlu0 %1909
  %1911 = vrot.lane.b32.xlu0 %v1883, 17
  %v1912 = vpop.permute.xlu0 %1911
  %1913 = vrot.lane.b32.xlu0 %v1887, 17
  %v1914 = vpop.permute.xlu0 %1913
  %1915 = vrot.lane.b32.xlu0 %v1891, 17
  %v1916 = vpop.permute.xlu0 %1915
  %1917 = vrot.lane.b32.xlu0 %v1895, 17
  %v1918 = vpop.permute.xlu0 %1917
  %1919 = vrot.lane.b32.xlu0 %v1899, 17
  %v1920 = vpop.permute.xlu0 %1919
  %1921 = vrot.lane.b32.xlu0 %v1903, 17
  %v1922 = vpop.permute.xlu0 %1921
  %1923 = vrot.lane.b32.xlu0 %v1876, 17
  %v1924 = vpop.permute.xlu0 %1923
  %1925 = vrot.lane.b32.xlu0 %v1880, 17
  %v1926 = vpop.permute.xlu0 %1925
  %1927 = vrot.lane.b32.xlu0 %v1884, 17
  %v1928 = vpop.permute.xlu0 %1927
  %1929 = vrot.lane.b32.xlu0 %v1888, 17
  %v1930 = vpop.permute.xlu0 %1929
  %1931 = vrot.lane.b32.xlu0 %v1892, 17
  %v1932 = vpop.permute.xlu0 %1931
  %1933 = vrot.lane.b32.xlu0 %v1896, 17
  %v1934 = vpop.permute.xlu0 %1933
  %1935 = vrot.lane.b32.xlu0 %v1900, 17
  %v1936 = vpop.permute.xlu0 %1935
  %1937 = vrot.lane.b32.xlu0 %v1904, 17
  %v1938 = vpop.permute.xlu0 %1937
  %1939 = vrot.lane.b32.xlu0 %v1877, 17
  %v1940 = vpop.permute.xlu0 %1939
  %1941 = vrot.lane.b32.xlu0 %v1881, 17
  %v1942 = vpop.permute.xlu0 %1941
  %1943 = vrot.lane.b32.xlu0 %v1885, 17
  %v1944 = vpop.permute.xlu0 %1943
  %1945 = vrot.lane.b32.xlu0 %v1889, 17
  %v1946 = vpop.permute.xlu0 %1945
  %1947 = vrot.lane.b32.xlu0 %v1893, 17
  %v1948 = vpop.permute.xlu0 %1947
  %1949 = vrot.lane.b32.xlu0 %v1897, 17
  %v1950 = vpop.permute.xlu0 %1949
  %1951 = vrot.lane.b32.xlu0 %v1901, 17
  %v1952 = vpop.permute.xlu0 %1951
  %1953 = vrot.lane.b32.xlu0 %v1905, 17
  %v1954 = vpop.permute.xlu0 %1953
  %1955 = vrot.lane.b32.xlu0 %v1878, 17
  %v1956 = vpop.permute.xlu0 %1955
  %1957 = vrot.lane.b32.xlu0 %v1882, 17
  %v1958 = vpop.permute.xlu0 %1957
  %1959 = vrot.lane.b32.xlu0 %v1886, 17
  %v1960 = vpop.permute.xlu0 %1959
  %1961 = vrot.lane.b32.xlu0 %v1890, 17
  %v1962 = vpop.permute.xlu0 %1961
  %1963 = vrot.lane.b32.xlu0 %v1894, 17
  %v1964 = vpop.permute.xlu0 %1963
  %1965 = vrot.lane.b32.xlu0 %v1898, 17
  %v1966 = vpop.permute.xlu0 %1965
  %1967 = vrot.lane.b32.xlu0 %v1902, 17
  %v1968 = vpop.permute.xlu0 %1967
  %1969 = vrot.lane.b32.xlu0 %v1906, 17
  %v1970 = vpop.permute.xlu0 %1969
  %v1971 = vsel %vm80, %v1940, %v1956
  %v1972 = vsel %vm80, %v1942, %v1958
  %v1973 = vsel %vm80, %v1944, %v1960
  %v1974 = vsel %vm80, %v1946, %v1962
  %v1975 = vsel %vm80, %v1948, %v1964
  %v1976 = vsel %vm80, %v1950, %v1966
  %v1977 = vsel %vm80, %v1952, %v1968
  %v1978 = vsel %vm80, %v1954, %v1970
  %v1979 = vsel %vm80, %v1924, %v1940
  %v1980 = vsel %vm80, %v1926, %v1942
  %v1981 = vsel %vm80, %v1928, %v1944
  %v1982 = vsel %vm80, %v1930, %v1946
  %v1983 = vsel %vm80, %v1932, %v1948
  %v1984 = vsel %vm80, %v1934, %v1950
  %v1985 = vsel %vm80, %v1936, %v1952
  %v1986 = vsel %vm80, %v1938, %v1954
  %v1987 = vsel %vm80, %v1908, %v1924
  %v1988 = vsel %vm80, %v1910, %v1926
  %v1989 = vsel %vm80, %v1912, %v1928
  %v1990 = vsel %vm80, %v1914, %v1930
  %v1991 = vsel %vm80, %v1916, %v1932
  %v1992 = vsel %vm80, %v1918, %v1934
  %v1993 = vsel %vm80, %v1920, %v1936
  %v1994 = vsel %vm80, %v1922, %v1938
  %v1995 = vsel %vm80, %v1956, %v1908
  %v1996 = vsel %vm80, %v1958, %v1910
  %v1997 = vsel %vm80, %v1960, %v1912
  %v1998 = vsel %vm80, %v1962, %v1914
  %v1999 = vsel %vm80, %v1964, %v1916
  %v2000 = vsel %vm80, %v1966, %v1918
  %v2001 = vsel %vm80, %v1968, %v1920
  %v2002 = vsel %vm80, %v1970, %v1922
  %v2003 = vmul.f32 %v1995, %v90
  %v2004 = vmul.f32 %v1987, %v94
  %v2005 = vmul.f32 %v1979, %v98
  %v2006 = vmul.f32 %v1971, %v102
  %v2007 = vmul.f32 %v1996, %v90
  %v2008 = vmul.f32 %v1988, %v94
  %v2009 = vmul.f32 %v1980, %v98
  %v2010 = vmul.f32 %v1972, %v102
  %v2011 = vmul.f32 %v1997, %v90
  %v2012 = vmul.f32 %v1989, %v94
  %v2013 = vmul.f32 %v1981, %v98
  %v2014 = vmul.f32 %v1973, %v102
  %v2015 = vmul.f32 %v1998, %v90
  %v2016 = vmul.f32 %v1990, %v94
  %v2017 = vmul.f32 %v1982, %v98
  %v2018 = vmul.f32 %v1974, %v102
  %v2019 = vmul.f32 %v1999, %v90
  %v2020 = vmul.f32 %v1991, %v94
  %v2021 = vmul.f32 %v1983, %v98
  %v2022 = vmul.f32 %v1975, %v102
  %v2023 = vmul.f32 %v2000, %v90
  %v2024 = vmul.f32 %v1992, %v94
  %v2025 = vmul.f32 %v1984, %v98
  %v2026 = vmul.f32 %v1976, %v102
  %v2027 = vmul.f32 %v2001, %v90
  %v2028 = vmul.f32 %v1993, %v94
  %v2029 = vmul.f32 %v1985, %v98
  %v2030 = vmul.f32 %v1977, %v102
  %v2031 = vmul.f32 %v2002, %v90
  %v2032 = vmul.f32 %v1994, %v94
  %v2033 = vmul.f32 %v1986, %v98
  %v2034 = vmul.f32 %v1978, %v102
  %2035 = vrot.lane.b32.xlu0 %v1875, 16
  %v2036 = vpop.permute.xlu0 %2035
  %2037 = vrot.lane.b32.xlu0 %v1879, 16
  %v2038 = vpop.permute.xlu0 %2037
  %2039 = vrot.lane.b32.xlu0 %v1883, 16
  %v2040 = vpop.permute.xlu0 %2039
  %2041 = vrot.lane.b32.xlu0 %v1887, 16
  %v2042 = vpop.permute.xlu0 %2041
  %2043 = vrot.lane.b32.xlu0 %v1891, 16
  %v2044 = vpop.permute.xlu0 %2043
  %2045 = vrot.lane.b32.xlu0 %v1895, 16
  %v2046 = vpop.permute.xlu0 %2045
  %2047 = vrot.lane.b32.xlu0 %v1899, 16
  %v2048 = vpop.permute.xlu0 %2047
  %2049 = vrot.lane.b32.xlu0 %v1903, 16
  %v2050 = vpop.permute.xlu0 %2049
  %2051 = vrot.lane.b32.xlu0 %v1876, 16
  %v2052 = vpop.permute.xlu0 %2051
  %2053 = vrot.lane.b32.xlu0 %v1880, 16
  %v2054 = vpop.permute.xlu0 %2053
  %2055 = vrot.lane.b32.xlu0 %v1884, 16
  %v2056 = vpop.permute.xlu0 %2055
  %2057 = vrot.lane.b32.xlu0 %v1888, 16
  %v2058 = vpop.permute.xlu0 %2057
  %2059 = vrot.lane.b32.xlu0 %v1892, 16
  %v2060 = vpop.permute.xlu0 %2059
  %2061 = vrot.lane.b32.xlu0 %v1896, 16
  %v2062 = vpop.permute.xlu0 %2061
  %2063 = vrot.lane.b32.xlu0 %v1900, 16
  %v2064 = vpop.permute.xlu0 %2063
  %2065 = vrot.lane.b32.xlu0 %v1904, 16
  %v2066 = vpop.permute.xlu0 %2065
  %2067 = vrot.lane.b32.xlu0 %v1877, 16
  %v2068 = vpop.permute.xlu0 %2067
  %2069 = vrot.lane.b32.xlu0 %v1881, 16
  %v2070 = vpop.permute.xlu0 %2069
  %2071 = vrot.lane.b32.xlu0 %v1885, 16
  %v2072 = vpop.permute.xlu0 %2071
  %2073 = vrot.lane.b32.xlu0 %v1889, 16
  %v2074 = vpop.permute.xlu0 %2073
  %2075 = vrot.lane.b32.xlu0 %v1893, 16
  %v2076 = vpop.permute.xlu0 %2075
  %2077 = vrot.lane.b32.xlu0 %v1897, 16
  %v2078 = vpop.permute.xlu0 %2077
  %2079 = vrot.lane.b32.xlu0 %v1901, 16
  %v2080 = vpop.permute.xlu0 %2079
  %2081 = vrot.lane.b32.xlu0 %v1905, 16
  %v2082 = vpop.permute.xlu0 %2081
  %2083 = vrot.lane.b32.xlu0 %v1878, 16
  %v2084 = vpop.permute.xlu0 %2083
  %2085 = vrot.lane.b32.xlu0 %v1882, 16
  %v2086 = vpop.permute.xlu0 %2085
  %2087 = vrot.lane.b32.xlu0 %v1886, 16
  %v2088 = vpop.permute.xlu0 %2087
  %2089 = vrot.lane.b32.xlu0 %v1890, 16
  %v2090 = vpop.permute.xlu0 %2089
  %2091 = vrot.lane.b32.xlu0 %v1894, 16
  %v2092 = vpop.permute.xlu0 %2091
  %2093 = vrot.lane.b32.xlu0 %v1898, 16
  %v2094 = vpop.permute.xlu0 %2093
  %2095 = vrot.lane.b32.xlu0 %v1902, 16
  %v2096 = vpop.permute.xlu0 %2095
  %2097 = vrot.lane.b32.xlu0 %v1906, 16
  %v2098 = vpop.permute.xlu0 %2097
  %v2099 = vsel %vm119, %v2068, %v2084
  %v2100 = vsel %vm119, %v2070, %v2086
  %v2101 = vsel %vm119, %v2072, %v2088
  %v2102 = vsel %vm119, %v2074, %v2090
  %v2103 = vsel %vm119, %v2076, %v2092
  %v2104 = vsel %vm119, %v2078, %v2094
  %v2105 = vsel %vm119, %v2080, %v2096
  %v2106 = vsel %vm119, %v2082, %v2098
  %v2107 = vsel %vm119, %v2052, %v2068
  %v2108 = vsel %vm119, %v2054, %v2070
  %v2109 = vsel %vm119, %v2056, %v2072
  %v2110 = vsel %vm119, %v2058, %v2074
  %v2111 = vsel %vm119, %v2060, %v2076
  %v2112 = vsel %vm119, %v2062, %v2078
  %v2113 = vsel %vm119, %v2064, %v2080
  %v2114 = vsel %vm119, %v2066, %v2082
  %v2115 = vsel %vm119, %v2036, %v2052
  %v2116 = vsel %vm119, %v2038, %v2054
  %v2117 = vsel %vm119, %v2040, %v2056
  %v2118 = vsel %vm119, %v2042, %v2058
  %v2119 = vsel %vm119, %v2044, %v2060
  %v2120 = vsel %vm119, %v2046, %v2062
  %v2121 = vsel %vm119, %v2048, %v2064
  %v2122 = vsel %vm119, %v2050, %v2066
  %v2123 = vsel %vm119, %v2084, %v2036
  %v2124 = vsel %vm119, %v2086, %v2038
  %v2125 = vsel %vm119, %v2088, %v2040
  %v2126 = vsel %vm119, %v2090, %v2042
  %v2127 = vsel %vm119, %v2092, %v2044
  %v2128 = vsel %vm119, %v2094, %v2046
  %v2129 = vsel %vm119, %v2096, %v2048
  %v2130 = vsel %vm119, %v2098, %v2050
  %v2131 = vmul.f32 %v2123, %v130
  %v2132 = vmul.f32 %v2115, %v134
  %v2133 = vmul.f32 %v2107, %v138
  %v2134 = vmul.f32 %v2099, %v142
  %v2135 = vmul.f32 %v2124, %v130
  %v2136 = vmul.f32 %v2116, %v134
  %v2137 = vmul.f32 %v2108, %v138
  %v2138 = vmul.f32 %v2100, %v142
  %v2139 = vmul.f32 %v2125, %v130
  %v2140 = vmul.f32 %v2117, %v134
  %v2141 = vmul.f32 %v2109, %v138
  %v2142 = vmul.f32 %v2101, %v142
  %v2143 = vmul.f32 %v2126, %v130
  %v2144 = vmul.f32 %v2118, %v134
  %v2145 = vmul.f32 %v2110, %v138
  %v2146 = vmul.f32 %v2102, %v142
  %v2147 = vmul.f32 %v2127, %v130
  %v2148 = vmul.f32 %v2119, %v134
  %v2149 = vmul.f32 %v2111, %v138
  %v2150 = vmul.f32 %v2103, %v142
  %v2151 = vmul.f32 %v2128, %v130
  %v2152 = vmul.f32 %v2120, %v134
  %v2153 = vmul.f32 %v2112, %v138
  %v2154 = vmul.f32 %v2104, %v142
  %v2155 = vmul.f32 %v2129, %v130
  %v2156 = vmul.f32 %v2121, %v134
  %v2157 = vmul.f32 %v2113, %v138
  %v2158 = vmul.f32 %v2105, %v142
  %v2159 = vmul.f32 %v2130, %v130
  %v2160 = vmul.f32 %v2122, %v134
  %v2161 = vmul.f32 %v2114, %v138
  %v2162 = vmul.f32 %v2106, %v142
  %2163 = vrot.lane.b32.xlu0 %v1875, 15
  %v2164 = vpop.permute.xlu0 %2163
  %2165 = vrot.lane.b32.xlu0 %v1879, 15
  %v2166 = vpop.permute.xlu0 %2165
  %2167 = vrot.lane.b32.xlu0 %v1883, 15
  %v2168 = vpop.permute.xlu0 %2167
  %2169 = vrot.lane.b32.xlu0 %v1887, 15
  %v2170 = vpop.permute.xlu0 %2169
  %2171 = vrot.lane.b32.xlu0 %v1891, 15
  %v2172 = vpop.permute.xlu0 %2171
  %2173 = vrot.lane.b32.xlu0 %v1895, 15
  %v2174 = vpop.permute.xlu0 %2173
  %2175 = vrot.lane.b32.xlu0 %v1899, 15
  %v2176 = vpop.permute.xlu0 %2175
  %2177 = vrot.lane.b32.xlu0 %v1903, 15
  %v2178 = vpop.permute.xlu0 %2177
  %2179 = vrot.lane.b32.xlu0 %v1876, 15
  %v2180 = vpop.permute.xlu0 %2179
  %2181 = vrot.lane.b32.xlu0 %v1880, 15
  %v2182 = vpop.permute.xlu0 %2181
  %2183 = vrot.lane.b32.xlu0 %v1884, 15
  %v2184 = vpop.permute.xlu0 %2183
  %2185 = vrot.lane.b32.xlu0 %v1888, 15
  %v2186 = vpop.permute.xlu0 %2185
  %2187 = vrot.lane.b32.xlu0 %v1892, 15
  %v2188 = vpop.permute.xlu0 %2187
  %2189 = vrot.lane.b32.xlu0 %v1896, 15
  %v2190 = vpop.permute.xlu0 %2189
  %2191 = vrot.lane.b32.xlu0 %v1900, 15
  %v2192 = vpop.permute.xlu0 %2191
  %2193 = vrot.lane.b32.xlu0 %v1904, 15
  %v2194 = vpop.permute.xlu0 %2193
  %2195 = vrot.lane.b32.xlu0 %v1877, 15
  %v2196 = vpop.permute.xlu0 %2195
  %2197 = vrot.lane.b32.xlu0 %v1881, 15
  %v2198 = vpop.permute.xlu0 %2197
  %2199 = vrot.lane.b32.xlu0 %v1885, 15
  %v2200 = vpop.permute.xlu0 %2199
  %2201 = vrot.lane.b32.xlu0 %v1889, 15
  %v2202 = vpop.permute.xlu0 %2201
  %2203 = vrot.lane.b32.xlu0 %v1893, 15
  %v2204 = vpop.permute.xlu0 %2203
  %2205 = vrot.lane.b32.xlu0 %v1897, 15
  %v2206 = vpop.permute.xlu0 %2205
  %2207 = vrot.lane.b32.xlu0 %v1901, 15
  %v2208 = vpop.permute.xlu0 %2207
  %2209 = vrot.lane.b32.xlu0 %v1905, 15
  %v2210 = vpop.permute.xlu0 %2209
  %2211 = vrot.lane.b32.xlu0 %v1878, 15
  %v2212 = vpop.permute.xlu0 %2211
  %2213 = vrot.lane.b32.xlu0 %v1882, 15
  %v2214 = vpop.permute.xlu0 %2213
  %2215 = vrot.lane.b32.xlu0 %v1886, 15
  %v2216 = vpop.permute.xlu0 %2215
  %2217 = vrot.lane.b32.xlu0 %v1890, 15
  %v2218 = vpop.permute.xlu0 %2217
  %2219 = vrot.lane.b32.xlu0 %v1894, 15
  %v2220 = vpop.permute.xlu0 %2219
  %2221 = vrot.lane.b32.xlu0 %v1898, 15
  %v2222 = vpop.permute.xlu0 %2221
  %2223 = vrot.lane.b32.xlu0 %v1902, 15
  %v2224 = vpop.permute.xlu0 %2223
  %2225 = vrot.lane.b32.xlu0 %v1906, 15
  %v2226 = vpop.permute.xlu0 %2225
  %v2227 = vsel %vm159, %v2196, %v2212
  %v2228 = vsel %vm159, %v2198, %v2214
  %v2229 = vsel %vm159, %v2200, %v2216
  %v2230 = vsel %vm159, %v2202, %v2218
  %v2231 = vsel %vm159, %v2204, %v2220
  %v2232 = vsel %vm159, %v2206, %v2222
  %v2233 = vsel %vm159, %v2208, %v2224
  %v2234 = vsel %vm159, %v2210, %v2226
  %v2235 = vsel %vm159, %v2180, %v2196
  %v2236 = vsel %vm159, %v2182, %v2198
  %v2237 = vsel %vm159, %v2184, %v2200
  %v2238 = vsel %vm159, %v2186, %v2202
  %v2239 = vsel %vm159, %v2188, %v2204
  %v2240 = vsel %vm159, %v2190, %v2206
  %v2241 = vsel %vm159, %v2192, %v2208
  %v2242 = vsel %vm159, %v2194, %v2210
  %v2243 = vsel %vm159, %v2164, %v2180
  %v2244 = vsel %vm159, %v2166, %v2182
  %v2245 = vsel %vm159, %v2168, %v2184
  %v2246 = vsel %vm159, %v2170, %v2186
  %v2247 = vsel %vm159, %v2172, %v2188
  %v2248 = vsel %vm159, %v2174, %v2190
  %v2249 = vsel %vm159, %v2176, %v2192
  %v2250 = vsel %vm159, %v2178, %v2194
  %v2251 = vsel %vm159, %v2212, %v2164
  %v2252 = vsel %vm159, %v2214, %v2166
  %v2253 = vsel %vm159, %v2216, %v2168
  %v2254 = vsel %vm159, %v2218, %v2170
  %v2255 = vsel %vm159, %v2220, %v2172
  %v2256 = vsel %vm159, %v2222, %v2174
  %v2257 = vsel %vm159, %v2224, %v2176
  %v2258 = vsel %vm159, %v2226, %v2178
  %v2259 = vmul.f32 %v2251, %v170
  %v2260 = vmul.f32 %v2243, %v174
  %v2261 = vmul.f32 %v2235, %v178
  %v2262 = vmul.f32 %v2227, %v182
  %v2263 = vmul.f32 %v2252, %v170
  %v2264 = vmul.f32 %v2244, %v174
  %v2265 = vmul.f32 %v2236, %v178
  %v2266 = vmul.f32 %v2228, %v182
  %v2267 = vmul.f32 %v2253, %v170
  %v2268 = vmul.f32 %v2245, %v174
  %v2269 = vmul.f32 %v2237, %v178
  %v2270 = vmul.f32 %v2229, %v182
  %v2271 = vmul.f32 %v2254, %v170
  %v2272 = vmul.f32 %v2246, %v174
  %v2273 = vmul.f32 %v2238, %v178
  %v2274 = vmul.f32 %v2230, %v182
  %v2275 = vmul.f32 %v2255, %v170
  %v2276 = vmul.f32 %v2247, %v174
  %v2277 = vmul.f32 %v2239, %v178
  %v2278 = vmul.f32 %v2231, %v182
  %v2279 = vmul.f32 %v2256, %v170
  %v2280 = vmul.f32 %v2248, %v174
  %v2281 = vmul.f32 %v2240, %v178
  %v2282 = vmul.f32 %v2232, %v182
  %v2283 = vmul.f32 %v2257, %v170
  %v2284 = vmul.f32 %v2249, %v174
  %v2285 = vmul.f32 %v2241, %v178
  %v2286 = vmul.f32 %v2233, %v182
  %v2287 = vmul.f32 %v2258, %v170
  %v2288 = vmul.f32 %v2250, %v174
  %v2289 = vmul.f32 %v2242, %v178
  %v2290 = vmul.f32 %v2234, %v182
  %2291 = vrot.lane.b32.xlu0 %v1875, 1
  %v2292 = vpop.permute.xlu0 %2291
  %2293 = vrot.lane.b32.xlu0 %v1879, 1
  %v2294 = vpop.permute.xlu0 %2293
  %2295 = vrot.lane.b32.xlu0 %v1883, 1
  %v2296 = vpop.permute.xlu0 %2295
  %2297 = vrot.lane.b32.xlu0 %v1887, 1
  %v2298 = vpop.permute.xlu0 %2297
  %2299 = vrot.lane.b32.xlu0 %v1891, 1
  %v2300 = vpop.permute.xlu0 %2299
  %2301 = vrot.lane.b32.xlu0 %v1895, 1
  %v2302 = vpop.permute.xlu0 %2301
  %2303 = vrot.lane.b32.xlu0 %v1899, 1
  %v2304 = vpop.permute.xlu0 %2303
  %2305 = vrot.lane.b32.xlu0 %v1903, 1
  %v2306 = vpop.permute.xlu0 %2305
  %2307 = vrot.lane.b32.xlu0 %v1876, 1
  %v2308 = vpop.permute.xlu0 %2307
  %2309 = vrot.lane.b32.xlu0 %v1880, 1
  %v2310 = vpop.permute.xlu0 %2309
  %2311 = vrot.lane.b32.xlu0 %v1884, 1
  %v2312 = vpop.permute.xlu0 %2311
  %2313 = vrot.lane.b32.xlu0 %v1888, 1
  %v2314 = vpop.permute.xlu0 %2313
  %2315 = vrot.lane.b32.xlu0 %v1892, 1
  %v2316 = vpop.permute.xlu0 %2315
  %2317 = vrot.lane.b32.xlu0 %v1896, 1
  %v2318 = vpop.permute.xlu0 %2317
  %2319 = vrot.lane.b32.xlu0 %v1900, 1
  %v2320 = vpop.permute.xlu0 %2319
  %2321 = vrot.lane.b32.xlu0 %v1904, 1
  %v2322 = vpop.permute.xlu0 %2321
  %2323 = vrot.lane.b32.xlu0 %v1877, 1
  %v2324 = vpop.permute.xlu0 %2323
  %2325 = vrot.lane.b32.xlu0 %v1881, 1
  %v2326 = vpop.permute.xlu0 %2325
  %2327 = vrot.lane.b32.xlu0 %v1885, 1
  %v2328 = vpop.permute.xlu0 %2327
  %2329 = vrot.lane.b32.xlu0 %v1889, 1
  %v2330 = vpop.permute.xlu0 %2329
  %2331 = vrot.lane.b32.xlu0 %v1893, 1
  %v2332 = vpop.permute.xlu0 %2331
  %2333 = vrot.lane.b32.xlu0 %v1897, 1
  %v2334 = vpop.permute.xlu0 %2333
  %2335 = vrot.lane.b32.xlu0 %v1901, 1
  %v2336 = vpop.permute.xlu0 %2335
  %2337 = vrot.lane.b32.xlu0 %v1905, 1
  %v2338 = vpop.permute.xlu0 %2337
  %2339 = vrot.lane.b32.xlu0 %v1878, 1
  %v2340 = vpop.permute.xlu0 %2339
  %2341 = vrot.lane.b32.xlu0 %v1882, 1
  %v2342 = vpop.permute.xlu0 %2341
  %2343 = vrot.lane.b32.xlu0 %v1886, 1
  %v2344 = vpop.permute.xlu0 %2343
  %2345 = vrot.lane.b32.xlu0 %v1890, 1
  %v2346 = vpop.permute.xlu0 %2345
  %2347 = vrot.lane.b32.xlu0 %v1894, 1
  %v2348 = vpop.permute.xlu0 %2347
  %2349 = vrot.lane.b32.xlu0 %v1898, 1
  %v2350 = vpop.permute.xlu0 %2349
  %2351 = vrot.lane.b32.xlu0 %v1902, 1
  %v2352 = vpop.permute.xlu0 %2351
  %2353 = vrot.lane.b32.xlu0 %v1906, 1
  %v2354 = vpop.permute.xlu0 %2353
  %v2355 = vsel %vm199, %v2324, %v2340
  %v2356 = vsel %vm199, %v2326, %v2342
  %v2357 = vsel %vm199, %v2328, %v2344
  %v2358 = vsel %vm199, %v2330, %v2346
  %v2359 = vsel %vm199, %v2332, %v2348
  %v2360 = vsel %vm199, %v2334, %v2350
  %v2361 = vsel %vm199, %v2336, %v2352
  %v2362 = vsel %vm199, %v2338, %v2354
  %v2363 = vsel %vm199, %v2308, %v2324
  %v2364 = vsel %vm199, %v2310, %v2326
  %v2365 = vsel %vm199, %v2312, %v2328
  %v2366 = vsel %vm199, %v2314, %v2330
  %v2367 = vsel %vm199, %v2316, %v2332
  %v2368 = vsel %vm199, %v2318, %v2334
  %v2369 = vsel %vm199, %v2320, %v2336
  %v2370 = vsel %vm199, %v2322, %v2338
  %v2371 = vsel %vm199, %v2292, %v2308
  %v2372 = vsel %vm199, %v2294, %v2310
  %v2373 = vsel %vm199, %v2296, %v2312
  %v2374 = vsel %vm199, %v2298, %v2314
  %v2375 = vsel %vm199, %v2300, %v2316
  %v2376 = vsel %vm199, %v2302, %v2318
  %v2377 = vsel %vm199, %v2304, %v2320
  %v2378 = vsel %vm199, %v2306, %v2322
  %v2379 = vsel %vm199, %v2340, %v2292
  %v2380 = vsel %vm199, %v2342, %v2294
  %v2381 = vsel %vm199, %v2344, %v2296
  %v2382 = vsel %vm199, %v2346, %v2298
  %v2383 = vsel %vm199, %v2348, %v2300
  %v2384 = vsel %vm199, %v2350, %v2302
  %v2385 = vsel %vm199, %v2352, %v2304
  %v2386 = vsel %vm199, %v2354, %v2306
  %v2387 = vmul.f32 %v2379, %v210
  %v2388 = vmul.f32 %v2371, %v214
  %v2389 = vmul.f32 %v2363, %v218
  %v2390 = vmul.f32 %v2355, %v222
  %v2391 = vmul.f32 %v2380, %v210
  %v2392 = vmul.f32 %v2372, %v214
  %v2393 = vmul.f32 %v2364, %v218
  %v2394 = vmul.f32 %v2356, %v222
  %v2395 = vmul.f32 %v2381, %v210
  %v2396 = vmul.f32 %v2373, %v214
  %v2397 = vmul.f32 %v2365, %v218
  %v2398 = vmul.f32 %v2357, %v222
  %v2399 = vmul.f32 %v2382, %v210
  %v2400 = vmul.f32 %v2374, %v214
  %v2401 = vmul.f32 %v2366, %v218
  %v2402 = vmul.f32 %v2358, %v222
  %v2403 = vmul.f32 %v2383, %v210
  %v2404 = vmul.f32 %v2375, %v214
  %v2405 = vmul.f32 %v2367, %v218
  %v2406 = vmul.f32 %v2359, %v222
  %v2407 = vmul.f32 %v2384, %v210
  %v2408 = vmul.f32 %v2376, %v214
  %v2409 = vmul.f32 %v2368, %v218
  %v2410 = vmul.f32 %v2360, %v222
  %v2411 = vmul.f32 %v2385, %v210
  %v2412 = vmul.f32 %v2377, %v214
  %v2413 = vmul.f32 %v2369, %v218
  %v2414 = vmul.f32 %v2361, %v222
  %v2415 = vmul.f32 %v2386, %v210
  %v2416 = vmul.f32 %v2378, %v214
  %v2417 = vmul.f32 %v2370, %v218
  %v2418 = vmul.f32 %v2362, %v222
  %v2419 = vmul.f32 %v1875, %v237
  %v2420 = vmul.f32 %v1876, %v241
  %v2421 = vmul.f32 %v1877, %v245
  %v2422 = vmul.f32 %v1878, %v249
  %v2423 = vmul.f32 %v1879, %v237
  %v2424 = vmul.f32 %v1880, %v241
  %v2425 = vmul.f32 %v1881, %v245
  %v2426 = vmul.f32 %v1882, %v249
  %v2427 = vmul.f32 %v1883, %v237
  %v2428 = vmul.f32 %v1884, %v241
  %v2429 = vmul.f32 %v1885, %v245
  %v2430 = vmul.f32 %v1886, %v249
  %v2431 = vmul.f32 %v1887, %v237
  %v2432 = vmul.f32 %v1888, %v241
  %v2433 = vmul.f32 %v1889, %v245
  %v2434 = vmul.f32 %v1890, %v249
  %v2435 = vmul.f32 %v1891, %v237
  %v2436 = vmul.f32 %v1892, %v241
  %v2437 = vmul.f32 %v1893, %v245
  %v2438 = vmul.f32 %v1894, %v249
  %v2439 = vmul.f32 %v1895, %v237
  %v2440 = vmul.f32 %v1896, %v241
  %v2441 = vmul.f32 %v1897, %v245
  %v2442 = vmul.f32 %v1898, %v249
  %v2443 = vmul.f32 %v1899, %v237
  %v2444 = vmul.f32 %v1900, %v241
  %v2445 = vmul.f32 %v1901, %v245
  %v2446 = vmul.f32 %v1902, %v249
  %v2447 = vmul.f32 %v1903, %v237
  %v2448 = vmul.f32 %v1904, %v241
  %v2449 = vmul.f32 %v1905, %v245
  %v2450 = vmul.f32 %v1906, %v249
  %2451 = vrot.lane.b32.xlu0 %v1875, 127
  %v2452 = vpop.permute.xlu0 %2451
  %2453 = vrot.lane.b32.xlu0 %v1879, 127
  %v2454 = vpop.permute.xlu0 %2453
  %2455 = vrot.lane.b32.xlu0 %v1883, 127
  %v2456 = vpop.permute.xlu0 %2455
  %2457 = vrot.lane.b32.xlu0 %v1887, 127
  %v2458 = vpop.permute.xlu0 %2457
  %2459 = vrot.lane.b32.xlu0 %v1891, 127
  %v2460 = vpop.permute.xlu0 %2459
  %2461 = vrot.lane.b32.xlu0 %v1895, 127
  %v2462 = vpop.permute.xlu0 %2461
  %2463 = vrot.lane.b32.xlu0 %v1899, 127
  %v2464 = vpop.permute.xlu0 %2463
  %2465 = vrot.lane.b32.xlu0 %v1903, 127
  %v2466 = vpop.permute.xlu0 %2465
  %2467 = vrot.lane.b32.xlu0 %v1876, 127
  %v2468 = vpop.permute.xlu0 %2467
  %2469 = vrot.lane.b32.xlu0 %v1880, 127
  %v2470 = vpop.permute.xlu0 %2469
  %2471 = vrot.lane.b32.xlu0 %v1884, 127
  %v2472 = vpop.permute.xlu0 %2471
  %2473 = vrot.lane.b32.xlu0 %v1888, 127
  %v2474 = vpop.permute.xlu0 %2473
  %2475 = vrot.lane.b32.xlu0 %v1892, 127
  %v2476 = vpop.permute.xlu0 %2475
  %2477 = vrot.lane.b32.xlu0 %v1896, 127
  %v2478 = vpop.permute.xlu0 %2477
  %2479 = vrot.lane.b32.xlu0 %v1900, 127
  %v2480 = vpop.permute.xlu0 %2479
  %2481 = vrot.lane.b32.xlu0 %v1904, 127
  %v2482 = vpop.permute.xlu0 %2481
  %2483 = vrot.lane.b32.xlu0 %v1877, 127
  %v2484 = vpop.permute.xlu0 %2483
  %2485 = vrot.lane.b32.xlu0 %v1881, 127
  %v2486 = vpop.permute.xlu0 %2485
  %2487 = vrot.lane.b32.xlu0 %v1885, 127
  %v2488 = vpop.permute.xlu0 %2487
  %2489 = vrot.lane.b32.xlu0 %v1889, 127
  %v2490 = vpop.permute.xlu0 %2489
  %2491 = vrot.lane.b32.xlu0 %v1893, 127
  %v2492 = vpop.permute.xlu0 %2491
  %2493 = vrot.lane.b32.xlu0 %v1897, 127
  %v2494 = vpop.permute.xlu0 %2493
  %2495 = vrot.lane.b32.xlu0 %v1901, 127
  %v2496 = vpop.permute.xlu0 %2495
  %2497 = vrot.lane.b32.xlu0 %v1905, 127
  %v2498 = vpop.permute.xlu0 %2497
  %2499 = vrot.lane.b32.xlu0 %v1878, 127
  %v2500 = vpop.permute.xlu0 %2499
  %2501 = vrot.lane.b32.xlu0 %v1882, 127
  %v2502 = vpop.permute.xlu0 %2501
  %2503 = vrot.lane.b32.xlu0 %v1886, 127
  %v2504 = vpop.permute.xlu0 %2503
  %2505 = vrot.lane.b32.xlu0 %v1890, 127
  %v2506 = vpop.permute.xlu0 %2505
  %2507 = vrot.lane.b32.xlu0 %v1894, 127
  %v2508 = vpop.permute.xlu0 %2507
  %2509 = vrot.lane.b32.xlu0 %v1898, 127
  %v2510 = vpop.permute.xlu0 %2509
  %2511 = vrot.lane.b32.xlu0 %v1902, 127
  %v2512 = vpop.permute.xlu0 %2511
  %2513 = vrot.lane.b32.xlu0 %v1906, 127
  %v2514 = vpop.permute.xlu0 %2513
  %v2515 = vsel %vm266, %v2484, %v2500
  %v2516 = vsel %vm266, %v2486, %v2502
  %v2517 = vsel %vm266, %v2488, %v2504
  %v2518 = vsel %vm266, %v2490, %v2506
  %v2519 = vsel %vm266, %v2492, %v2508
  %v2520 = vsel %vm266, %v2494, %v2510
  %v2521 = vsel %vm266, %v2496, %v2512
  %v2522 = vsel %vm266, %v2498, %v2514
  %v2523 = vsel %vm266, %v2468, %v2484
  %v2524 = vsel %vm266, %v2470, %v2486
  %v2525 = vsel %vm266, %v2472, %v2488
  %v2526 = vsel %vm266, %v2474, %v2490
  %v2527 = vsel %vm266, %v2476, %v2492
  %v2528 = vsel %vm266, %v2478, %v2494
  %v2529 = vsel %vm266, %v2480, %v2496
  %v2530 = vsel %vm266, %v2482, %v2498
  %v2531 = vsel %vm266, %v2452, %v2468
  %v2532 = vsel %vm266, %v2454, %v2470
  %v2533 = vsel %vm266, %v2456, %v2472
  %v2534 = vsel %vm266, %v2458, %v2474
  %v2535 = vsel %vm266, %v2460, %v2476
  %v2536 = vsel %vm266, %v2462, %v2478
  %v2537 = vsel %vm266, %v2464, %v2480
  %v2538 = vsel %vm266, %v2466, %v2482
  %v2539 = vsel %vm266, %v2500, %v2452
  %v2540 = vsel %vm266, %v2502, %v2454
  %v2541 = vsel %vm266, %v2504, %v2456
  %v2542 = vsel %vm266, %v2506, %v2458
  %v2543 = vsel %vm266, %v2508, %v2460
  %v2544 = vsel %vm266, %v2510, %v2462
  %v2545 = vsel %vm266, %v2512, %v2464
  %v2546 = vsel %vm266, %v2514, %v2466
  %v2547 = vmul.f32 %v2531, %v277
  %v2548 = vmul.f32 %v2523, %v281
  %v2549 = vmul.f32 %v2515, %v285
  %v2550 = vmul.f32 %v2539, %v289
  %v2551 = vmul.f32 %v2532, %v277
  %v2552 = vmul.f32 %v2524, %v281
  %v2553 = vmul.f32 %v2516, %v285
  %v2554 = vmul.f32 %v2540, %v289
  %v2555 = vmul.f32 %v2533, %v277
  %v2556 = vmul.f32 %v2525, %v281
  %v2557 = vmul.f32 %v2517, %v285
  %v2558 = vmul.f32 %v2541, %v289
  %v2559 = vmul.f32 %v2534, %v277
  %v2560 = vmul.f32 %v2526, %v281
  %v2561 = vmul.f32 %v2518, %v285
  %v2562 = vmul.f32 %v2542, %v289
  %v2563 = vmul.f32 %v2535, %v277
  %v2564 = vmul.f32 %v2527, %v281
  %v2565 = vmul.f32 %v2519, %v285
  %v2566 = vmul.f32 %v2543, %v289
  %v2567 = vmul.f32 %v2536, %v277
  %v2568 = vmul.f32 %v2528, %v281
  %v2569 = vmul.f32 %v2520, %v285
  %v2570 = vmul.f32 %v2544, %v289
  %v2571 = vmul.f32 %v2537, %v277
  %v2572 = vmul.f32 %v2529, %v281
  %v2573 = vmul.f32 %v2521, %v285
  %v2574 = vmul.f32 %v2545, %v289
  %v2575 = vmul.f32 %v2538, %v277
  %v2576 = vmul.f32 %v2530, %v281
  %v2577 = vmul.f32 %v2522, %v285
  %v2578 = vmul.f32 %v2546, %v289
  %2579 = vrot.lane.b32.xlu0 %v1875, 113
  %v2580 = vpop.permute.xlu0 %2579
  %2581 = vrot.lane.b32.xlu0 %v1879, 113
  %v2582 = vpop.permute.xlu0 %2581
  %2583 = vrot.lane.b32.xlu0 %v1883, 113
  %v2584 = vpop.permute.xlu0 %2583
  %2585 = vrot.lane.b32.xlu0 %v1887, 113
  %v2586 = vpop.permute.xlu0 %2585
  %2587 = vrot.lane.b32.xlu0 %v1891, 113
  %v2588 = vpop.permute.xlu0 %2587
  %2589 = vrot.lane.b32.xlu0 %v1895, 113
  %v2590 = vpop.permute.xlu0 %2589
  %2591 = vrot.lane.b32.xlu0 %v1899, 113
  %v2592 = vpop.permute.xlu0 %2591
  %2593 = vrot.lane.b32.xlu0 %v1903, 113
  %v2594 = vpop.permute.xlu0 %2593
  %2595 = vrot.lane.b32.xlu0 %v1876, 113
  %v2596 = vpop.permute.xlu0 %2595
  %2597 = vrot.lane.b32.xlu0 %v1880, 113
  %v2598 = vpop.permute.xlu0 %2597
  %2599 = vrot.lane.b32.xlu0 %v1884, 113
  %v2600 = vpop.permute.xlu0 %2599
  %2601 = vrot.lane.b32.xlu0 %v1888, 113
  %v2602 = vpop.permute.xlu0 %2601
  %2603 = vrot.lane.b32.xlu0 %v1892, 113
  %v2604 = vpop.permute.xlu0 %2603
  %2605 = vrot.lane.b32.xlu0 %v1896, 113
  %v2606 = vpop.permute.xlu0 %2605
  %2607 = vrot.lane.b32.xlu0 %v1900, 113
  %v2608 = vpop.permute.xlu0 %2607
  %2609 = vrot.lane.b32.xlu0 %v1904, 113
  %v2610 = vpop.permute.xlu0 %2609
  %2611 = vrot.lane.b32.xlu0 %v1877, 113
  %v2612 = vpop.permute.xlu0 %2611
  %2613 = vrot.lane.b32.xlu0 %v1881, 113
  %v2614 = vpop.permute.xlu0 %2613
  %2615 = vrot.lane.b32.xlu0 %v1885, 113
  %v2616 = vpop.permute.xlu0 %2615
  %2617 = vrot.lane.b32.xlu0 %v1889, 113
  %v2618 = vpop.permute.xlu0 %2617
  %2619 = vrot.lane.b32.xlu0 %v1893, 113
  %v2620 = vpop.permute.xlu0 %2619
  %2621 = vrot.lane.b32.xlu0 %v1897, 113
  %v2622 = vpop.permute.xlu0 %2621
  %2623 = vrot.lane.b32.xlu0 %v1901, 113
  %v2624 = vpop.permute.xlu0 %2623
  %2625 = vrot.lane.b32.xlu0 %v1905, 113
  %v2626 = vpop.permute.xlu0 %2625
  %2627 = vrot.lane.b32.xlu0 %v1878, 113
  %v2628 = vpop.permute.xlu0 %2627
  %2629 = vrot.lane.b32.xlu0 %v1882, 113
  %v2630 = vpop.permute.xlu0 %2629
  %2631 = vrot.lane.b32.xlu0 %v1886, 113
  %v2632 = vpop.permute.xlu0 %2631
  %2633 = vrot.lane.b32.xlu0 %v1890, 113
  %v2634 = vpop.permute.xlu0 %2633
  %2635 = vrot.lane.b32.xlu0 %v1894, 113
  %v2636 = vpop.permute.xlu0 %2635
  %2637 = vrot.lane.b32.xlu0 %v1898, 113
  %v2638 = vpop.permute.xlu0 %2637
  %2639 = vrot.lane.b32.xlu0 %v1902, 113
  %v2640 = vpop.permute.xlu0 %2639
  %2641 = vrot.lane.b32.xlu0 %v1906, 113
  %v2642 = vpop.permute.xlu0 %2641
  %v2643 = vsel %vm306, %v2612, %v2628
  %v2644 = vsel %vm306, %v2614, %v2630
  %v2645 = vsel %vm306, %v2616, %v2632
  %v2646 = vsel %vm306, %v2618, %v2634
  %v2647 = vsel %vm306, %v2620, %v2636
  %v2648 = vsel %vm306, %v2622, %v2638
  %v2649 = vsel %vm306, %v2624, %v2640
  %v2650 = vsel %vm306, %v2626, %v2642
  %v2651 = vsel %vm306, %v2596, %v2612
  %v2652 = vsel %vm306, %v2598, %v2614
  %v2653 = vsel %vm306, %v2600, %v2616
  %v2654 = vsel %vm306, %v2602, %v2618
  %v2655 = vsel %vm306, %v2604, %v2620
  %v2656 = vsel %vm306, %v2606, %v2622
  %v2657 = vsel %vm306, %v2608, %v2624
  %v2658 = vsel %vm306, %v2610, %v2626
  %v2659 = vsel %vm306, %v2580, %v2596
  %v2660 = vsel %vm306, %v2582, %v2598
  %v2661 = vsel %vm306, %v2584, %v2600
  %v2662 = vsel %vm306, %v2586, %v2602
  %v2663 = vsel %vm306, %v2588, %v2604
  %v2664 = vsel %vm306, %v2590, %v2606
  %v2665 = vsel %vm306, %v2592, %v2608
  %v2666 = vsel %vm306, %v2594, %v2610
  %v2667 = vsel %vm306, %v2628, %v2580
  %v2668 = vsel %vm306, %v2630, %v2582
  %v2669 = vsel %vm306, %v2632, %v2584
  %v2670 = vsel %vm306, %v2634, %v2586
  %v2671 = vsel %vm306, %v2636, %v2588
  %v2672 = vsel %vm306, %v2638, %v2590
  %v2673 = vsel %vm306, %v2640, %v2592
  %v2674 = vsel %vm306, %v2642, %v2594
  %v2675 = vmul.f32 %v2659, %v317
  %v2676 = vmul.f32 %v2651, %v321
  %v2677 = vmul.f32 %v2643, %v325
  %v2678 = vmul.f32 %v2667, %v329
  %v2679 = vmul.f32 %v2660, %v317
  %v2680 = vmul.f32 %v2652, %v321
  %v2681 = vmul.f32 %v2644, %v325
  %v2682 = vmul.f32 %v2668, %v329
  %v2683 = vmul.f32 %v2661, %v317
  %v2684 = vmul.f32 %v2653, %v321
  %v2685 = vmul.f32 %v2645, %v325
  %v2686 = vmul.f32 %v2669, %v329
  %v2687 = vmul.f32 %v2662, %v317
  %v2688 = vmul.f32 %v2654, %v321
  %v2689 = vmul.f32 %v2646, %v325
  %v2690 = vmul.f32 %v2670, %v329
  %v2691 = vmul.f32 %v2663, %v317
  %v2692 = vmul.f32 %v2655, %v321
  %v2693 = vmul.f32 %v2647, %v325
  %v2694 = vmul.f32 %v2671, %v329
  %v2695 = vmul.f32 %v2664, %v317
  %v2696 = vmul.f32 %v2656, %v321
  %v2697 = vmul.f32 %v2648, %v325
  %v2698 = vmul.f32 %v2672, %v329
  %v2699 = vmul.f32 %v2665, %v317
  %v2700 = vmul.f32 %v2657, %v321
  %v2701 = vmul.f32 %v2649, %v325
  %v2702 = vmul.f32 %v2673, %v329
  %v2703 = vmul.f32 %v2666, %v317
  %v2704 = vmul.f32 %v2658, %v321
  %v2705 = vmul.f32 %v2650, %v325
  %v2706 = vmul.f32 %v2674, %v329
  %2707 = vrot.lane.b32.xlu0 %v1875, 112
  %v2708 = vpop.permute.xlu0 %2707
  %2709 = vrot.lane.b32.xlu0 %v1879, 112
  %v2710 = vpop.permute.xlu0 %2709
  %2711 = vrot.lane.b32.xlu0 %v1883, 112
  %v2712 = vpop.permute.xlu0 %2711
  %2713 = vrot.lane.b32.xlu0 %v1887, 112
  %v2714 = vpop.permute.xlu0 %2713
  %2715 = vrot.lane.b32.xlu0 %v1891, 112
  %v2716 = vpop.permute.xlu0 %2715
  %2717 = vrot.lane.b32.xlu0 %v1895, 112
  %v2718 = vpop.permute.xlu0 %2717
  %2719 = vrot.lane.b32.xlu0 %v1899, 112
  %v2720 = vpop.permute.xlu0 %2719
  %2721 = vrot.lane.b32.xlu0 %v1903, 112
  %v2722 = vpop.permute.xlu0 %2721
  %2723 = vrot.lane.b32.xlu0 %v1876, 112
  %v2724 = vpop.permute.xlu0 %2723
  %2725 = vrot.lane.b32.xlu0 %v1880, 112
  %v2726 = vpop.permute.xlu0 %2725
  %2727 = vrot.lane.b32.xlu0 %v1884, 112
  %v2728 = vpop.permute.xlu0 %2727
  %2729 = vrot.lane.b32.xlu0 %v1888, 112
  %v2730 = vpop.permute.xlu0 %2729
  %2731 = vrot.lane.b32.xlu0 %v1892, 112
  %v2732 = vpop.permute.xlu0 %2731
  %2733 = vrot.lane.b32.xlu0 %v1896, 112
  %v2734 = vpop.permute.xlu0 %2733
  %2735 = vrot.lane.b32.xlu0 %v1900, 112
  %v2736 = vpop.permute.xlu0 %2735
  %2737 = vrot.lane.b32.xlu0 %v1904, 112
  %v2738 = vpop.permute.xlu0 %2737
  %2739 = vrot.lane.b32.xlu0 %v1877, 112
  %v2740 = vpop.permute.xlu0 %2739
  %2741 = vrot.lane.b32.xlu0 %v1881, 112
  %v2742 = vpop.permute.xlu0 %2741
  %2743 = vrot.lane.b32.xlu0 %v1885, 112
  %v2744 = vpop.permute.xlu0 %2743
  %2745 = vrot.lane.b32.xlu0 %v1889, 112
  %v2746 = vpop.permute.xlu0 %2745
  %2747 = vrot.lane.b32.xlu0 %v1893, 112
  %v2748 = vpop.permute.xlu0 %2747
  %2749 = vrot.lane.b32.xlu0 %v1897, 112
  %v2750 = vpop.permute.xlu0 %2749
  %2751 = vrot.lane.b32.xlu0 %v1901, 112
  %v2752 = vpop.permute.xlu0 %2751
  %2753 = vrot.lane.b32.xlu0 %v1905, 112
  %v2754 = vpop.permute.xlu0 %2753
  %2755 = vrot.lane.b32.xlu0 %v1878, 112
  %v2756 = vpop.permute.xlu0 %2755
  %2757 = vrot.lane.b32.xlu0 %v1882, 112
  %v2758 = vpop.permute.xlu0 %2757
  %2759 = vrot.lane.b32.xlu0 %v1886, 112
  %v2760 = vpop.permute.xlu0 %2759
  %2761 = vrot.lane.b32.xlu0 %v1890, 112
  %v2762 = vpop.permute.xlu0 %2761
  %2763 = vrot.lane.b32.xlu0 %v1894, 112
  %v2764 = vpop.permute.xlu0 %2763
  %2765 = vrot.lane.b32.xlu0 %v1898, 112
  %v2766 = vpop.permute.xlu0 %2765
  %2767 = vrot.lane.b32.xlu0 %v1902, 112
  %v2768 = vpop.permute.xlu0 %2767
  %2769 = vrot.lane.b32.xlu0 %v1906, 112
  %v2770 = vpop.permute.xlu0 %2769
  %v2771 = vsel %vm346, %v2740, %v2756
  %v2772 = vsel %vm346, %v2742, %v2758
  %v2773 = vsel %vm346, %v2744, %v2760
  %v2774 = vsel %vm346, %v2746, %v2762
  %v2775 = vsel %vm346, %v2748, %v2764
  %v2776 = vsel %vm346, %v2750, %v2766
  %v2777 = vsel %vm346, %v2752, %v2768
  %v2778 = vsel %vm346, %v2754, %v2770
  %v2779 = vsel %vm346, %v2724, %v2740
  %v2780 = vsel %vm346, %v2726, %v2742
  %v2781 = vsel %vm346, %v2728, %v2744
  %v2782 = vsel %vm346, %v2730, %v2746
  %v2783 = vsel %vm346, %v2732, %v2748
  %v2784 = vsel %vm346, %v2734, %v2750
  %v2785 = vsel %vm346, %v2736, %v2752
  %v2786 = vsel %vm346, %v2738, %v2754
  %v2787 = vsel %vm346, %v2708, %v2724
  %v2788 = vsel %vm346, %v2710, %v2726
  %v2789 = vsel %vm346, %v2712, %v2728
  %v2790 = vsel %vm346, %v2714, %v2730
  %v2791 = vsel %vm346, %v2716, %v2732
  %v2792 = vsel %vm346, %v2718, %v2734
  %v2793 = vsel %vm346, %v2720, %v2736
  %v2794 = vsel %vm346, %v2722, %v2738
  %v2795 = vsel %vm346, %v2756, %v2708
  %v2796 = vsel %vm346, %v2758, %v2710
  %v2797 = vsel %vm346, %v2760, %v2712
  %v2798 = vsel %vm346, %v2762, %v2714
  %v2799 = vsel %vm346, %v2764, %v2716
  %v2800 = vsel %vm346, %v2766, %v2718
  %v2801 = vsel %vm346, %v2768, %v2720
  %v2802 = vsel %vm346, %v2770, %v2722
  %v2803 = vmul.f32 %v2787, %v357
  %v2804 = vmul.f32 %v2779, %v361
  %v2805 = vmul.f32 %v2771, %v365
  %v2806 = vmul.f32 %v2795, %v369
  %v2807 = vmul.f32 %v2788, %v357
  %v2808 = vmul.f32 %v2780, %v361
  %v2809 = vmul.f32 %v2772, %v365
  %v2810 = vmul.f32 %v2796, %v369
  %v2811 = vmul.f32 %v2789, %v357
  %v2812 = vmul.f32 %v2781, %v361
  %v2813 = vmul.f32 %v2773, %v365
  %v2814 = vmul.f32 %v2797, %v369
  %v2815 = vmul.f32 %v2790, %v357
  %v2816 = vmul.f32 %v2782, %v361
  %v2817 = vmul.f32 %v2774, %v365
  %v2818 = vmul.f32 %v2798, %v369
  %v2819 = vmul.f32 %v2791, %v357
  %v2820 = vmul.f32 %v2783, %v361
  %v2821 = vmul.f32 %v2775, %v365
  %v2822 = vmul.f32 %v2799, %v369
  %v2823 = vmul.f32 %v2792, %v357
  %v2824 = vmul.f32 %v2784, %v361
  %v2825 = vmul.f32 %v2776, %v365
  %v2826 = vmul.f32 %v2800, %v369
  %v2827 = vmul.f32 %v2793, %v357
  %v2828 = vmul.f32 %v2785, %v361
  %v2829 = vmul.f32 %v2777, %v365
  %v2830 = vmul.f32 %v2801, %v369
  %v2831 = vmul.f32 %v2794, %v357
  %v2832 = vmul.f32 %v2786, %v361
  %v2833 = vmul.f32 %v2778, %v365
  %v2834 = vmul.f32 %v2802, %v369
  %2835 = vrot.lane.b32.xlu0 %v1875, 111
  %v2836 = vpop.permute.xlu0 %2835
  %2837 = vrot.lane.b32.xlu0 %v1879, 111
  %v2838 = vpop.permute.xlu0 %2837
  %2839 = vrot.lane.b32.xlu0 %v1883, 111
  %v2840 = vpop.permute.xlu0 %2839
  %2841 = vrot.lane.b32.xlu0 %v1887, 111
  %v2842 = vpop.permute.xlu0 %2841
  %2843 = vrot.lane.b32.xlu0 %v1891, 111
  %v2844 = vpop.permute.xlu0 %2843
  %2845 = vrot.lane.b32.xlu0 %v1895, 111
  %v2846 = vpop.permute.xlu0 %2845
  %2847 = vrot.lane.b32.xlu0 %v1899, 111
  %v2848 = vpop.permute.xlu0 %2847
  %2849 = vrot.lane.b32.xlu0 %v1903, 111
  %v2850 = vpop.permute.xlu0 %2849
  %2851 = vrot.lane.b32.xlu0 %v1876, 111
  %v2852 = vpop.permute.xlu0 %2851
  %2853 = vrot.lane.b32.xlu0 %v1880, 111
  %v2854 = vpop.permute.xlu0 %2853
  %2855 = vrot.lane.b32.xlu0 %v1884, 111
  %v2856 = vpop.permute.xlu0 %2855
  %2857 = vrot.lane.b32.xlu0 %v1888, 111
  %v2858 = vpop.permute.xlu0 %2857
  %2859 = vrot.lane.b32.xlu0 %v1892, 111
  %v2860 = vpop.permute.xlu0 %2859
  %2861 = vrot.lane.b32.xlu0 %v1896, 111
  %v2862 = vpop.permute.xlu0 %2861
  %2863 = vrot.lane.b32.xlu0 %v1900, 111
  %v2864 = vpop.permute.xlu0 %2863
  %2865 = vrot.lane.b32.xlu0 %v1904, 111
  %v2866 = vpop.permute.xlu0 %2865
  %2867 = vrot.lane.b32.xlu0 %v1877, 111
  %v2868 = vpop.permute.xlu0 %2867
  %2869 = vrot.lane.b32.xlu0 %v1881, 111
  %v2870 = vpop.permute.xlu0 %2869
  %2871 = vrot.lane.b32.xlu0 %v1885, 111
  %v2872 = vpop.permute.xlu0 %2871
  %2873 = vrot.lane.b32.xlu0 %v1889, 111
  %v2874 = vpop.permute.xlu0 %2873
  %2875 = vrot.lane.b32.xlu0 %v1893, 111
  %v2876 = vpop.permute.xlu0 %2875
  %2877 = vrot.lane.b32.xlu0 %v1897, 111
  %v2878 = vpop.permute.xlu0 %2877
  %2879 = vrot.lane.b32.xlu0 %v1901, 111
  %v2880 = vpop.permute.xlu0 %2879
  %2881 = vrot.lane.b32.xlu0 %v1905, 111
  %v2882 = vpop.permute.xlu0 %2881
  %2883 = vrot.lane.b32.xlu0 %v1878, 111
  %v2884 = vpop.permute.xlu0 %2883
  %2885 = vrot.lane.b32.xlu0 %v1882, 111
  %v2886 = vpop.permute.xlu0 %2885
  %2887 = vrot.lane.b32.xlu0 %v1886, 111
  %v2888 = vpop.permute.xlu0 %2887
  %2889 = vrot.lane.b32.xlu0 %v1890, 111
  %v2890 = vpop.permute.xlu0 %2889
  %2891 = vrot.lane.b32.xlu0 %v1894, 111
  %v2892 = vpop.permute.xlu0 %2891
  %2893 = vrot.lane.b32.xlu0 %v1898, 111
  %v2894 = vpop.permute.xlu0 %2893
  %2895 = vrot.lane.b32.xlu0 %v1902, 111
  %v2896 = vpop.permute.xlu0 %2895
  %2897 = vrot.lane.b32.xlu0 %v1906, 111
  %v2898 = vpop.permute.xlu0 %2897
  %v2899 = vsel %vm386, %v2868, %v2884
  %v2900 = vsel %vm386, %v2870, %v2886
  %v2901 = vsel %vm386, %v2872, %v2888
  %v2902 = vsel %vm386, %v2874, %v2890
  %v2903 = vsel %vm386, %v2876, %v2892
  %v2904 = vsel %vm386, %v2878, %v2894
  %v2905 = vsel %vm386, %v2880, %v2896
  %v2906 = vsel %vm386, %v2882, %v2898
  %v2907 = vsel %vm386, %v2852, %v2868
  %v2908 = vsel %vm386, %v2854, %v2870
  %v2909 = vsel %vm386, %v2856, %v2872
  %v2910 = vsel %vm386, %v2858, %v2874
  %v2911 = vsel %vm386, %v2860, %v2876
  %v2912 = vsel %vm386, %v2862, %v2878
  %v2913 = vsel %vm386, %v2864, %v2880
  %v2914 = vsel %vm386, %v2866, %v2882
  %v2915 = vsel %vm386, %v2836, %v2852
  %v2916 = vsel %vm386, %v2838, %v2854
  %v2917 = vsel %vm386, %v2840, %v2856
  %v2918 = vsel %vm386, %v2842, %v2858
  %v2919 = vsel %vm386, %v2844, %v2860
  %v2920 = vsel %vm386, %v2846, %v2862
  %v2921 = vsel %vm386, %v2848, %v2864
  %v2922 = vsel %vm386, %v2850, %v2866
  %v2923 = vsel %vm386, %v2884, %v2836
  %v2924 = vsel %vm386, %v2886, %v2838
  %v2925 = vsel %vm386, %v2888, %v2840
  %v2926 = vsel %vm386, %v2890, %v2842
  %v2927 = vsel %vm386, %v2892, %v2844
  %v2928 = vsel %vm386, %v2894, %v2846
  %v2929 = vsel %vm386, %v2896, %v2848
  %v2930 = vsel %vm386, %v2898, %v2850
  %v2931 = vmul.f32 %v2915, %v397
  %v2932 = vmul.f32 %v2907, %v401
  %v2933 = vmul.f32 %v2899, %v405
  %v2934 = vmul.f32 %v2923, %v409
  %v2935 = vmul.f32 %v2916, %v397
  %v2936 = vmul.f32 %v2908, %v401
  %v2937 = vmul.f32 %v2900, %v405
  %v2938 = vmul.f32 %v2924, %v409
  %v2939 = vmul.f32 %v2917, %v397
  %v2940 = vmul.f32 %v2909, %v401
  %v2941 = vmul.f32 %v2901, %v405
  %v2942 = vmul.f32 %v2925, %v409
  %v2943 = vmul.f32 %v2918, %v397
  %v2944 = vmul.f32 %v2910, %v401
  %v2945 = vmul.f32 %v2902, %v405
  %v2946 = vmul.f32 %v2926, %v409
  %v2947 = vmul.f32 %v2919, %v397
  %v2948 = vmul.f32 %v2911, %v401
  %v2949 = vmul.f32 %v2903, %v405
  %v2950 = vmul.f32 %v2927, %v409
  %v2951 = vmul.f32 %v2920, %v397
  %v2952 = vmul.f32 %v2912, %v401
  %v2953 = vmul.f32 %v2904, %v405
  %v2954 = vmul.f32 %v2928, %v409
  %v2955 = vmul.f32 %v2921, %v397
  %v2956 = vmul.f32 %v2913, %v401
  %v2957 = vmul.f32 %v2905, %v405
  %v2958 = vmul.f32 %v2929, %v409
  %v2959 = vmul.f32 %v2922, %v397
  %v2960 = vmul.f32 %v2914, %v401
  %v2961 = vmul.f32 %v2906, %v405
  %v2962 = vmul.f32 %v2930, %v409
  %v2963 = vpack.c.bf16 %v2007, %v2003
  %v2964 = vpack.c.bf16 %v2008, %v2004
  %v2965 = vpack.c.bf16 %v2009, %v2005
  %v2966 = vpack.c.bf16 %v2010, %v2006
  %v2967 = vpack.c.bf16 %v2015, %v2011
  %v2968 = vpack.c.bf16 %v2016, %v2012
  %v2969 = vpack.c.bf16 %v2017, %v2013
  %v2970 = vpack.c.bf16 %v2018, %v2014
  %v2971 = vpack.c.bf16 %v2023, %v2019
  %v2972 = vpack.c.bf16 %v2024, %v2020
  %v2973 = vpack.c.bf16 %v2025, %v2021
  %v2974 = vpack.c.bf16 %v2026, %v2022
  %v2975 = vpack.c.bf16 %v2031, %v2027
  %v2976 = vpack.c.bf16 %v2032, %v2028
  %v2977 = vpack.c.bf16 %v2033, %v2029
  %v2978 = vpack.c.bf16 %v2034, %v2030
  %v2979 = vpack.c.bf16 %v2135, %v2131
  %v2980 = vpack.c.bf16 %v2136, %v2132
  %v2981 = vpack.c.bf16 %v2137, %v2133
  %v2982 = vpack.c.bf16 %v2138, %v2134
  %v2983 = vpack.c.bf16 %v2143, %v2139
  %v2984 = vpack.c.bf16 %v2144, %v2140
  %v2985 = vpack.c.bf16 %v2145, %v2141
  %v2986 = vpack.c.bf16 %v2146, %v2142
  %v2987 = vpack.c.bf16 %v2151, %v2147
  %v2988 = vpack.c.bf16 %v2152, %v2148
  %v2989 = vpack.c.bf16 %v2153, %v2149
  %v2990 = vpack.c.bf16 %v2154, %v2150
  %v2991 = vpack.c.bf16 %v2159, %v2155
  %v2992 = vpack.c.bf16 %v2160, %v2156
  %v2993 = vpack.c.bf16 %v2161, %v2157
  %v2994 = vpack.c.bf16 %v2162, %v2158
  %v2995 = vpack.c.bf16 %v2263, %v2259
  %v2996 = vpack.c.bf16 %v2264, %v2260
  %v2997 = vpack.c.bf16 %v2265, %v2261
  %v2998 = vpack.c.bf16 %v2266, %v2262
  %v2999 = vpack.c.bf16 %v2271, %v2267
  %v3000 = vpack.c.bf16 %v2272, %v2268
  %v3001 = vpack.c.bf16 %v2273, %v2269
  %v3002 = vpack.c.bf16 %v2274, %v2270
  %v3003 = vpack.c.bf16 %v2279, %v2275
  %v3004 = vpack.c.bf16 %v2280, %v2276
  %v3005 = vpack.c.bf16 %v2281, %v2277
  %v3006 = vpack.c.bf16 %v2282, %v2278
  %v3007 = vpack.c.bf16 %v2287, %v2283
  %v3008 = vpack.c.bf16 %v2288, %v2284
  %v3009 = vpack.c.bf16 %v2289, %v2285
  %v3010 = vpack.c.bf16 %v2290, %v2286
  %v3011 = vpack.c.bf16 %v2391, %v2387
  %v3012 = vpack.c.bf16 %v2392, %v2388
  %v3013 = vpack.c.bf16 %v2393, %v2389
  %v3014 = vpack.c.bf16 %v2394, %v2390
  %v3015 = vpack.c.bf16 %v2399, %v2395
  %v3016 = vpack.c.bf16 %v2400, %v2396
  %v3017 = vpack.c.bf16 %v2401, %v2397
  %v3018 = vpack.c.bf16 %v2402, %v2398
  %v3019 = vpack.c.bf16 %v2407, %v2403
  %v3020 = vpack.c.bf16 %v2408, %v2404
  %v3021 = vpack.c.bf16 %v2409, %v2405
  %v3022 = vpack.c.bf16 %v2410, %v2406
  %v3023 = vpack.c.bf16 %v2415, %v2411
  %v3024 = vpack.c.bf16 %v2416, %v2412
  %v3025 = vpack.c.bf16 %v2417, %v2413
  %v3026 = vpack.c.bf16 %v2418, %v2414
  %v3027 = vpack.c.bf16 %v2423, %v2419
  %v3028 = vpack.c.bf16 %v2424, %v2420
  %v3029 = vpack.c.bf16 %v2425, %v2421
  %v3030 = vpack.c.bf16 %v2426, %v2422
  %v3031 = vpack.c.bf16 %v2431, %v2427
  %v3032 = vpack.c.bf16 %v2432, %v2428
  %v3033 = vpack.c.bf16 %v2433, %v2429
  %v3034 = vpack.c.bf16 %v2434, %v2430
  %v3035 = vpack.c.bf16 %v2439, %v2435
  %v3036 = vpack.c.bf16 %v2440, %v2436
  %v3037 = vpack.c.bf16 %v2441, %v2437
  %v3038 = vpack.c.bf16 %v2442, %v2438
  %v3039 = vpack.c.bf16 %v2447, %v2443
  %v3040 = vpack.c.bf16 %v2448, %v2444
  %v3041 = vpack.c.bf16 %v2449, %v2445
  %v3042 = vpack.c.bf16 %v2450, %v2446
  %v3043 = vpack.c.bf16 %v2551, %v2547
  %v3044 = vpack.c.bf16 %v2552, %v2548
  %v3045 = vpack.c.bf16 %v2553, %v2549
  %v3046 = vpack.c.bf16 %v2554, %v2550
  %v3047 = vpack.c.bf16 %v2559, %v2555
  %v3048 = vpack.c.bf16 %v2560, %v2556
  %v3049 = vpack.c.bf16 %v2561, %v2557
  %v3050 = vpack.c.bf16 %v2562, %v2558
  %v3051 = vpack.c.bf16 %v2567, %v2563
  %v3052 = vpack.c.bf16 %v2568, %v2564
  %v3053 = vpack.c.bf16 %v2569, %v2565
  %v3054 = vpack.c.bf16 %v2570, %v2566
  %v3055 = vpack.c.bf16 %v2575, %v2571
  %v3056 = vpack.c.bf16 %v2576, %v2572
  %v3057 = vpack.c.bf16 %v2577, %v2573
  %v3058 = vpack.c.bf16 %v2578, %v2574
  %v3059 = vpack.c.bf16 %v2679, %v2675
  %v3060 = vpack.c.bf16 %v2680, %v2676
  %v3061 = vpack.c.bf16 %v2681, %v2677
  %v3062 = vpack.c.bf16 %v2682, %v2678
  %v3063 = vpack.c.bf16 %v2687, %v2683
  %v3064 = vpack.c.bf16 %v2688, %v2684
  %v3065 = vpack.c.bf16 %v2689, %v2685
  %v3066 = vpack.c.bf16 %v2690, %v2686
  %v3067 = vpack.c.bf16 %v2695, %v2691
  %v3068 = vpack.c.bf16 %v2696, %v2692
  %v3069 = vpack.c.bf16 %v2697, %v2693
  %v3070 = vpack.c.bf16 %v2698, %v2694
  %v3071 = vpack.c.bf16 %v2703, %v2699
  %v3072 = vpack.c.bf16 %v2704, %v2700
  %v3073 = vpack.c.bf16 %v2705, %v2701
  %v3074 = vpack.c.bf16 %v2706, %v2702
  %v3075 = vpack.c.bf16 %v2807, %v2803
  %v3076 = vpack.c.bf16 %v2808, %v2804
  %v3077 = vpack.c.bf16 %v2809, %v2805
  %v3078 = vpack.c.bf16 %v2810, %v2806
  %v3079 = vpack.c.bf16 %v2815, %v2811
  %v3080 = vpack.c.bf16 %v2816, %v2812
  %v3081 = vpack.c.bf16 %v2817, %v2813
  %v3082 = vpack.c.bf16 %v2818, %v2814
  %v3083 = vpack.c.bf16 %v2823, %v2819
  %v3084 = vpack.c.bf16 %v2824, %v2820
  %v3085 = vpack.c.bf16 %v2825, %v2821
  %v3086 = vpack.c.bf16 %v2826, %v2822
  %v3087 = vpack.c.bf16 %v2831, %v2827
  %v3088 = vpack.c.bf16 %v2832, %v2828
  %v3089 = vpack.c.bf16 %v2833, %v2829
  %v3090 = vpack.c.bf16 %v2834, %v2830
  %v3091 = vpack.c.bf16 %v2935, %v2931
  %v3092 = vpack.c.bf16 %v2936, %v2932
  %v3093 = vpack.c.bf16 %v2937, %v2933
  %v3094 = vpack.c.bf16 %v2938, %v2934
  %v3095 = vpack.c.bf16 %v2943, %v2939
  %v3096 = vpack.c.bf16 %v2944, %v2940
  %v3097 = vpack.c.bf16 %v2945, %v2941
  %v3098 = vpack.c.bf16 %v2946, %v2942
  %v3099 = vpack.c.bf16 %v2951, %v2947
  %v3100 = vpack.c.bf16 %v2952, %v2948
  %v3101 = vpack.c.bf16 %v2953, %v2949
  %v3102 = vpack.c.bf16 %v2954, %v2950
  %v3103 = vpack.c.bf16 %v2959, %v2955
  %v3104 = vpack.c.bf16 %v2960, %v2956
  %v3105 = vpack.c.bf16 %v2961, %v2957
  %v3106 = vpack.c.bf16 %v2962, %v2958
  %v3107 = vld [vmem:[%s4] sm:$0xff]
  %v3108 = vld [vmem:[%s4 + $0x8] sm:$0xff]
  %v3109 = vld [vmem:[%s4 + $0x10] sm:$0xf]
  %v3110 = vld [vmem:[%s4 + $0x14] sm:$0xff]
  %v3111 = vld [vmem:[%s4 + $0x1c] sm:$0xff]
  %v3112 = vld [vmem:[%s4 + $0x24] sm:$0xf]
  %v3113 = vld [vmem:[%s4 + $0x28] sm:$0xff]
  %v3114 = vld [vmem:[%s4 + $0x30] sm:$0xff]
  %v3115 = vld [vmem:[%s4 + $0x38] sm:$0xf]
  %v3116 = vld [vmem:[%s4 + $0x3c] sm:$0xff]
  %v3117 = vld [vmem:[%s4 + $0x44] sm:$0xff]
  %v3118 = vld [vmem:[%s4 + $0x4c] sm:$0xf]
  %v3119 = vld [vmem:[%s4 + $0x50] sm:$0xff]
  %v3120 = vld [vmem:[%s4 + $0x58] sm:$0xff]
  %v3121 = vld [vmem:[%s4 + $0x60] sm:$0xf]
  %v3122 = vld [vmem:[%s4 + $0x64] sm:$0xff]
  %v3123 = vld [vmem:[%s4 + $0x6c] sm:$0xff]
  %v3124 = vld [vmem:[%s4 + $0x74] sm:$0xf]
  %v3125 = vld [vmem:[%s4 + $0x78] sm:$0xff]
  %v3126 = vld [vmem:[%s4 + $0x80] sm:$0xff]
  %v3127 = vld [vmem:[%s4 + $0x88] sm:$0xf]
  %v3128 = vld [vmem:[%s4 + $0x8c] sm:$0xff]
  %v3129 = vld [vmem:[%s4 + $0x94] sm:$0xff]
  %v3130 = vld [vmem:[%s4 + $0x9c] sm:$0xf]
  %v3131 = vld [vmem:[%s4 + $0xa0] sm:$0xff]
  %v3132 = vld [vmem:[%s4 + $0xa8] sm:$0xff]
  %v3133 = vld [vmem:[%s4 + $0xb0] sm:$0xf]
  %v3134 = vld [vmem:[%s4 + $0xb4] sm:$0xff]
  %v3135 = vld [vmem:[%s4 + $0xbc] sm:$0xff]
  %v3136 = vld [vmem:[%s4 + $0xc4] sm:$0xf]
  %v3137 = vld [vmem:[%s4 + $0xc8] sm:$0xff]
  %v3138 = vld [vmem:[%s4 + $0xd0] sm:$0xff]
  %v3139 = vld [vmem:[%s4 + $0xd8] sm:$0xf]
  %v3140 = vld [vmem:[%s4 + $0xdc] sm:$0xff]
  %v3141 = vld [vmem:[%s4 + $0xe4] sm:$0xff]
  %v3142 = vld [vmem:[%s4 + $0xec] sm:$0xf]
  %v3143 = vld [vmem:[%s4 + $0xf0] sm:$0xff]
  %v3144 = vld [vmem:[%s4 + $0xf8] sm:$0xff]
  %v3145 = vld [vmem:[%s4 + $0x100] sm:$0xf]
  %v3146 = vld [vmem:[%s4 + $0x104] sm:$0xff]
  %v3147 = vld [vmem:[%s4 + $0x10c] sm:$0xff]
  %v3148 = vld [vmem:[%s4 + $0x114] sm:$0xf]
  %v3149 = vld [vmem:[%s4 + $0x118] sm:$0xff]
  %v3150 = vld [vmem:[%s4 + $0x120] sm:$0xff]
  %v3151 = vld [vmem:[%s4 + $0x128] sm:$0xf]
  %v3152 = vld [vmem:[%s4 + $0x12c] sm:$0xff]
  %v3153 = vld [vmem:[%s4 + $0x134] sm:$0xff]
  %v3154 = vld [vmem:[%s4 + $0x13c] sm:$0xf]
  %3156 = vset.pattern.permute.xlu0 0
  %3157 = vperm.xlu0 %3156, %v45
  %v3158 = vpop.permute.xlu0 %3157
  %3161 = vset.pattern.permute.xlu0 0
  %3162 = vperm.xlu0 %3161, %v46
  %v3163 = vpop.permute.xlu0 %3162
  %3166 = vset.pattern.permute.xlu0 0
  %3167 = vperm.xlu0 %3166, %v47
  %v3168 = vpop.permute.xlu0 %3167
  %3171 = vset.pattern.permute.xlu0 0
  %3172 = vperm.xlu0 %3171, %v48
  %v3173 = vpop.permute.xlu0 %3172
  %3176 = vset.pattern.permute.xlu0 0
  %3177 = vperm.xlu0 %3176, %v49
  %v3178 = vpop.permute.xlu0 %3177
  %3181 = vset.pattern.permute.xlu0 0
  %3182 = vperm.xlu0 %3181, %v50
  %v3183 = vpop.permute.xlu0 %3182
  %3186 = vset.pattern.permute.xlu0 0
  %3187 = vperm.xlu0 %3186, %v51
  %v3188 = vpop.permute.xlu0 %3187
  %3191 = vset.pattern.permute.xlu0 0
  %3192 = vperm.xlu0 %3191, %v52
  %v3193 = vpop.permute.xlu0 %3192
  %3196 = vset.pattern.permute.xlu0 0
  %3197 = vperm.xlu0 %3196, %v53
  %v3198 = vpop.permute.xlu0 %3197
  %3201 = vset.pattern.permute.xlu0 0
  %3202 = vperm.xlu0 %3201, %v54
  %v3203 = vpop.permute.xlu0 %3202
  %3206 = vset.pattern.permute.xlu0 0
  %3207 = vperm.xlu0 %3206, %v55
  %v3208 = vpop.permute.xlu0 %3207
  %3211 = vset.pattern.permute.xlu0 0
  %3212 = vperm.xlu0 %3211, %v56
  %v3213 = vpop.permute.xlu0 %3212
  %3216 = vset.pattern.permute.xlu0 0
  %3217 = vperm.xlu0 %3216, %v57
  %v3218 = vpop.permute.xlu0 %3217
  %3221 = vset.pattern.permute.xlu0 0
  %3222 = vperm.xlu0 %3221, %v58
  %v3223 = vpop.permute.xlu0 %3222
  %3226 = vset.pattern.permute.xlu0 0
  %3227 = vperm.xlu0 %3226, %v59
  %v3228 = vpop.permute.xlu0 %3227
  %3231 = vset.pattern.permute.xlu0 0
  %3232 = vperm.xlu0 %3231, %v60
  %v3233 = vpop.permute.xlu0 %3232
  %v3283 = vunpack.c.l.b16 %v3107
  %v3284 = vunpack.c.h.b16 %v3107
  %v3285 = vunpack.c.l.b16 %v3108
  %v3286 = vunpack.c.h.b16 %v3108
  %v3287 = vunpack.c.l.b16 %v3109
  %v3288 = vunpack.c.l.b16 %v3110
  %v3289 = vunpack.c.h.b16 %v3110
  %v3290 = vunpack.c.l.b16 %v3111
  %v3291 = vunpack.c.h.b16 %v3111
  %v3292 = vunpack.c.l.b16 %v3112
  %v3293 = vunpack.c.l.b16 %v3113
  %v3294 = vunpack.c.h.b16 %v3113
  %v3295 = vunpack.c.l.b16 %v3114
  %v3296 = vunpack.c.h.b16 %v3114
  %v3297 = vunpack.c.l.b16 %v3115
  %v3298 = vunpack.c.l.b16 %v3116
  %v3299 = vunpack.c.h.b16 %v3116
  %v3300 = vunpack.c.l.b16 %v3117
  %v3301 = vunpack.c.h.b16 %v3117
  %v3302 = vunpack.c.l.b16 %v3118
  %v3303 = vunpack.c.l.b16 %v3119
  %v3304 = vunpack.c.h.b16 %v3119
  %v3305 = vunpack.c.l.b16 %v3120
  %v3306 = vunpack.c.h.b16 %v3120
  %v3307 = vunpack.c.l.b16 %v3121
  %v3308 = vunpack.c.l.b16 %v3122
  %v3309 = vunpack.c.h.b16 %v3122
  %v3310 = vunpack.c.l.b16 %v3123
  %v3311 = vunpack.c.h.b16 %v3123
  %v3312 = vunpack.c.l.b16 %v3124
  %v3313 = vunpack.c.l.b16 %v3125
  %v3314 = vunpack.c.h.b16 %v3125
  %v3315 = vunpack.c.l.b16 %v3126
  %v3316 = vunpack.c.h.b16 %v3126
  %v3317 = vunpack.c.l.b16 %v3127
  %v3318 = vunpack.c.l.b16 %v3128
  %v3319 = vunpack.c.h.b16 %v3128
  %v3320 = vunpack.c.l.b16 %v3129
  %v3321 = vunpack.c.h.b16 %v3129
  %v3322 = vunpack.c.l.b16 %v3130
  %v3323 = vunpack.c.l.b16 %v3131
  %v3324 = vunpack.c.h.b16 %v3131
  %v3325 = vunpack.c.l.b16 %v3132
  %v3326 = vunpack.c.h.b16 %v3132
  %v3327 = vunpack.c.l.b16 %v3133
  %v3328 = vunpack.c.l.b16 %v3134
  %v3329 = vunpack.c.h.b16 %v3134
  %v3330 = vunpack.c.l.b16 %v3135
  %v3331 = vunpack.c.h.b16 %v3135
  %v3332 = vunpack.c.l.b16 %v3136
  %v3333 = vunpack.c.l.b16 %v3137
  %v3334 = vunpack.c.h.b16 %v3137
  %v3335 = vunpack.c.l.b16 %v3138
  %v3336 = vunpack.c.h.b16 %v3138
  %v3337 = vunpack.c.l.b16 %v3139
  %v3338 = vunpack.c.l.b16 %v3140
  %v3339 = vunpack.c.h.b16 %v3140
  %v3340 = vunpack.c.l.b16 %v3141
  %v3341 = vunpack.c.h.b16 %v3141
  %v3342 = vunpack.c.l.b16 %v3142
  %v3343 = vunpack.c.l.b16 %v3143
  %v3344 = vunpack.c.h.b16 %v3143
  %v3345 = vunpack.c.l.b16 %v3144
  %v3346 = vunpack.c.h.b16 %v3144
  %v3347 = vunpack.c.l.b16 %v3145
  %v3348 = vunpack.c.l.b16 %v3146
  %v3349 = vunpack.c.h.b16 %v3146
  %v3350 = vunpack.c.l.b16 %v3147
  %v3351 = vunpack.c.h.b16 %v3147
  %v3352 = vunpack.c.l.b16 %v3148
  %v3353 = vunpack.c.l.b16 %v3149
  %v3354 = vunpack.c.h.b16 %v3149
  %v3355 = vunpack.c.l.b16 %v3150
  %v3356 = vunpack.c.h.b16 %v3150
  %v3357 = vunpack.c.l.b16 %v3151
  %v3358 = vunpack.c.l.b16 %v3152
  %v3359 = vunpack.c.h.b16 %v3152
  %v3360 = vunpack.c.l.b16 %v3153
  %v3361 = vunpack.c.h.b16 %v3153
  %v3362 = vunpack.c.l.b16 %v3154
  %v3363 = vpack.c.b16 %v3288, %v3283
  %v3364 = vpack.c.b16 %v3289, %v3284
  %v3365 = vpack.c.b16 %v3290, %v3285
  %v3366 = vpack.c.b16 %v3291, %v3286
  %v3367 = vpack.c.b16 %v3292, %v3287
  %v3368 = vpack.c.b16 %v3298, %v3293
  %v3369 = vpack.c.b16 %v3299, %v3294
  %v3370 = vpack.c.b16 %v3300, %v3295
  %v3371 = vpack.c.b16 %v3301, %v3296
  %v3372 = vpack.c.b16 %v3302, %v3297
  %v3373 = vpack.c.b16 %v3308, %v3303
  %v3374 = vpack.c.b16 %v3309, %v3304
  %v3375 = vpack.c.b16 %v3310, %v3305
  %v3376 = vpack.c.b16 %v3311, %v3306
  %v3377 = vpack.c.b16 %v3312, %v3307
  %v3378 = vpack.c.b16 %v3318, %v3313
  %v3379 = vpack.c.b16 %v3319, %v3314
  %v3380 = vpack.c.b16 %v3320, %v3315
  %v3381 = vpack.c.b16 %v3321, %v3316
  %v3382 = vpack.c.b16 %v3322, %v3317
  %v3383 = vpack.c.b16 %v3328, %v3323
  %v3384 = vpack.c.b16 %v3329, %v3324
  %v3385 = vpack.c.b16 %v3330, %v3325
  %v3386 = vpack.c.b16 %v3331, %v3326
  %v3387 = vpack.c.b16 %v3332, %v3327
  %v3388 = vpack.c.b16 %v3338, %v3333
  %v3389 = vpack.c.b16 %v3339, %v3334
  %v3390 = vpack.c.b16 %v3340, %v3335
  %v3391 = vpack.c.b16 %v3341, %v3336
  %v3392 = vpack.c.b16 %v3342, %v3337
  %v3393 = vpack.c.b16 %v3348, %v3343
  %v3394 = vpack.c.b16 %v3349, %v3344
  %v3395 = vpack.c.b16 %v3350, %v3345
  %v3396 = vpack.c.b16 %v3351, %v3346
  %v3397 = vpack.c.b16 %v3352, %v3347
  %v3398 = vpack.c.b16 %v3358, %v3353
  %v3399 = vpack.c.b16 %v3359, %v3354
  %v3400 = vpack.c.b16 %v3360, %v3355
  %v3401 = vpack.c.b16 %v3361, %v3356
  %v3402 = vpack.c.b16 %v3362, %v3357
  %vm3435 = vcmask 523264
  %v3437 = vsel %vm3435, %v3367, 0
  %v3440 = vsel %vm3435, %v3372, 0
  %v3443 = vsel %vm3435, %v3377, 0
  %v3446 = vsel %vm3435, %v3382, 0
  %v3449 = vsel %vm3435, %v3387, 0
  %v3452 = vsel %vm3435, %v3392, 0
  %v3455 = vsel %vm3435, %v3397, 0
  %v3458 = vsel %vm3435, %v3402, 0
  %3460 = vmatprep.subr.bf16.mxu0 %v2992
  %3461 = vmatpush1.bf16.msra.mxu0 %v2991
  %3462 = vmatprep.subr.bf16.mxu0 %v2988
  %3463 = vmatpush1.bf16.msra.mxu0 %v2987
  %3464 = vmatprep.subr.bf16.mxu0 %v2984
  %3465 = vmatpush1.bf16.msra.mxu0 %v2983
  %3466 = vmatprep.subr.bf16.mxu0 %v2980
  %3467 = vmatpush1.bf16.msra.mxu0 %v2979
  %3468 = vmatprep.subr.bf16.mxu0 %v2976
  %3469 = vmatpush1.bf16.msra.mxu0 %v2975
  %3470 = vmatprep.subr.bf16.mxu0 %v2972
  %3471 = vmatpush1.bf16.msra.mxu0 %v2971
  %3472 = vmatprep.subr.bf16.mxu0 %v2968
  %3473 = vmatpush1.bf16.msra.mxu0 %v2967
  %3474 = vmatprep.subr.bf16.mxu0 %v2964
  %3475 = vmatpush1.bf16.msra.mxu0 %v2963
  %3476 = vmatprep.subr.bf16.mxu0 %v3024
  %3477 = vmatpush2.bf16.msra.mxu0 %v3023
  %3478 = vmatprep.subr.bf16.mxu0 %v3020
  %3479 = vmatpush2.bf16.msra.mxu0 %v3019
  %3480 = vmatprep.subr.bf16.mxu0 %v3016
  %3481 = vmatpush2.bf16.msra.mxu0 %v3015
  %3482 = vmatprep.subr.bf16.mxu0 %v3012
  %3483 = vmatpush2.bf16.msra.mxu0 %v3011
  %3484 = vmatprep.subr.bf16.mxu0 %v3008
  %3485 = vmatpush2.bf16.msra.mxu0 %v3007
  %3486 = vmatprep.subr.bf16.mxu0 %v3004
  %3487 = vmatpush2.bf16.msra.mxu0 %v3003
  %3488 = vmatprep.subr.bf16.mxu0 %v3000
  %3489 = vmatpush2.bf16.msra.mxu0 %v2999
  %3490 = vmatprep.subr.bf16.mxu0 %v2996
  %3491 = vmatpush2.bf16.msra.mxu0 %v2995
  %3492 = vmatprep.mubr.bf16.mxu0 %v3364
  %3493 = vmatmul.mubr.bf16.gmra.mxu0 %v3363
  %v3494 = vpop.f32.mrf.mxu0
  %v3495 = vadd.f32 %v3158, %v3494
  %v3496 = vpop.f32.mrf.mxu0
  %v3497 = vadd.f32 %v3158, %v3496
  %v3498 = vpop.f32.mrf.mxu0
  %v3499 = vadd.f32 %v3163, %v3498
  %v3500 = vpop.f32.mrf.mxu0
  %v3501 = vadd.f32 %v3163, %v3500
  %3502 = vmatprep.mubr.bf16.mxu0 %v3369
  %3503 = vmatmul.mubr.bf16.gmra.mxu0 %v3368
  %v3504 = vpop.f32.mrf.mxu0
  %v3505 = vadd.f32 %v3168, %v3504
  %v3506 = vpop.f32.mrf.mxu0
  %v3507 = vadd.f32 %v3168, %v3506
  %v3508 = vpop.f32.mrf.mxu0
  %v3509 = vadd.f32 %v3173, %v3508
  %v3510 = vpop.f32.mrf.mxu0
  %v3511 = vadd.f32 %v3173, %v3510
  %3512 = vmatprep.mubr.bf16.mxu0 %v3374
  %3513 = vmatmul.mubr.bf16.gmra.mxu0 %v3373
  %v3514 = vpop.f32.mrf.mxu0
  %v3515 = vadd.f32 %v3178, %v3514
  %v3516 = vpop.f32.mrf.mxu0
  %v3517 = vadd.f32 %v3178, %v3516
  %v3518 = vpop.f32.mrf.mxu0
  %v3519 = vadd.f32 %v3183, %v3518
  %v3520 = vpop.f32.mrf.mxu0
  %v3521 = vadd.f32 %v3183, %v3520
  %3522 = vmatprep.mubr.bf16.mxu0 %v3379
  %3523 = vmatmul.mubr.bf16.gmra.mxu0 %v3378
  %v3524 = vpop.f32.mrf.mxu0
  %v3525 = vadd.f32 %v3188, %v3524
  %v3526 = vpop.f32.mrf.mxu0
  %v3527 = vadd.f32 %v3188, %v3526
  %v3528 = vpop.f32.mrf.mxu0
  %v3529 = vadd.f32 %v3193, %v3528
  %v3530 = vpop.f32.mrf.mxu0
  %v3531 = vadd.f32 %v3193, %v3530
  %3532 = vmatprep.mubr.bf16.mxu0 %v3384
  %3533 = vmatmul.mubr.bf16.gmra.mxu0 %v3383
  %v3534 = vpop.f32.mrf.mxu0
  %v3535 = vadd.f32 %v3198, %v3534
  %v3536 = vpop.f32.mrf.mxu0
  %v3537 = vadd.f32 %v3198, %v3536
  %v3538 = vpop.f32.mrf.mxu0
  %v3539 = vadd.f32 %v3203, %v3538
  %v3540 = vpop.f32.mrf.mxu0
  %v3541 = vadd.f32 %v3203, %v3540
  %3542 = vmatprep.mubr.bf16.mxu0 %v3389
  %3543 = vmatmul.mubr.bf16.gmra.mxu0 %v3388
  %v3544 = vpop.f32.mrf.mxu0
  %v3545 = vadd.f32 %v3208, %v3544
  %v3546 = vpop.f32.mrf.mxu0
  %v3547 = vadd.f32 %v3208, %v3546
  %v3548 = vpop.f32.mrf.mxu0
  %v3549 = vadd.f32 %v3213, %v3548
  %v3550 = vpop.f32.mrf.mxu0
  %v3551 = vadd.f32 %v3213, %v3550
  %3552 = vmatprep.mubr.bf16.mxu0 %v3394
  %3553 = vmatmul.mubr.bf16.gmra.mxu0 %v3393
  %v3554 = vpop.f32.mrf.mxu0
  %v3555 = vadd.f32 %v3218, %v3554
  %v3556 = vpop.f32.mrf.mxu0
  %v3557 = vadd.f32 %v3218, %v3556
  %v3558 = vpop.f32.mrf.mxu0
  %v3559 = vadd.f32 %v3223, %v3558
  %v3560 = vpop.f32.mrf.mxu0
  %v3561 = vadd.f32 %v3223, %v3560
  %3562 = vmatprep.mubr.bf16.mxu0 %v3399
  %3563 = vmatmul.mubr.bf16.gmra.mxu0 %v3398
  %v3564 = vpop.f32.mrf.mxu0
  %v3565 = vadd.f32 %v3228, %v3564
  %v3566 = vpop.f32.mrf.mxu0
  %v3567 = vadd.f32 %v3228, %v3566
  %v3568 = vpop.f32.mrf.mxu0
  %v3569 = vadd.f32 %v3233, %v3568
  %v3570 = vpop.f32.mrf.mxu0
  %v3571 = vadd.f32 %v3233, %v3570
  %3572 = vdwg.mxu0
  %3573 = vmatprep.subr.bf16.mxu0 %v3056
  %3574 = vmatpush1.bf16.msra.mxu0 %v3055
  %3575 = vmatprep.subr.bf16.mxu0 %v3052
  %3576 = vmatpush1.bf16.msra.mxu0 %v3051
  %3577 = vmatprep.subr.bf16.mxu0 %v3048
  %3578 = vmatpush1.bf16.msra.mxu0 %v3047
  %3579 = vmatprep.subr.bf16.mxu0 %v3044
  %3580 = vmatpush1.bf16.msra.mxu0 %v3043
  %3581 = vmatprep.subr.bf16.mxu0 %v3040
  %3582 = vmatpush1.bf16.msra.mxu0 %v3039
  %3583 = vmatprep.subr.bf16.mxu0 %v3036
  %3584 = vmatpush1.bf16.msra.mxu0 %v3035
  %3585 = vmatprep.subr.bf16.mxu0 %v3032
  %3586 = vmatpush1.bf16.msra.mxu0 %v3031
  %3587 = vmatprep.subr.bf16.mxu0 %v3028
  %3588 = vmatpush1.bf16.msra.mxu0 %v3027
  %3589 = vmatprep.subr.bf16.mxu0 %v3088
  %3590 = vmatpush2.bf16.msra.mxu0 %v3087
  %3591 = vmatprep.subr.bf16.mxu0 %v3084
  %3592 = vmatpush2.bf16.msra.mxu0 %v3083
  %3593 = vmatprep.subr.bf16.mxu0 %v3080
  %3594 = vmatpush2.bf16.msra.mxu0 %v3079
  %3595 = vmatprep.subr.bf16.mxu0 %v3076
  %3596 = vmatpush2.bf16.msra.mxu0 %v3075
  %3597 = vmatprep.subr.bf16.mxu0 %v3072
  %3598 = vmatpush2.bf16.msra.mxu0 %v3071
  %3599 = vmatprep.subr.bf16.mxu0 %v3068
  %3600 = vmatpush2.bf16.msra.mxu0 %v3067
  %3601 = vmatprep.subr.bf16.mxu0 %v3064
  %3602 = vmatpush2.bf16.msra.mxu0 %v3063
  %3603 = vmatprep.subr.bf16.mxu0 %v3060
  %3604 = vmatpush2.bf16.msra.mxu0 %v3059
  %3605 = vmatprep.mubr.bf16.mxu0 %v3366
  %3606 = vmatmul.mubr.bf16.gmra.mxu0 %v3365
  %v3607 = vpop.f32.mrf.mxu0
  %v3608 = vadd.f32 %v3495, %v3607
  %v3609 = vpop.f32.mrf.mxu0
  %v3610 = vadd.f32 %v3497, %v3609
  %v3611 = vpop.f32.mrf.mxu0
  %v3612 = vadd.f32 %v3499, %v3611
  %v3613 = vpop.f32.mrf.mxu0
  %v3614 = vadd.f32 %v3501, %v3613
  %3615 = vmatprep.mubr.bf16.mxu0 %v3371
  %3616 = vmatmul.mubr.bf16.gmra.mxu0 %v3370
  %v3617 = vpop.f32.mrf.mxu0
  %v3618 = vadd.f32 %v3505, %v3617
  %v3619 = vpop.f32.mrf.mxu0
  %v3620 = vadd.f32 %v3507, %v3619
  %v3621 = vpop.f32.mrf.mxu0
  %v3622 = vadd.f32 %v3509, %v3621
  %v3623 = vpop.f32.mrf.mxu0
  %v3624 = vadd.f32 %v3511, %v3623
  %3625 = vmatprep.mubr.bf16.mxu0 %v3376
  %3626 = vmatmul.mubr.bf16.gmra.mxu0 %v3375
  %v3627 = vpop.f32.mrf.mxu0
  %v3628 = vadd.f32 %v3515, %v3627
  %v3629 = vpop.f32.mrf.mxu0
  %v3630 = vadd.f32 %v3517, %v3629
  %v3631 = vpop.f32.mrf.mxu0
  %v3632 = vadd.f32 %v3519, %v3631
  %v3633 = vpop.f32.mrf.mxu0
  %v3634 = vadd.f32 %v3521, %v3633
  %3635 = vmatprep.mubr.bf16.mxu0 %v3381
  %3636 = vmatmul.mubr.bf16.gmra.mxu0 %v3380
  %v3637 = vpop.f32.mrf.mxu0
  %v3638 = vadd.f32 %v3525, %v3637
  %v3639 = vpop.f32.mrf.mxu0
  %v3640 = vadd.f32 %v3527, %v3639
  %v3641 = vpop.f32.mrf.mxu0
  %v3642 = vadd.f32 %v3529, %v3641
  %v3643 = vpop.f32.mrf.mxu0
  %v3644 = vadd.f32 %v3531, %v3643
  %3645 = vmatprep.mubr.bf16.mxu0 %v3386
  %3646 = vmatmul.mubr.bf16.gmra.mxu0 %v3385
  %v3647 = vpop.f32.mrf.mxu0
  %v3648 = vadd.f32 %v3535, %v3647
  %v3649 = vpop.f32.mrf.mxu0
  %v3650 = vadd.f32 %v3537, %v3649
  %v3651 = vpop.f32.mrf.mxu0
  %v3652 = vadd.f32 %v3539, %v3651
  %v3653 = vpop.f32.mrf.mxu0
  %v3654 = vadd.f32 %v3541, %v3653
  %3655 = vmatprep.mubr.bf16.mxu0 %v3391
  %3656 = vmatmul.mubr.bf16.gmra.mxu0 %v3390
  %v3657 = vpop.f32.mrf.mxu0
  %v3658 = vadd.f32 %v3545, %v3657
  %v3659 = vpop.f32.mrf.mxu0
  %v3660 = vadd.f32 %v3547, %v3659
  %v3661 = vpop.f32.mrf.mxu0
  %v3662 = vadd.f32 %v3549, %v3661
  %v3663 = vpop.f32.mrf.mxu0
  %v3664 = vadd.f32 %v3551, %v3663
  %3665 = vmatprep.mubr.bf16.mxu0 %v3396
  %3666 = vmatmul.mubr.bf16.gmra.mxu0 %v3395
  %v3667 = vpop.f32.mrf.mxu0
  %v3668 = vadd.f32 %v3555, %v3667
  %v3669 = vpop.f32.mrf.mxu0
  %v3670 = vadd.f32 %v3557, %v3669
  %v3671 = vpop.f32.mrf.mxu0
  %v3672 = vadd.f32 %v3559, %v3671
  %v3673 = vpop.f32.mrf.mxu0
  %v3674 = vadd.f32 %v3561, %v3673
  %3675 = vmatprep.mubr.bf16.mxu0 %v3401
  %3676 = vmatmul.mubr.bf16.gmra.mxu0 %v3400
  %v3677 = vpop.f32.mrf.mxu0
  %v3678 = vadd.f32 %v3565, %v3677
  %v3679 = vpop.f32.mrf.mxu0
  %v3680 = vadd.f32 %v3567, %v3679
  %v3681 = vpop.f32.mrf.mxu0
  %v3682 = vadd.f32 %v3569, %v3681
  %v3683 = vpop.f32.mrf.mxu0
  %v3684 = vadd.f32 %v3571, %v3683
  %3685 = vdwg.mxu0
  %3686 = vmatprep.subr.bf16.mxu0 0
  %3687 = vmatpush1.bf16.msra.mxu0 0
  %3688 = vmatprep.subr.bf16.mxu0 0
  %3689 = vmatpush1.bf16.msra.mxu0 0
  %3690 = vmatprep.subr.bf16.mxu0 0
  %3691 = vmatpush1.bf16.msra.mxu0 0
  %3692 = vmatprep.subr.bf16.mxu0 0
  %3693 = vmatpush1.bf16.msra.mxu0 0
  %3694 = vmatprep.subr.bf16.mxu0 %v3104
  %3695 = vmatpush1.bf16.msra.mxu0 %v3103
  %3696 = vmatprep.subr.bf16.mxu0 %v3100
  %3697 = vmatpush1.bf16.msra.mxu0 %v3099
  %3698 = vmatprep.subr.bf16.mxu0 %v3096
  %3699 = vmatpush1.bf16.msra.mxu0 %v3095
  %3700 = vmatprep.subr.bf16.mxu0 %v3092
  %3701 = vmatpush1.bf16.msra.mxu0 %v3091
  %3702 = vmatprep.subr.bf16.mxu0 0
  %3703 = vmatpush2.bf16.msra.mxu0 0
  %3704 = vmatprep.subr.bf16.mxu0 0
  %3705 = vmatpush2.bf16.msra.mxu0 0
  %3706 = vmatprep.subr.bf16.mxu0 0
  %3707 = vmatpush2.bf16.msra.mxu0 0
  %3708 = vmatprep.subr.bf16.mxu0 0
  %3709 = vmatpush2.bf16.msra.mxu0 0
  %3710 = vmatprep.subr.bf16.mxu0 0
  %3711 = vmatpush2.bf16.msra.mxu0 0
  %3712 = vmatprep.subr.bf16.mxu0 0
  %3713 = vmatpush2.bf16.msra.mxu0 0
  %3714 = vmatprep.subr.bf16.mxu0 0
  %3715 = vmatpush2.bf16.msra.mxu0 0
  %3716 = vmatprep.subr.bf16.mxu0 0
  %3717 = vmatpush2.bf16.msra.mxu0 0
  %3718 = vmatprep.mubr.bf16.mxu0 0
  %3719 = vmatmul.mubr.bf16.gmra.mxu0 %v3437
  %v3720 = vpop.f32.mrf.mxu0
  %v3721 = vadd.f32 %v3608, %v3720
  %v3722 = vpop.f32.mrf.mxu0
  %v3723 = vadd.f32 %v3610, %v3722
  %v3724 = vpop.f32.mrf.mxu0
  %v3725 = vadd.f32 %v3612, %v3724
  %v3726 = vpop.f32.mrf.mxu0
  %v3727 = vadd.f32 %v3614, %v3726
  %3728 = vmatprep.mubr.bf16.mxu0 0
  %3729 = vmatmul.mubr.bf16.gmra.mxu0 %v3440
  %v3730 = vpop.f32.mrf.mxu0
  %v3731 = vadd.f32 %v3618, %v3730
  %v3732 = vpop.f32.mrf.mxu0
  %v3733 = vadd.f32 %v3620, %v3732
  %v3734 = vpop.f32.mrf.mxu0
  %v3735 = vadd.f32 %v3622, %v3734
  %v3736 = vpop.f32.mrf.mxu0
  %v3737 = vadd.f32 %v3624, %v3736
  %3738 = vmatprep.mubr.bf16.mxu0 0
  %3739 = vmatmul.mubr.bf16.gmra.mxu0 %v3443
  %v3740 = vpop.f32.mrf.mxu0
  %v3741 = vadd.f32 %v3628, %v3740
  %v3742 = vpop.f32.mrf.mxu0
  %v3743 = vadd.f32 %v3630, %v3742
  %v3744 = vpop.f32.mrf.mxu0
  %v3745 = vadd.f32 %v3632, %v3744
  %v3746 = vpop.f32.mrf.mxu0
  %v3747 = vadd.f32 %v3634, %v3746
  %3748 = vmatprep.mubr.bf16.mxu0 0
  %3749 = vmatmul.mubr.bf16.gmra.mxu0 %v3446
  %v3750 = vpop.f32.mrf.mxu0
  %v3751 = vadd.f32 %v3638, %v3750
  %v3752 = vpop.f32.mrf.mxu0
  %v3753 = vadd.f32 %v3640, %v3752
  %v3754 = vpop.f32.mrf.mxu0
  %v3755 = vadd.f32 %v3642, %v3754
  %v3756 = vpop.f32.mrf.mxu0
  %v3757 = vadd.f32 %v3644, %v3756
  %3758 = vmatprep.mubr.bf16.mxu0 0
  %3759 = vmatmul.mubr.bf16.gmra.mxu0 %v3449
  %v3760 = vpop.f32.mrf.mxu0
  %v3761 = vadd.f32 %v3648, %v3760
  %v3762 = vpop.f32.mrf.mxu0
  %v3763 = vadd.f32 %v3650, %v3762
  %v3764 = vpop.f32.mrf.mxu0
  %v3765 = vadd.f32 %v3652, %v3764
  %v3766 = vpop.f32.mrf.mxu0
  %v3767 = vadd.f32 %v3654, %v3766
  %3768 = vmatprep.mubr.bf16.mxu0 0
  %3769 = vmatmul.mubr.bf16.gmra.mxu0 %v3452
  %v3770 = vpop.f32.mrf.mxu0
  %v3771 = vadd.f32 %v3658, %v3770
  %v3772 = vpop.f32.mrf.mxu0
  %v3773 = vadd.f32 %v3660, %v3772
  %v3774 = vpop.f32.mrf.mxu0
  %v3775 = vadd.f32 %v3662, %v3774
  %v3776 = vpop.f32.mrf.mxu0
  %v3777 = vadd.f32 %v3664, %v3776
  %3778 = vmatprep.mubr.bf16.mxu0 0
  %3779 = vmatmul.mubr.bf16.gmra.mxu0 %v3455
  %v3780 = vpop.f32.mrf.mxu0
  %v3781 = vadd.f32 %v3668, %v3780
  %v3782 = vpop.f32.mrf.mxu0
  %v3783 = vadd.f32 %v3670, %v3782
  %v3784 = vpop.f32.mrf.mxu0
  %v3785 = vadd.f32 %v3672, %v3784
  %v3786 = vpop.f32.mrf.mxu0
  %v3787 = vadd.f32 %v3674, %v3786
  %3788 = vmatprep.mubr.bf16.mxu0 0
  %3789 = vmatmul.mubr.bf16.gmra.mxu0 %v3458
  %v3790 = vpop.f32.mrf.mxu0
  %v3791 = vadd.f32 %v3678, %v3790
  %v3792 = vpop.f32.mrf.mxu0
  %v3793 = vadd.f32 %v3680, %v3792
  %v3794 = vpop.f32.mrf.mxu0
  %v3795 = vadd.f32 %v3682, %v3794
  %v3796 = vpop.f32.mrf.mxu0
  %v3797 = vadd.f32 %v3684, %v3796
  %3798 = vdwg.mxu0
  %3799 = vmatprep.subr.bf16.mxu0 %v2994
  %3800 = vmatpush1.bf16.msra.mxu0 %v2993
  %3801 = vmatprep.subr.bf16.mxu0 %v2990
  %3802 = vmatpush1.bf16.msra.mxu0 %v2989
  %3803 = vmatprep.subr.bf16.mxu0 %v2986
  %3804 = vmatpush1.bf16.msra.mxu0 %v2985
  %3805 = vmatprep.subr.bf16.mxu0 %v2982
  %3806 = vmatpush1.bf16.msra.mxu0 %v2981
  %3807 = vmatprep.subr.bf16.mxu0 %v2978
  %3808 = vmatpush1.bf16.msra.mxu0 %v2977
  %3809 = vmatprep.subr.bf16.mxu0 %v2974
  %3810 = vmatpush1.bf16.msra.mxu0 %v2973
  %3811 = vmatprep.subr.bf16.mxu0 %v2970
  %3812 = vmatpush1.bf16.msra.mxu0 %v2969
  %3813 = vmatprep.subr.bf16.mxu0 %v2966
  %3814 = vmatpush1.bf16.msra.mxu0 %v2965
  %3815 = vmatprep.subr.bf16.mxu0 %v3026
  %3816 = vmatpush2.bf16.msra.mxu0 %v3025
  %3817 = vmatprep.subr.bf16.mxu0 %v3022
  %3818 = vmatpush2.bf16.msra.mxu0 %v3021
  %3819 = vmatprep.subr.bf16.mxu0 %v3018
  %3820 = vmatpush2.bf16.msra.mxu0 %v3017
  %3821 = vmatprep.subr.bf16.mxu0 %v3014
  %3822 = vmatpush2.bf16.msra.mxu0 %v3013
  %3823 = vmatprep.subr.bf16.mxu0 %v3010
  %3824 = vmatpush2.bf16.msra.mxu0 %v3009
  %3825 = vmatprep.subr.bf16.mxu0 %v3006
  %3826 = vmatpush2.bf16.msra.mxu0 %v3005
  %3827 = vmatprep.subr.bf16.mxu0 %v3002
  %3828 = vmatpush2.bf16.msra.mxu0 %v3001
  %3829 = vmatprep.subr.bf16.mxu0 %v2998
  %3830 = vmatpush2.bf16.msra.mxu0 %v2997
  %3831 = vmatprep.mubr.bf16.mxu0 %v3364
  %3832 = vmatmul.mubr.bf16.gmra.mxu0 %v3363
  %v3833 = vpop.f32.mrf.mxu0
  %v3834 = vadd.f32 %v3158, %v3833
  %v3835 = vpop.f32.mrf.mxu0
  %v3836 = vadd.f32 %v3158, %v3835
  %v3837 = vpop.f32.mrf.mxu0
  %v3838 = vadd.f32 %v3163, %v3837
  %v3839 = vpop.f32.mrf.mxu0
  %v3840 = vadd.f32 %v3163, %v3839
  %3841 = vmatprep.mubr.bf16.mxu0 %v3369
  %3842 = vmatmul.mubr.bf16.gmra.mxu0 %v3368
  %v3843 = vpop.f32.mrf.mxu0
  %v3844 = vadd.f32 %v3168, %v3843
  %v3845 = vpop.f32.mrf.mxu0
  %v3846 = vadd.f32 %v3168, %v3845
  %v3847 = vpop.f32.mrf.mxu0
  %v3848 = vadd.f32 %v3173, %v3847
  %v3849 = vpop.f32.mrf.mxu0
  %v3850 = vadd.f32 %v3173, %v3849
  %3851 = vmatprep.mubr.bf16.mxu0 %v3374
  %3852 = vmatmul.mubr.bf16.gmra.mxu0 %v3373
  %v3853 = vpop.f32.mrf.mxu0
  %v3854 = vadd.f32 %v3178, %v3853
  %v3855 = vpop.f32.mrf.mxu0
  %v3856 = vadd.f32 %v3178, %v3855
  %v3857 = vpop.f32.mrf.mxu0
  %v3858 = vadd.f32 %v3183, %v3857
  %v3859 = vpop.f32.mrf.mxu0
  %v3860 = vadd.f32 %v3183, %v3859
  %3861 = vmatprep.mubr.bf16.mxu0 %v3379
  %3862 = vmatmul.mubr.bf16.gmra.mxu0 %v3378
  %v3863 = vpop.f32.mrf.mxu0
  %v3864 = vadd.f32 %v3188, %v3863
  %v3865 = vpop.f32.mrf.mxu0
  %v3866 = vadd.f32 %v3188, %v3865
  %v3867 = vpop.f32.mrf.mxu0
  %v3868 = vadd.f32 %v3193, %v3867
  %v3869 = vpop.f32.mrf.mxu0
  %v3870 = vadd.f32 %v3193, %v3869
  %3871 = vmatprep.mubr.bf16.mxu0 %v3384
  %3872 = vmatmul.mubr.bf16.gmra.mxu0 %v3383
  %v3873 = vpop.f32.mrf.mxu0
  %v3874 = vadd.f32 %v3198, %v3873
  %v3875 = vpop.f32.mrf.mxu0
  %v3876 = vadd.f32 %v3198, %v3875
  %v3877 = vpop.f32.mrf.mxu0
  %v3878 = vadd.f32 %v3203, %v3877
  %v3879 = vpop.f32.mrf.mxu0
  %v3880 = vadd.f32 %v3203, %v3879
  %3881 = vmatprep.mubr.bf16.mxu0 %v3389
  %3882 = vmatmul.mubr.bf16.gmra.mxu0 %v3388
  %v3883 = vpop.f32.mrf.mxu0
  %v3884 = vadd.f32 %v3208, %v3883
  %v3885 = vpop.f32.mrf.mxu0
  %v3886 = vadd.f32 %v3208, %v3885
  %v3887 = vpop.f32.mrf.mxu0
  %v3888 = vadd.f32 %v3213, %v3887
  %v3889 = vpop.f32.mrf.mxu0
  %v3890 = vadd.f32 %v3213, %v3889
  %3891 = vmatprep.mubr.bf16.mxu0 %v3394
  %3892 = vmatmul.mubr.bf16.gmra.mxu0 %v3393
  %v3893 = vpop.f32.mrf.mxu0
  %v3894 = vadd.f32 %v3218, %v3893
  %v3895 = vpop.f32.mrf.mxu0
  %v3896 = vadd.f32 %v3218, %v3895
  %v3897 = vpop.f32.mrf.mxu0
  %v3898 = vadd.f32 %v3223, %v3897
  %v3899 = vpop.f32.mrf.mxu0
  %v3900 = vadd.f32 %v3223, %v3899
  %3901 = vmatprep.mubr.bf16.mxu0 %v3399
  %3902 = vmatmul.mubr.bf16.gmra.mxu0 %v3398
  %v3903 = vpop.f32.mrf.mxu0
  %v3904 = vadd.f32 %v3228, %v3903
  %v3905 = vpop.f32.mrf.mxu0
  %v3906 = vadd.f32 %v3228, %v3905
  %v3907 = vpop.f32.mrf.mxu0
  %v3908 = vadd.f32 %v3233, %v3907
  %v3909 = vpop.f32.mrf.mxu0
  %v3910 = vadd.f32 %v3233, %v3909
  %3911 = vdwg.mxu0
  %3912 = vmatprep.subr.bf16.mxu0 %v3058
  %3913 = vmatpush1.bf16.msra.mxu0 %v3057
  %3914 = vmatprep.subr.bf16.mxu0 %v3054
  %3915 = vmatpush1.bf16.msra.mxu0 %v3053
  %3916 = vmatprep.subr.bf16.mxu0 %v3050
  %3917 = vmatpush1.bf16.msra.mxu0 %v3049
  %3918 = vmatprep.subr.bf16.mxu0 %v3046
  %3919 = vmatpush1.bf16.msra.mxu0 %v3045
  %3920 = vmatprep.subr.bf16.mxu0 %v3042
  %3921 = vmatpush1.bf16.msra.mxu0 %v3041
  %3922 = vmatprep.subr.bf16.mxu0 %v3038
  %3923 = vmatpush1.bf16.msra.mxu0 %v3037
  %3924 = vmatprep.subr.bf16.mxu0 %v3034
  %3925 = vmatpush1.bf16.msra.mxu0 %v3033
  %3926 = vmatprep.subr.bf16.mxu0 %v3030
  %3927 = vmatpush1.bf16.msra.mxu0 %v3029
  %3928 = vmatprep.subr.bf16.mxu0 %v3090
  %3929 = vmatpush2.bf16.msra.mxu0 %v3089
  %3930 = vmatprep.subr.bf16.mxu0 %v3086
  %3931 = vmatpush2.bf16.msra.mxu0 %v3085
  %3932 = vmatprep.subr.bf16.mxu0 %v3082
  %3933 = vmatpush2.bf16.msra.mxu0 %v3081
  %3934 = vmatprep.subr.bf16.mxu0 %v3078
  %3935 = vmatpush2.bf16.msra.mxu0 %v3077
  %3936 = vmatprep.subr.bf16.mxu0 %v3074
  %3937 = vmatpush2.bf16.msra.mxu0 %v3073
  %3938 = vmatprep.subr.bf16.mxu0 %v3070
  %3939 = vmatpush2.bf16.msra.mxu0 %v3069
  %3940 = vmatprep.subr.bf16.mxu0 %v3066
  %3941 = vmatpush2.bf16.msra.mxu0 %v3065
  %3942 = vmatprep.subr.bf16.mxu0 %v3062
  %3943 = vmatpush2.bf16.msra.mxu0 %v3061
  %3944 = vmatprep.mubr.bf16.mxu0 %v3366
  %3945 = vmatmul.mubr.bf16.gmra.mxu0 %v3365
  %v3946 = vpop.f32.mrf.mxu0
  %v3947 = vadd.f32 %v3834, %v3946
  %v3948 = vpop.f32.mrf.mxu0
  %v3949 = vadd.f32 %v3836, %v3948
  %v3950 = vpop.f32.mrf.mxu0
  %v3951 = vadd.f32 %v3838, %v3950
  %v3952 = vpop.f32.mrf.mxu0
  %v3953 = vadd.f32 %v3840, %v3952
  %3954 = vmatprep.mubr.bf16.mxu0 %v3371
  %3955 = vmatmul.mubr.bf16.gmra.mxu0 %v3370
  %v3956 = vpop.f32.mrf.mxu0
  %v3957 = vadd.f32 %v3844, %v3956
  %v3958 = vpop.f32.mrf.mxu0
  %v3959 = vadd.f32 %v3846, %v3958
  %v3960 = vpop.f32.mrf.mxu0
  %v3961 = vadd.f32 %v3848, %v3960
  %v3962 = vpop.f32.mrf.mxu0
  %v3963 = vadd.f32 %v3850, %v3962
  %3964 = vmatprep.mubr.bf16.mxu0 %v3376
  %3965 = vmatmul.mubr.bf16.gmra.mxu0 %v3375
  %v3966 = vpop.f32.mrf.mxu0
  %v3967 = vadd.f32 %v3854, %v3966
  %v3968 = vpop.f32.mrf.mxu0
  %v3969 = vadd.f32 %v3856, %v3968
  %v3970 = vpop.f32.mrf.mxu0
  %v3971 = vadd.f32 %v3858, %v3970
  %v3972 = vpop.f32.mrf.mxu0
  %v3973 = vadd.f32 %v3860, %v3972
  %3974 = vmatprep.mubr.bf16.mxu0 %v3381
  %3975 = vmatmul.mubr.bf16.gmra.mxu0 %v3380
  %v3976 = vpop.f32.mrf.mxu0
  %v3977 = vadd.f32 %v3864, %v3976
  %v3978 = vpop.f32.mrf.mxu0
  %v3979 = vadd.f32 %v3866, %v3978
  %v3980 = vpop.f32.mrf.mxu0
  %v3981 = vadd.f32 %v3868, %v3980
  %v3982 = vpop.f32.mrf.mxu0
  %v3983 = vadd.f32 %v3870, %v3982
  %3984 = vmatprep.mubr.bf16.mxu0 %v3386
  %3985 = vmatmul.mubr.bf16.gmra.mxu0 %v3385
  %v3986 = vpop.f32.mrf.mxu0
  %v3987 = vadd.f32 %v3874, %v3986
  %v3988 = vpop.f32.mrf.mxu0
  %v3989 = vadd.f32 %v3876, %v3988
  %v3990 = vpop.f32.mrf.mxu0
  %v3991 = vadd.f32 %v3878, %v3990
  %v3992 = vpop.f32.mrf.mxu0
  %v3993 = vadd.f32 %v3880, %v3992
  %3994 = vmatprep.mubr.bf16.mxu0 %v3391
  %3995 = vmatmul.mubr.bf16.gmra.mxu0 %v3390
  %v3996 = vpop.f32.mrf.mxu0
  %v3997 = vadd.f32 %v3884, %v3996
  %v3998 = vpop.f32.mrf.mxu0
  %v3999 = vadd.f32 %v3886, %v3998
  %v4000 = vpop.f32.mrf.mxu0
  %v4001 = vadd.f32 %v3888, %v4000
  %v4002 = vpop.f32.mrf.mxu0
  %v4003 = vadd.f32 %v3890, %v4002
  %4004 = vmatprep.mubr.bf16.mxu0 %v3396
  %4005 = vmatmul.mubr.bf16.gmra.mxu0 %v3395
  %v4006 = vpop.f32.mrf.mxu0
  %v4007 = vadd.f32 %v3894, %v4006
  %v4008 = vpop.f32.mrf.mxu0
  %v4009 = vadd.f32 %v3896, %v4008
  %v4010 = vpop.f32.mrf.mxu0
  %v4011 = vadd.f32 %v3898, %v4010
  %v4012 = vpop.f32.mrf.mxu0
  %v4013 = vadd.f32 %v3900, %v4012
  %4014 = vmatprep.mubr.bf16.mxu0 %v3401
  %4015 = vmatmul.mubr.bf16.gmra.mxu0 %v3400
  %v4016 = vpop.f32.mrf.mxu0
  %v4017 = vadd.f32 %v3904, %v4016
  %v4018 = vpop.f32.mrf.mxu0
  %v4019 = vadd.f32 %v3906, %v4018
  %v4020 = vpop.f32.mrf.mxu0
  %v4021 = vadd.f32 %v3908, %v4020
  %v4022 = vpop.f32.mrf.mxu0
  %v4023 = vadd.f32 %v3910, %v4022
  %4024 = vdwg.mxu0
  %4025 = vmatprep.subr.bf16.mxu0 0
  %4026 = vmatpush1.bf16.msra.mxu0 0
  %4027 = vmatprep.subr.bf16.mxu0 0
  %4028 = vmatpush1.bf16.msra.mxu0 0
  %4029 = vmatprep.subr.bf16.mxu0 0
  %4030 = vmatpush1.bf16.msra.mxu0 0
  %4031 = vmatprep.subr.bf16.mxu0 0
  %4032 = vmatpush1.bf16.msra.mxu0 0
  %4033 = vmatprep.subr.bf16.mxu0 %v3106
  %4034 = vmatpush1.bf16.msra.mxu0 %v3105
  %4035 = vmatprep.subr.bf16.mxu0 %v3102
  %4036 = vmatpush1.bf16.msra.mxu0 %v3101
  %4037 = vmatprep.subr.bf16.mxu0 %v3098
  %4038 = vmatpush1.bf16.msra.mxu0 %v3097
  %4039 = vmatprep.subr.bf16.mxu0 %v3094
  %4040 = vmatpush1.bf16.msra.mxu0 %v3093
  %4041 = vmatprep.subr.bf16.mxu0 0
  %4042 = vmatpush2.bf16.msra.mxu0 0
  %4043 = vmatprep.subr.bf16.mxu0 0
  %4044 = vmatpush2.bf16.msra.mxu0 0
  %4045 = vmatprep.subr.bf16.mxu0 0
  %4046 = vmatpush2.bf16.msra.mxu0 0
  %4047 = vmatprep.subr.bf16.mxu0 0
  %4048 = vmatpush2.bf16.msra.mxu0 0
  %4049 = vmatprep.subr.bf16.mxu0 0
  %4050 = vmatpush2.bf16.msra.mxu0 0
  %4051 = vmatprep.subr.bf16.mxu0 0
  %4052 = vmatpush2.bf16.msra.mxu0 0
  %4053 = vmatprep.subr.bf16.mxu0 0
  %4054 = vmatpush2.bf16.msra.mxu0 0
  %4055 = vmatprep.subr.bf16.mxu0 0
  %4056 = vmatpush2.bf16.msra.mxu0 0
  %4057 = vmatprep.mubr.bf16.mxu0 0
  %4058 = vmatmul.mubr.bf16.gmra.mxu0 %v3437
  %v4059 = vpop.f32.mrf.mxu0
  %v4060 = vadd.f32 %v3947, %v4059
  %v4061 = vpop.f32.mrf.mxu0
  %v4062 = vadd.f32 %v3949, %v4061
  %v4063 = vpop.f32.mrf.mxu0
  %v4064 = vadd.f32 %v3951, %v4063
  %v4065 = vpop.f32.mrf.mxu0
  %v4066 = vadd.f32 %v3953, %v4065
  %4067 = vmatprep.mubr.bf16.mxu0 0
  %4068 = vmatmul.mubr.bf16.gmra.mxu0 %v3440
  %v4069 = vpop.f32.mrf.mxu0
  %v4070 = vadd.f32 %v3957, %v4069
  %v4071 = vpop.f32.mrf.mxu0
  %v4072 = vadd.f32 %v3959, %v4071
  %v4073 = vpop.f32.mrf.mxu0
  %v4074 = vadd.f32 %v3961, %v4073
  %v4075 = vpop.f32.mrf.mxu0
  %v4076 = vadd.f32 %v3963, %v4075
  %4077 = vmatprep.mubr.bf16.mxu0 0
  %4078 = vmatmul.mubr.bf16.gmra.mxu0 %v3443
  %v4079 = vpop.f32.mrf.mxu0
  %v4080 = vadd.f32 %v3967, %v4079
  %v4081 = vpop.f32.mrf.mxu0
  %v4082 = vadd.f32 %v3969, %v4081
  %v4083 = vpop.f32.mrf.mxu0
  %v4084 = vadd.f32 %v3971, %v4083
  %v4085 = vpop.f32.mrf.mxu0
  %v4086 = vadd.f32 %v3973, %v4085
  %4087 = vmatprep.mubr.bf16.mxu0 0
  %4088 = vmatmul.mubr.bf16.gmra.mxu0 %v3446
  %v4089 = vpop.f32.mrf.mxu0
  %v4090 = vadd.f32 %v3977, %v4089
  %v4091 = vpop.f32.mrf.mxu0
  %v4092 = vadd.f32 %v3979, %v4091
  %v4093 = vpop.f32.mrf.mxu0
  %v4094 = vadd.f32 %v3981, %v4093
  %v4095 = vpop.f32.mrf.mxu0
  %v4096 = vadd.f32 %v3983, %v4095
  %4097 = vmatprep.mubr.bf16.mxu0 0
  %4098 = vmatmul.mubr.bf16.gmra.mxu0 %v3449
  %v4099 = vpop.f32.mrf.mxu0
  %v4100 = vadd.f32 %v3987, %v4099
  %v4101 = vpop.f32.mrf.mxu0
  %v4102 = vadd.f32 %v3989, %v4101
  %v4103 = vpop.f32.mrf.mxu0
  %v4104 = vadd.f32 %v3991, %v4103
  %v4105 = vpop.f32.mrf.mxu0
  %v4106 = vadd.f32 %v3993, %v4105
  %4107 = vmatprep.mubr.bf16.mxu0 0
  %4108 = vmatmul.mubr.bf16.gmra.mxu0 %v3452
  %v4109 = vpop.f32.mrf.mxu0
  %v4110 = vadd.f32 %v3997, %v4109
  %v4111 = vpop.f32.mrf.mxu0
  %v4112 = vadd.f32 %v3999, %v4111
  %v4113 = vpop.f32.mrf.mxu0
  %v4114 = vadd.f32 %v4001, %v4113
  %v4115 = vpop.f32.mrf.mxu0
  %v4116 = vadd.f32 %v4003, %v4115
  %4117 = vmatprep.mubr.bf16.mxu0 0
  %4118 = vmatmul.mubr.bf16.gmra.mxu0 %v3455
  %v4119 = vpop.f32.mrf.mxu0
  %v4120 = vadd.f32 %v4007, %v4119
  %v4121 = vpop.f32.mrf.mxu0
  %v4122 = vadd.f32 %v4009, %v4121
  %v4123 = vpop.f32.mrf.mxu0
  %v4124 = vadd.f32 %v4011, %v4123
  %v4125 = vpop.f32.mrf.mxu0
  %v4126 = vadd.f32 %v4013, %v4125
  %4127 = vmatprep.mubr.bf16.mxu0 0
  %4128 = vmatmul.mubr.bf16.gmra.mxu0 %v3458
  %v4129 = vpop.f32.mrf.mxu0
  %v4130 = vadd.f32 %v4017, %v4129
  %v4131 = vpop.f32.mrf.mxu0
  %v4132 = vadd.f32 %v4019, %v4131
  %v4133 = vpop.f32.mrf.mxu0
  %v4134 = vadd.f32 %v4021, %v4133
  %v4135 = vpop.f32.mrf.mxu0
  %v4136 = vadd.f32 %v4023, %v4135
  %4137 = vdwg.mxu0
  %v4138 = vsub.f32 0.0, %v3721
  %v4139 = vsub.f32 0.0, %v3723
  %v4140 = vsub.f32 0.0, %v4060
  %v4141 = vsub.f32 0.0, %v4062
  %v4142 = vsub.f32 0.0, %v3725
  %v4143 = vsub.f32 0.0, %v3727
  %v4144 = vsub.f32 0.0, %v4064
  %v4145 = vsub.f32 0.0, %v4066
  %v4146 = vsub.f32 0.0, %v3731
  %v4147 = vsub.f32 0.0, %v3733
  %v4148 = vsub.f32 0.0, %v4070
  %v4149 = vsub.f32 0.0, %v4072
  %v4150 = vsub.f32 0.0, %v3735
  %v4151 = vsub.f32 0.0, %v3737
  %v4152 = vsub.f32 0.0, %v4074
  %v4153 = vsub.f32 0.0, %v4076
  %v4154 = vsub.f32 0.0, %v3741
  %v4155 = vsub.f32 0.0, %v3743
  %v4156 = vsub.f32 0.0, %v4080
  %v4157 = vsub.f32 0.0, %v4082
  %v4158 = vsub.f32 0.0, %v3745
  %v4159 = vsub.f32 0.0, %v3747
  %v4160 = vsub.f32 0.0, %v4084
  %v4161 = vsub.f32 0.0, %v4086
  %v4162 = vsub.f32 0.0, %v3751
  %v4163 = vsub.f32 0.0, %v3753
  %v4164 = vsub.f32 0.0, %v4090
  %v4165 = vsub.f32 0.0, %v4092
  %v4166 = vsub.f32 0.0, %v3755
  %v4167 = vsub.f32 0.0, %v3757
  %v4168 = vsub.f32 0.0, %v4094
  %v4169 = vsub.f32 0.0, %v4096
  %v4170 = vsub.f32 0.0, %v3761
  %v4171 = vsub.f32 0.0, %v3763
  %v4172 = vsub.f32 0.0, %v4100
  %v4173 = vsub.f32 0.0, %v4102
  %v4174 = vsub.f32 0.0, %v3765
  %v4175 = vsub.f32 0.0, %v3767
  %v4176 = vsub.f32 0.0, %v4104
  %v4177 = vsub.f32 0.0, %v4106
  %v4178 = vsub.f32 0.0, %v3771
  %v4179 = vsub.f32 0.0, %v3773
  %v4180 = vsub.f32 0.0, %v4110
  %v4181 = vsub.f32 0.0, %v4112
  %v4182 = vsub.f32 0.0, %v3775
  %v4183 = vsub.f32 0.0, %v3777
  %v4184 = vsub.f32 0.0, %v4114
  %v4185 = vsub.f32 0.0, %v4116
  %v4186 = vsub.f32 0.0, %v3781
  %v4187 = vsub.f32 0.0, %v3783
  %v4188 = vsub.f32 0.0, %v4120
  %v4189 = vsub.f32 0.0, %v4122
  %v4190 = vsub.f32 0.0, %v3785
  %v4191 = vsub.f32 0.0, %v3787
  %v4192 = vsub.f32 0.0, %v4124
  %v4193 = vsub.f32 0.0, %v4126
  %v4194 = vsub.f32 0.0, %v3791
  %v4195 = vsub.f32 0.0, %v3793
  %v4196 = vsub.f32 0.0, %v4130
  %v4197 = vsub.f32 0.0, %v4132
  %v4198 = vsub.f32 0.0, %v3795
  %v4199 = vsub.f32 0.0, %v3797
  %v4200 = vsub.f32 0.0, %v4134
  %v4201 = vsub.f32 0.0, %v4136
  %v4202 = vmul.f32 %v4138, 1.442695
  %v4203 = vpow.pop %v4202
  %v4204 = vmul.f32 %v4139, 1.442695
  %v4205 = vpow.pop %v4204
  %v4206 = vmul.f32 %v4140, 1.442695
  %v4207 = vpow.pop %v4206
  %v4208 = vmul.f32 %v4141, 1.442695
  %v4209 = vpow.pop %v4208
  %v4210 = vmul.f32 %v4142, 1.442695
  %v4211 = vpow.pop %v4210
  %v4212 = vmul.f32 %v4143, 1.442695
  %v4213 = vpow.pop %v4212
  %v4214 = vmul.f32 %v4144, 1.442695
  %v4215 = vpow.pop %v4214
  %v4216 = vmul.f32 %v4145, 1.442695
  %v4217 = vpow.pop %v4216
  %v4218 = vmul.f32 %v4146, 1.442695
  %v4219 = vpow.pop %v4218
  %v4220 = vmul.f32 %v4147, 1.442695
  %v4221 = vpow.pop %v4220
  %v4222 = vmul.f32 %v4148, 1.442695
  %v4223 = vpow.pop %v4222
  %v4224 = vmul.f32 %v4149, 1.442695
  %v4225 = vpow.pop %v4224
  %v4226 = vmul.f32 %v4150, 1.442695
  %v4227 = vpow.pop %v4226
  %v4228 = vmul.f32 %v4151, 1.442695
  %v4229 = vpow.pop %v4228
  %v4230 = vmul.f32 %v4152, 1.442695
  %v4231 = vpow.pop %v4230
  %v4232 = vmul.f32 %v4153, 1.442695
  %v4233 = vpow.pop %v4232
  %v4234 = vmul.f32 %v4154, 1.442695
  %v4235 = vpow.pop %v4234
  %v4236 = vmul.f32 %v4155, 1.442695
  %v4237 = vpow.pop %v4236
  %v4238 = vmul.f32 %v4156, 1.442695
  %v4239 = vpow.pop %v4238
  %v4240 = vmul.f32 %v4157, 1.442695
  %v4241 = vpow.pop %v4240
  %v4242 = vmul.f32 %v4158, 1.442695
  %v4243 = vpow.pop %v4242
  %v4244 = vmul.f32 %v4159, 1.442695
  %v4245 = vpow.pop %v4244
  %v4246 = vmul.f32 %v4160, 1.442695
  %v4247 = vpow.pop %v4246
  %v4248 = vmul.f32 %v4161, 1.442695
  %v4249 = vpow.pop %v4248
  %v4250 = vmul.f32 %v4162, 1.442695
  %v4251 = vpow.pop %v4250
  %v4252 = vmul.f32 %v4163, 1.442695
  %v4253 = vpow.pop %v4252
  %v4254 = vmul.f32 %v4164, 1.442695
  %v4255 = vpow.pop %v4254
  %v4256 = vmul.f32 %v4165, 1.442695
  %v4257 = vpow.pop %v4256
  %v4258 = vmul.f32 %v4166, 1.442695
  %v4259 = vpow.pop %v4258
  %v4260 = vmul.f32 %v4167, 1.442695
  %v4261 = vpow.pop %v4260
  %v4262 = vmul.f32 %v4168, 1.442695
  %v4263 = vpow.pop %v4262
  %v4264 = vmul.f32 %v4169, 1.442695
  %v4265 = vpow.pop %v4264
  %v4266 = vmul.f32 %v4170, 1.442695
  %v4267 = vpow.pop %v4266
  %v4268 = vmul.f32 %v4171, 1.442695
  %v4269 = vpow.pop %v4268
  %v4270 = vmul.f32 %v4172, 1.442695
  %v4271 = vpow.pop %v4270
  %v4272 = vmul.f32 %v4173, 1.442695
  %v4273 = vpow.pop %v4272
  %v4274 = vmul.f32 %v4174, 1.442695
  %v4275 = vpow.pop %v4274
  %v4276 = vmul.f32 %v4175, 1.442695
  %v4277 = vpow.pop %v4276
  %v4278 = vmul.f32 %v4176, 1.442695
  %v4279 = vpow.pop %v4278
  %v4280 = vmul.f32 %v4177, 1.442695
  %v4281 = vpow.pop %v4280
  %v4282 = vmul.f32 %v4178, 1.442695
  %v4283 = vpow.pop %v4282
  %v4284 = vmul.f32 %v4179, 1.442695
  %v4285 = vpow.pop %v4284
  %v4286 = vmul.f32 %v4180, 1.442695
  %v4287 = vpow.pop %v4286
  %v4288 = vmul.f32 %v4181, 1.442695
  %v4289 = vpow.pop %v4288
  %v4290 = vmul.f32 %v4182, 1.442695
  %v4291 = vpow.pop %v4290
  %v4292 = vmul.f32 %v4183, 1.442695
  %v4293 = vpow.pop %v4292
  %v4294 = vmul.f32 %v4184, 1.442695
  %v4295 = vpow.pop %v4294
  %v4296 = vmul.f32 %v4185, 1.442695
  %v4297 = vpow.pop %v4296
  %v4298 = vmul.f32 %v4186, 1.442695
  %v4299 = vpow.pop %v4298
  %v4300 = vmul.f32 %v4187, 1.442695
  %v4301 = vpow.pop %v4300
  %v4302 = vmul.f32 %v4188, 1.442695
  %v4303 = vpow.pop %v4302
  %v4304 = vmul.f32 %v4189, 1.442695
  %v4305 = vpow.pop %v4304
  %v4306 = vmul.f32 %v4190, 1.442695
  %v4307 = vpow.pop %v4306
  %v4308 = vmul.f32 %v4191, 1.442695
  %v4309 = vpow.pop %v4308
  %v4310 = vmul.f32 %v4192, 1.442695
  %v4311 = vpow.pop %v4310
  %v4312 = vmul.f32 %v4193, 1.442695
  %v4313 = vpow.pop %v4312
  %v4314 = vmul.f32 %v4194, 1.442695
  %v4315 = vpow.pop %v4314
  %v4316 = vmul.f32 %v4195, 1.442695
  %v4317 = vpow.pop %v4316
  %v4318 = vmul.f32 %v4196, 1.442695
  %v4319 = vpow.pop %v4318
  %v4320 = vmul.f32 %v4197, 1.442695
  %v4321 = vpow.pop %v4320
  %v4322 = vmul.f32 %v4198, 1.442695
  %v4323 = vpow.pop %v4322
  %v4324 = vmul.f32 %v4199, 1.442695
  %v4325 = vpow.pop %v4324
  %v4326 = vmul.f32 %v4200, 1.442695
  %v4327 = vpow.pop %v4326
  %v4328 = vmul.f32 %v4201, 1.442695
  %v4329 = vpow.pop %v4328
  %v4330 = vadd.f32 %v4203, 1.0
  %v4331 = vadd.f32 %v4205, 1.0
  %v4332 = vadd.f32 %v4207, 1.0
  %v4333 = vadd.f32 %v4209, 1.0
  %v4334 = vadd.f32 %v4211, 1.0
  %v4335 = vadd.f32 %v4213, 1.0
  %v4336 = vadd.f32 %v4215, 1.0
  %v4337 = vadd.f32 %v4217, 1.0
  %v4338 = vadd.f32 %v4219, 1.0
  %v4339 = vadd.f32 %v4221, 1.0
  %v4340 = vadd.f32 %v4223, 1.0
  %v4341 = vadd.f32 %v4225, 1.0
  %v4342 = vadd.f32 %v4227, 1.0
  %v4343 = vadd.f32 %v4229, 1.0
  %v4344 = vadd.f32 %v4231, 1.0
  %v4345 = vadd.f32 %v4233, 1.0
  %v4346 = vadd.f32 %v4235, 1.0
  %v4347 = vadd.f32 %v4237, 1.0
  %v4348 = vadd.f32 %v4239, 1.0
  %v4349 = vadd.f32 %v4241, 1.0
  %v4350 = vadd.f32 %v4243, 1.0
  %v4351 = vadd.f32 %v4245, 1.0
  %v4352 = vadd.f32 %v4247, 1.0
  %v4353 = vadd.f32 %v4249, 1.0
  %v4354 = vadd.f32 %v4251, 1.0
  %v4355 = vadd.f32 %v4253, 1.0
  %v4356 = vadd.f32 %v4255, 1.0
  %v4357 = vadd.f32 %v4257, 1.0
  %v4358 = vadd.f32 %v4259, 1.0
  %v4359 = vadd.f32 %v4261, 1.0
  %v4360 = vadd.f32 %v4263, 1.0
  %v4361 = vadd.f32 %v4265, 1.0
  %v4362 = vadd.f32 %v4267, 1.0
  %v4363 = vadd.f32 %v4269, 1.0
  %v4364 = vadd.f32 %v4271, 1.0
  %v4365 = vadd.f32 %v4273, 1.0
  %v4366 = vadd.f32 %v4275, 1.0
  %v4367 = vadd.f32 %v4277, 1.0
  %v4368 = vadd.f32 %v4279, 1.0
  %v4369 = vadd.f32 %v4281, 1.0
  %v4370 = vadd.f32 %v4283, 1.0
  %v4371 = vadd.f32 %v4285, 1.0
  %v4372 = vadd.f32 %v4287, 1.0
  %v4373 = vadd.f32 %v4289, 1.0
  %v4374 = vadd.f32 %v4291, 1.0
  %v4375 = vadd.f32 %v4293, 1.0
  %v4376 = vadd.f32 %v4295, 1.0
  %v4377 = vadd.f32 %v4297, 1.0
  %v4378 = vadd.f32 %v4299, 1.0
  %v4379 = vadd.f32 %v4301, 1.0
  %v4380 = vadd.f32 %v4303, 1.0
  %v4381 = vadd.f32 %v4305, 1.0
  %v4382 = vadd.f32 %v4307, 1.0
  %v4383 = vadd.f32 %v4309, 1.0
  %v4384 = vadd.f32 %v4311, 1.0
  %v4385 = vadd.f32 %v4313, 1.0
  %v4386 = vadd.f32 %v4315, 1.0
  %v4387 = vadd.f32 %v4317, 1.0
  %v4388 = vadd.f32 %v4319, 1.0
  %v4389 = vadd.f32 %v4321, 1.0
  %v4390 = vadd.f32 %v4323, 1.0
  %v4391 = vadd.f32 %v4325, 1.0
  %v4392 = vadd.f32 %v4327, 1.0
  %v4393 = vadd.f32 %v4329, 1.0
  %v4394 = vrcp.pop %v4330
  %v4395 = vrcp.pop %v4331
  %v4396 = vrcp.pop %v4332
  %v4397 = vrcp.pop %v4333
  %v4398 = vrcp.pop %v4334
  %v4399 = vrcp.pop %v4335
  %v4400 = vrcp.pop %v4336
  %v4401 = vrcp.pop %v4337
  %v4402 = vrcp.pop %v4338
  %v4403 = vrcp.pop %v4339
  %v4404 = vrcp.pop %v4340
  %v4405 = vrcp.pop %v4341
  %v4406 = vrcp.pop %v4342
  %v4407 = vrcp.pop %v4343
  %v4408 = vrcp.pop %v4344
  %v4409 = vrcp.pop %v4345
  %v4410 = vrcp.pop %v4346
  %v4411 = vrcp.pop %v4347
  %v4412 = vrcp.pop %v4348
  %v4413 = vrcp.pop %v4349
  %v4414 = vrcp.pop %v4350
  %v4415 = vrcp.pop %v4351
  %v4416 = vrcp.pop %v4352
  %v4417 = vrcp.pop %v4353
  %v4418 = vrcp.pop %v4354
  %v4419 = vrcp.pop %v4355
  %v4420 = vrcp.pop %v4356
  %v4421 = vrcp.pop %v4357
  %v4422 = vrcp.pop %v4358
  %v4423 = vrcp.pop %v4359
  %v4424 = vrcp.pop %v4360
  %v4425 = vrcp.pop %v4361
  %v4426 = vrcp.pop %v4362
  %v4427 = vrcp.pop %v4363
  %v4428 = vrcp.pop %v4364
  %v4429 = vrcp.pop %v4365
  %v4430 = vrcp.pop %v4366
  %v4431 = vrcp.pop %v4367
  %v4432 = vrcp.pop %v4368
  %v4433 = vrcp.pop %v4369
  %v4434 = vrcp.pop %v4370
  %v4435 = vrcp.pop %v4371
  %v4436 = vrcp.pop %v4372
  %v4437 = vrcp.pop %v4373
  %v4438 = vrcp.pop %v4374
  %v4439 = vrcp.pop %v4375
  %v4440 = vrcp.pop %v4376
  %v4441 = vrcp.pop %v4377
  %v4442 = vrcp.pop %v4378
  %v4443 = vrcp.pop %v4379
  %v4444 = vrcp.pop %v4380
  %v4445 = vrcp.pop %v4381
  %v4446 = vrcp.pop %v4382
  %v4447 = vrcp.pop %v4383
  %v4448 = vrcp.pop %v4384
  %v4449 = vrcp.pop %v4385
  %v4450 = vrcp.pop %v4386
  %v4451 = vrcp.pop %v4387
  %v4452 = vrcp.pop %v4388
  %v4453 = vrcp.pop %v4389
  %v4454 = vrcp.pop %v4390
  %v4455 = vrcp.pop %v4391
  %v4456 = vrcp.pop %v4392
  %v4457 = vrcp.pop %v4393
  %v4458 = vmul.f32 %v3721, %v4394
  %v4459 = vmul.f32 %v3723, %v4395
  %v4460 = vmul.f32 %v4060, %v4396
  %v4461 = vmul.f32 %v4062, %v4397
  %v4462 = vmul.f32 %v3725, %v4398
  %v4463 = vmul.f32 %v3727, %v4399
  %v4464 = vmul.f32 %v4064, %v4400
  %v4465 = vmul.f32 %v4066, %v4401
  %v4466 = vmul.f32 %v3731, %v4402
  %v4467 = vmul.f32 %v3733, %v4403
  %v4468 = vmul.f32 %v4070, %v4404
  %v4469 = vmul.f32 %v4072, %v4405
  %v4470 = vmul.f32 %v3735, %v4406
  %v4471 = vmul.f32 %v3737, %v4407
  %v4472 = vmul.f32 %v4074, %v4408
  %v4473 = vmul.f32 %v4076, %v4409
  %v4474 = vmul.f32 %v3741, %v4410
  %v4475 = vmul.f32 %v3743, %v4411
  %v4476 = vmul.f32 %v4080, %v4412
  %v4477 = vmul.f32 %v4082, %v4413
  %v4478 = vmul.f32 %v3745, %v4414
  %v4479 = vmul.f32 %v3747, %v4415
  %v4480 = vmul.f32 %v4084, %v4416
  %v4481 = vmul.f32 %v4086, %v4417
  %v4482 = vmul.f32 %v3751, %v4418
  %v4483 = vmul.f32 %v3753, %v4419
  %v4484 = vmul.f32 %v4090, %v4420
  %v4485 = vmul.f32 %v4092, %v4421
  %v4486 = vmul.f32 %v3755, %v4422
  %v4487 = vmul.f32 %v3757, %v4423
  %v4488 = vmul.f32 %v4094, %v4424
  %v4489 = vmul.f32 %v4096, %v4425
  %v4490 = vmul.f32 %v3761, %v4426
  %v4491 = vmul.f32 %v3763, %v4427
  %v4492 = vmul.f32 %v4100, %v4428
  %v4493 = vmul.f32 %v4102, %v4429
  %v4494 = vmul.f32 %v3765, %v4430
  %v4495 = vmul.f32 %v3767, %v4431
  %v4496 = vmul.f32 %v4104, %v4432
  %v4497 = vmul.f32 %v4106, %v4433
  %v4498 = vmul.f32 %v3771, %v4434
  %v4499 = vmul.f32 %v3773, %v4435
  %v4500 = vmul.f32 %v4110, %v4436
  %v4501 = vmul.f32 %v4112, %v4437
  %v4502 = vmul.f32 %v3775, %v4438
  %v4503 = vmul.f32 %v3777, %v4439
  %v4504 = vmul.f32 %v4114, %v4440
  %v4505 = vmul.f32 %v4116, %v4441
  %v4506 = vmul.f32 %v3781, %v4442
  %v4507 = vmul.f32 %v3783, %v4443
  %v4508 = vmul.f32 %v4120, %v4444
  %v4509 = vmul.f32 %v4122, %v4445
  %v4510 = vmul.f32 %v3785, %v4446
  %v4511 = vmul.f32 %v3787, %v4447
  %v4512 = vmul.f32 %v4124, %v4448
  %v4513 = vmul.f32 %v4126, %v4449
  %v4514 = vmul.f32 %v3791, %v4450
  %v4515 = vmul.f32 %v3793, %v4451
  %v4516 = vmul.f32 %v4130, %v4452
  %v4517 = vmul.f32 %v4132, %v4453
  %v4518 = vmul.f32 %v3795, %v4454
  %v4519 = vmul.f32 %v3797, %v4455
  %v4520 = vmul.f32 %v4134, %v4456
  %v4521 = vmul.f32 %v4136, %v4457
  %v4522 = vpack.c.bf16 %v4462, %v4458
  %v4523 = vpack.c.bf16 %v4463, %v4459
  %v4524 = vpack.c.bf16 %v4464, %v4460
  %v4525 = vpack.c.bf16 %v4465, %v4461
  %v4526 = vpack.c.bf16 %v4470, %v4466
  %v4527 = vpack.c.bf16 %v4471, %v4467
  %v4528 = vpack.c.bf16 %v4472, %v4468
  %v4529 = vpack.c.bf16 %v4473, %v4469
  %v4530 = vpack.c.bf16 %v4478, %v4474
  %v4531 = vpack.c.bf16 %v4479, %v4475
  %v4532 = vpack.c.bf16 %v4480, %v4476
  %v4533 = vpack.c.bf16 %v4481, %v4477
  %v4534 = vpack.c.bf16 %v4486, %v4482
  %v4535 = vpack.c.bf16 %v4487, %v4483
  %v4536 = vpack.c.bf16 %v4488, %v4484
  %v4537 = vpack.c.bf16 %v4489, %v4485
  %v4538 = vpack.c.bf16 %v4494, %v4490
  %v4539 = vpack.c.bf16 %v4495, %v4491
  %v4540 = vpack.c.bf16 %v4496, %v4492
  %v4541 = vpack.c.bf16 %v4497, %v4493
  %v4542 = vpack.c.bf16 %v4502, %v4498
  %v4543 = vpack.c.bf16 %v4503, %v4499
  %v4544 = vpack.c.bf16 %v4504, %v4500
  %v4545 = vpack.c.bf16 %v4505, %v4501
  %v4546 = vpack.c.bf16 %v4510, %v4506
  %v4547 = vpack.c.bf16 %v4511, %v4507
  %v4548 = vpack.c.bf16 %v4512, %v4508
  %v4549 = vpack.c.bf16 %v4513, %v4509
  %v4550 = vpack.c.bf16 %v4518, %v4514
  %v4551 = vpack.c.bf16 %v4519, %v4515
  %v4552 = vpack.c.bf16 %v4520, %v4516
  %v4553 = vpack.c.bf16 %v4521, %v4517
  %v4554 = vld [vmem:[%s5] sm:$0xf]
  %v4555 = vld [vmem:[%s5 + $0x4] sm:$0xf]
  %v4556 = vld [vmem:[%s5 + $0x8] sm:$0xf]
  %v4557 = vld [vmem:[%s5 + $0xc] sm:$0xf]
  %v4558 = vld [vmem:[%s5 + $0x10] sm:$0xf]
  %v4559 = vld [vmem:[%s5 + $0x14] sm:$0xf]
  %v4560 = vld [vmem:[%s5 + $0x18] sm:$0xf]
  %v4561 = vld [vmem:[%s5 + $0x1c] sm:$0xf]
  %v4562 = vld [vmem:[%s5 + $0x20] sm:$0xf]
  %v4563 = vld [vmem:[%s5 + $0x24] sm:$0xf]
  %v4564 = vld [vmem:[%s5 + $0x28] sm:$0xf]
  %v4565 = vld [vmem:[%s5 + $0x2c] sm:$0xf]
  %v4566 = vld [vmem:[%s5 + $0x30] sm:$0xf]
  %v4567 = vld [vmem:[%s5 + $0x34] sm:$0xf]
  %v4568 = vld [vmem:[%s5 + $0x38] sm:$0xf]
  %v4569 = vld [vmem:[%s5 + $0x3c] sm:$0xf]
  %v4570 = vld [vmem:[%s5 + $0x40] sm:$0xf]
  %v4571 = vld [vmem:[%s5 + $0x44] sm:$0xf]
  %v4572 = vld [vmem:[%s5 + $0x48] sm:$0xf]
  %v4573 = vld [vmem:[%s5 + $0x4c] sm:$0xf]
  %v4574 = vld [vmem:[%s5 + $0x50] sm:$0xf]
  %v4575 = vld [vmem:[%s5 + $0x54] sm:$0xf]
  %v4576 = vld [vmem:[%s5 + $0x58] sm:$0xf]
  %v4577 = vld [vmem:[%s5 + $0x5c] sm:$0xf]
  %v4578 = vld [vmem:[%s5 + $0x60] sm:$0xf]
  %v4579 = vld [vmem:[%s5 + $0x64] sm:$0xf]
  %v4580 = vld [vmem:[%s5 + $0x68] sm:$0xf]
  %v4581 = vld [vmem:[%s5 + $0x6c] sm:$0xf]
  %v4582 = vld [vmem:[%s5 + $0x70] sm:$0xf]
  %v4583 = vld [vmem:[%s5 + $0x74] sm:$0xf]
  %v4584 = vld [vmem:[%s5 + $0x78] sm:$0xf]
  %v4585 = vld [vmem:[%s5 + $0x7c] sm:$0xf]
  %v4586 = vld [vmem:[%s5 + $0x80] sm:$0xf]
  %v4587 = vld [vmem:[%s5 + $0x84] sm:$0xf]
  %v4588 = vld [vmem:[%s5 + $0x88] sm:$0xf]
  %v4589 = vld [vmem:[%s5 + $0x8c] sm:$0xf]
  %v4590 = vld [vmem:[%s5 + $0x90] sm:$0xf]
  %v4591 = vld [vmem:[%s5 + $0x94] sm:$0xf]
  %v4592 = vld [vmem:[%s5 + $0x98] sm:$0xf]
  %v4593 = vld [vmem:[%s5 + $0x9c] sm:$0xf]
  %v4594 = vld [vmem:[%s5 + $0xa0] sm:$0xf]
  %v4595 = vld [vmem:[%s5 + $0xa4] sm:$0xf]
  %v4596 = vld [vmem:[%s5 + $0xa8] sm:$0xf]
  %v4597 = vld [vmem:[%s5 + $0xac] sm:$0xf]
  %v4598 = vld [vmem:[%s5 + $0xb0] sm:$0xf]
  %v4599 = vld [vmem:[%s5 + $0xb4] sm:$0xf]
  %v4600 = vld [vmem:[%s5 + $0xb8] sm:$0xf]
  %v4601 = vld [vmem:[%s5 + $0xbc] sm:$0xf]
  %v4602 = vld [vmem:[%s5 + $0xc0] sm:$0xf]
  %v4603 = vld [vmem:[%s5 + $0xc4] sm:$0xf]
  %v4604 = vld [vmem:[%s5 + $0xc8] sm:$0xf]
  %v4605 = vld [vmem:[%s5 + $0xcc] sm:$0xf]
  %v4606 = vld [vmem:[%s5 + $0xd0] sm:$0xf]
  %v4607 = vld [vmem:[%s5 + $0xd4] sm:$0xf]
  %v4608 = vld [vmem:[%s5 + $0xd8] sm:$0xf]
  %v4609 = vld [vmem:[%s5 + $0xdc] sm:$0xf]
  %v4610 = vld [vmem:[%s5 + $0xe0] sm:$0xf]
  %v4611 = vld [vmem:[%s5 + $0xe4] sm:$0xf]
  %v4612 = vld [vmem:[%s5 + $0xe8] sm:$0xf]
  %v4613 = vld [vmem:[%s5 + $0xec] sm:$0xf]
  %v4614 = vld [vmem:[%s5 + $0xf0] sm:$0xf]
  %v4615 = vld [vmem:[%s5 + $0xf4] sm:$0xf]
  %v4616 = vld [vmem:[%s5 + $0xf8] sm:$0xf]
  %v4617 = vld [vmem:[%s5 + $0xfc] sm:$0xf]
  %v4682 = vunpack.c.l.b16 %v4554
  %v4683 = vunpack.c.l.b16 %v4555
  %v4684 = vunpack.c.l.b16 %v4556
  %v4685 = vunpack.c.l.b16 %v4557
  %v4686 = vunpack.c.l.b16 %v4558
  %v4687 = vunpack.c.l.b16 %v4559
  %v4688 = vunpack.c.l.b16 %v4560
  %v4689 = vunpack.c.l.b16 %v4561
  %v4690 = vunpack.c.l.b16 %v4562
  %v4691 = vunpack.c.l.b16 %v4563
  %v4692 = vunpack.c.l.b16 %v4564
  %v4693 = vunpack.c.l.b16 %v4565
  %v4694 = vunpack.c.l.b16 %v4566
  %v4695 = vunpack.c.l.b16 %v4567
  %v4696 = vunpack.c.l.b16 %v4568
  %v4697 = vunpack.c.l.b16 %v4569
  %v4698 = vunpack.c.l.b16 %v4570
  %v4699 = vunpack.c.l.b16 %v4571
  %v4700 = vunpack.c.l.b16 %v4572
  %v4701 = vunpack.c.l.b16 %v4573
  %v4702 = vunpack.c.l.b16 %v4574
  %v4703 = vunpack.c.l.b16 %v4575
  %v4704 = vunpack.c.l.b16 %v4576
  %v4705 = vunpack.c.l.b16 %v4577
  %v4706 = vunpack.c.l.b16 %v4578
  %v4707 = vunpack.c.l.b16 %v4579
  %v4708 = vunpack.c.l.b16 %v4580
  %v4709 = vunpack.c.l.b16 %v4581
  %v4710 = vunpack.c.l.b16 %v4582
  %v4711 = vunpack.c.l.b16 %v4583
  %v4712 = vunpack.c.l.b16 %v4584
  %v4713 = vunpack.c.l.b16 %v4585
  %v4714 = vunpack.c.l.b16 %v4586
  %v4715 = vunpack.c.l.b16 %v4587
  %v4716 = vunpack.c.l.b16 %v4588
  %v4717 = vunpack.c.l.b16 %v4589
  %v4718 = vunpack.c.l.b16 %v4590
  %v4719 = vunpack.c.l.b16 %v4591
  %v4720 = vunpack.c.l.b16 %v4592
  %v4721 = vunpack.c.l.b16 %v4593
  %v4722 = vunpack.c.l.b16 %v4594
  %v4723 = vunpack.c.l.b16 %v4595
  %v4724 = vunpack.c.l.b16 %v4596
  %v4725 = vunpack.c.l.b16 %v4597
  %v4726 = vunpack.c.l.b16 %v4598
  %v4727 = vunpack.c.l.b16 %v4599
  %v4728 = vunpack.c.l.b16 %v4600
  %v4729 = vunpack.c.l.b16 %v4601
  %v4730 = vunpack.c.l.b16 %v4602
  %v4731 = vunpack.c.l.b16 %v4603
  %v4732 = vunpack.c.l.b16 %v4604
  %v4733 = vunpack.c.l.b16 %v4605
  %v4734 = vunpack.c.l.b16 %v4606
  %v4735 = vunpack.c.l.b16 %v4607
  %v4736 = vunpack.c.l.b16 %v4608
  %v4737 = vunpack.c.l.b16 %v4609
  %v4738 = vunpack.c.l.b16 %v4610
  %v4739 = vunpack.c.l.b16 %v4611
  %v4740 = vunpack.c.l.b16 %v4612
  %v4741 = vunpack.c.l.b16 %v4613
  %v4742 = vunpack.c.l.b16 %v4614
  %v4743 = vunpack.c.l.b16 %v4615
  %v4744 = vunpack.c.l.b16 %v4616
  %v4745 = vunpack.c.l.b16 %v4617
  %v4746 = vpack.c.b16 %v4683, %v4682
  %v4747 = vpack.c.b16 %v4685, %v4684
  %v4748 = vpack.c.b16 %v4687, %v4686
  %v4749 = vpack.c.b16 %v4689, %v4688
  %v4750 = vpack.c.b16 %v4691, %v4690
  %v4751 = vpack.c.b16 %v4693, %v4692
  %v4752 = vpack.c.b16 %v4695, %v4694
  %v4753 = vpack.c.b16 %v4697, %v4696
  %v4754 = vpack.c.b16 %v4699, %v4698
  %v4755 = vpack.c.b16 %v4701, %v4700
  %v4756 = vpack.c.b16 %v4703, %v4702
  %v4757 = vpack.c.b16 %v4705, %v4704
  %v4758 = vpack.c.b16 %v4707, %v4706
  %v4759 = vpack.c.b16 %v4709, %v4708
  %v4760 = vpack.c.b16 %v4711, %v4710
  %v4761 = vpack.c.b16 %v4713, %v4712
  %v4762 = vpack.c.b16 %v4715, %v4714
  %v4763 = vpack.c.b16 %v4717, %v4716
  %v4764 = vpack.c.b16 %v4719, %v4718
  %v4765 = vpack.c.b16 %v4721, %v4720
  %v4766 = vpack.c.b16 %v4723, %v4722
  %v4767 = vpack.c.b16 %v4725, %v4724
  %v4768 = vpack.c.b16 %v4727, %v4726
  %v4769 = vpack.c.b16 %v4729, %v4728
  %v4770 = vpack.c.b16 %v4731, %v4730
  %v4771 = vpack.c.b16 %v4733, %v4732
  %v4772 = vpack.c.b16 %v4735, %v4734
  %v4773 = vpack.c.b16 %v4737, %v4736
  %v4774 = vpack.c.b16 %v4739, %v4738
  %v4775 = vpack.c.b16 %v4741, %v4740
  %v4776 = vpack.c.b16 %v4743, %v4742
  %v4777 = vpack.c.b16 %v4745, %v4744
  %4810 = vmatprep.subr.bf16.mxu0 0
  %4811 = vmatpush1.bf16.msra.mxu0 %v4753
  %4812 = vmatprep.subr.bf16.mxu0 0
  %4813 = vmatpush1.bf16.msra.mxu0 %v4752
  %4814 = vmatprep.subr.bf16.mxu0 0
  %4815 = vmatpush1.bf16.msra.mxu0 %v4751
  %4816 = vmatprep.subr.bf16.mxu0 0
  %4817 = vmatpush1.bf16.msra.mxu0 %v4750
  %4818 = vmatprep.subr.bf16.mxu0 0
  %4819 = vmatpush1.bf16.msra.mxu0 %v4749
  %4820 = vmatprep.subr.bf16.mxu0 0
  %4821 = vmatpush1.bf16.msra.mxu0 %v4748
  %4822 = vmatprep.subr.bf16.mxu0 0
  %4823 = vmatpush1.bf16.msra.mxu0 %v4747
  %4824 = vmatprep.subr.bf16.mxu0 0
  %4825 = vmatpush1.bf16.msra.mxu0 %v4746
  %4826 = vmatprep.subr.bf16.mxu0 0
  %4827 = vmatpush2.bf16.msra.mxu0 %v4761
  %4828 = vmatprep.subr.bf16.mxu0 0
  %4829 = vmatpush2.bf16.msra.mxu0 %v4760
  %4830 = vmatprep.subr.bf16.mxu0 0
  %4831 = vmatpush2.bf16.msra.mxu0 %v4759
  %4832 = vmatprep.subr.bf16.mxu0 0
  %4833 = vmatpush2.bf16.msra.mxu0 %v4758
  %4834 = vmatprep.subr.bf16.mxu0 0
  %4835 = vmatpush2.bf16.msra.mxu0 %v4757
  %4836 = vmatprep.subr.bf16.mxu0 0
  %4837 = vmatpush2.bf16.msra.mxu0 %v4756
  %4838 = vmatprep.subr.bf16.mxu0 0
  %4839 = vmatpush2.bf16.msra.mxu0 %v4755
  %4840 = vmatprep.subr.bf16.mxu0 0
  %4841 = vmatpush2.bf16.msra.mxu0 %v4754
  %4842 = vmatprep.mubr.bf16.mxu0 %v4523
  %4843 = vmatmul.mubr.bf16.gmra.mxu0 %v4522
  %v4844 = vpop.f32.mrf.mxu0
  %v4845 = vadd.f32 0.0, %v4844
  %v4846 = vpop.f32.mrf.mxu0
  %v4847 = vpop.f32.mrf.mxu0
  %v4848 = vadd.f32 0.0, %v4847
  %v4849 = vpop.f32.mrf.mxu0
  %4850 = vmatprep.mubr.bf16.mxu0 %v4527
  %4851 = vmatmul.mubr.bf16.gmra.mxu0 %v4526
  %v4852 = vpop.f32.mrf.mxu0
  %v4853 = vadd.f32 0.0, %v4852
  %v4854 = vpop.f32.mrf.mxu0
  %v4855 = vpop.f32.mrf.mxu0
  %v4856 = vadd.f32 0.0, %v4855
  %v4857 = vpop.f32.mrf.mxu0
  %4858 = vmatprep.mubr.bf16.mxu0 %v4531
  %4859 = vmatmul.mubr.bf16.gmra.mxu0 %v4530
  %v4860 = vpop.f32.mrf.mxu0
  %v4861 = vadd.f32 0.0, %v4860
  %v4862 = vpop.f32.mrf.mxu0
  %v4863 = vpop.f32.mrf.mxu0
  %v4864 = vadd.f32 0.0, %v4863
  %v4865 = vpop.f32.mrf.mxu0
  %4866 = vmatprep.mubr.bf16.mxu0 %v4535
  %4867 = vmatmul.mubr.bf16.gmra.mxu0 %v4534
  %v4868 = vpop.f32.mrf.mxu0
  %v4869 = vadd.f32 0.0, %v4868
  %v4870 = vpop.f32.mrf.mxu0
  %v4871 = vpop.f32.mrf.mxu0
  %v4872 = vadd.f32 0.0, %v4871
  %v4873 = vpop.f32.mrf.mxu0
  %4874 = vmatprep.mubr.bf16.mxu0 %v4539
  %4875 = vmatmul.mubr.bf16.gmra.mxu0 %v4538
  %v4876 = vpop.f32.mrf.mxu0
  %v4877 = vadd.f32 0.0, %v4876
  %v4878 = vpop.f32.mrf.mxu0
  %v4879 = vpop.f32.mrf.mxu0
  %v4880 = vadd.f32 0.0, %v4879
  %v4881 = vpop.f32.mrf.mxu0
  %4882 = vmatprep.mubr.bf16.mxu0 %v4543
  %4883 = vmatmul.mubr.bf16.gmra.mxu0 %v4542
  %v4884 = vpop.f32.mrf.mxu0
  %v4885 = vadd.f32 0.0, %v4884
  %v4886 = vpop.f32.mrf.mxu0
  %v4887 = vpop.f32.mrf.mxu0
  %v4888 = vadd.f32 0.0, %v4887
  %v4889 = vpop.f32.mrf.mxu0
  %4890 = vmatprep.mubr.bf16.mxu0 %v4547
  %4891 = vmatmul.mubr.bf16.gmra.mxu0 %v4546
  %v4892 = vpop.f32.mrf.mxu0
  %v4893 = vadd.f32 0.0, %v4892
  %v4894 = vpop.f32.mrf.mxu0
  %v4895 = vpop.f32.mrf.mxu0
  %v4896 = vadd.f32 0.0, %v4895
  %v4897 = vpop.f32.mrf.mxu0
  %4898 = vmatprep.mubr.bf16.mxu0 %v4551
  %4899 = vmatmul.mubr.bf16.gmra.mxu0 %v4550
  %v4900 = vpop.f32.mrf.mxu0
  %v4901 = vadd.f32 0.0, %v4900
  %v4902 = vpop.f32.mrf.mxu0
  %v4903 = vpop.f32.mrf.mxu0
  %v4904 = vadd.f32 0.0, %v4903
  %v4905 = vpop.f32.mrf.mxu0
  %4906 = vdwg.mxu0
  %4907 = vmatprep.subr.bf16.mxu0 0
  %4908 = vmatpush1.bf16.msra.mxu0 %v4769
  %4909 = vmatprep.subr.bf16.mxu0 0
  %4910 = vmatpush1.bf16.msra.mxu0 %v4768
  %4911 = vmatprep.subr.bf16.mxu0 0
  %4912 = vmatpush1.bf16.msra.mxu0 %v4767
  %4913 = vmatprep.subr.bf16.mxu0 0
  %4914 = vmatpush1.bf16.msra.mxu0 %v4766
  %4915 = vmatprep.subr.bf16.mxu0 0
  %4916 = vmatpush1.bf16.msra.mxu0 %v4765
  %4917 = vmatprep.subr.bf16.mxu0 0
  %4918 = vmatpush1.bf16.msra.mxu0 %v4764
  %4919 = vmatprep.subr.bf16.mxu0 0
  %4920 = vmatpush1.bf16.msra.mxu0 %v4763
  %4921 = vmatprep.subr.bf16.mxu0 0
  %4922 = vmatpush1.bf16.msra.mxu0 %v4762
  %4923 = vmatprep.subr.bf16.mxu0 0
  %4924 = vmatpush2.bf16.msra.mxu0 %v4777
  %4925 = vmatprep.subr.bf16.mxu0 0
  %4926 = vmatpush2.bf16.msra.mxu0 %v4776
  %4927 = vmatprep.subr.bf16.mxu0 0
  %4928 = vmatpush2.bf16.msra.mxu0 %v4775
  %4929 = vmatprep.subr.bf16.mxu0 0
  %4930 = vmatpush2.bf16.msra.mxu0 %v4774
  %4931 = vmatprep.subr.bf16.mxu0 0
  %4932 = vmatpush2.bf16.msra.mxu0 %v4773
  %4933 = vmatprep.subr.bf16.mxu0 0
  %4934 = vmatpush2.bf16.msra.mxu0 %v4772
  %4935 = vmatprep.subr.bf16.mxu0 0
  %4936 = vmatpush2.bf16.msra.mxu0 %v4771
  %4937 = vmatprep.subr.bf16.mxu0 0
  %4938 = vmatpush2.bf16.msra.mxu0 %v4770
  %4939 = vmatprep.mubr.bf16.mxu0 %v4525
  %4940 = vmatmul.mubr.bf16.gmra.mxu0 %v4524
  %v4941 = vpop.f32.mrf.mxu0
  %v4942 = vadd.f32 %v4845, %v4941
  %v4943 = vpop.f32.mrf.mxu0
  %v4944 = vpop.f32.mrf.mxu0
  %v4945 = vadd.f32 %v4848, %v4944
  %v4946 = vpop.f32.mrf.mxu0
  %4947 = vmatprep.mubr.bf16.mxu0 %v4529
  %4948 = vmatmul.mubr.bf16.gmra.mxu0 %v4528
  %v4949 = vpop.f32.mrf.mxu0
  %v4950 = vadd.f32 %v4853, %v4949
  %v4951 = vpop.f32.mrf.mxu0
  %v4952 = vpop.f32.mrf.mxu0
  %v4953 = vadd.f32 %v4856, %v4952
  %v4954 = vpop.f32.mrf.mxu0
  %4955 = vmatprep.mubr.bf16.mxu0 %v4533
  %4956 = vmatmul.mubr.bf16.gmra.mxu0 %v4532
  %v4957 = vpop.f32.mrf.mxu0
  %v4958 = vadd.f32 %v4861, %v4957
  %v4959 = vpop.f32.mrf.mxu0
  %v4960 = vpop.f32.mrf.mxu0
  %v4961 = vadd.f32 %v4864, %v4960
  %v4962 = vpop.f32.mrf.mxu0
  %4963 = vmatprep.mubr.bf16.mxu0 %v4537
  %4964 = vmatmul.mubr.bf16.gmra.mxu0 %v4536
  %v4965 = vpop.f32.mrf.mxu0
  %v4966 = vadd.f32 %v4869, %v4965
  %v4967 = vpop.f32.mrf.mxu0
  %v4968 = vpop.f32.mrf.mxu0
  %v4969 = vadd.f32 %v4872, %v4968
  %v4970 = vpop.f32.mrf.mxu0
  %4971 = vmatprep.mubr.bf16.mxu0 %v4541
  %4972 = vmatmul.mubr.bf16.gmra.mxu0 %v4540
  %v4973 = vpop.f32.mrf.mxu0
  %v4974 = vadd.f32 %v4877, %v4973
  %v4975 = vpop.f32.mrf.mxu0
  %v4976 = vpop.f32.mrf.mxu0
  %v4977 = vadd.f32 %v4880, %v4976
  %v4978 = vpop.f32.mrf.mxu0
  %4979 = vmatprep.mubr.bf16.mxu0 %v4545
  %4980 = vmatmul.mubr.bf16.gmra.mxu0 %v4544
  %v4981 = vpop.f32.mrf.mxu0
  %v4982 = vadd.f32 %v4885, %v4981
  %v4983 = vpop.f32.mrf.mxu0
  %v4984 = vpop.f32.mrf.mxu0
  %v4985 = vadd.f32 %v4888, %v4984
  %v4986 = vpop.f32.mrf.mxu0
  %4987 = vmatprep.mubr.bf16.mxu0 %v4549
  %4988 = vmatmul.mubr.bf16.gmra.mxu0 %v4548
  %v4989 = vpop.f32.mrf.mxu0
  %v4990 = vadd.f32 %v4893, %v4989
  %v4991 = vpop.f32.mrf.mxu0
  %v4992 = vpop.f32.mrf.mxu0
  %v4993 = vadd.f32 %v4896, %v4992
  %v4994 = vpop.f32.mrf.mxu0
  %4995 = vmatprep.mubr.bf16.mxu0 %v4553
  %4996 = vmatmul.mubr.bf16.gmra.mxu0 %v4552
  %v4997 = vpop.f32.mrf.mxu0
  %v4998 = vadd.f32 %v4901, %v4997
  %v4999 = vpop.f32.mrf.mxu0
  %v5000 = vpop.f32.mrf.mxu0
  %v5001 = vadd.f32 %v4904, %v5000
  %v5002 = vpop.f32.mrf.mxu0
  %5003 = vdwg.mxu0
  %v5004 = vld [vmem:[%s8] sm:$0xff]
  %v5005 = vld [vmem:[%s6] sm:$0xff]
  %v5006 = vld [vmem:[%s6 + $0x8] sm:$0xff]
  %v5007 = vld [vmem:[%s6 + $0x10] sm:$0xff]
  %v5008 = vld [vmem:[%s6 + $0x18] sm:$0xff]
  %v5009 = vld [vmem:[%s6 + $0x20] sm:$0xff]
  %v5010 = vld [vmem:[%s6 + $0x28] sm:$0xff]
  %v5011 = vld [vmem:[%s6 + $0x30] sm:$0xff]
  %v5012 = vld [vmem:[%s6 + $0x38] sm:$0xff]
  %v5013 = vpack.c.bf16 %v5007, %v5005
  %v5014 = vpack.c.bf16 %v5008, %v5006
  %v5015 = vpack.c.bf16 %v5011, %v5009
  %v5016 = vpack.c.bf16 %v5012, %v5010
  %v5017 = vld [vmem:[%s6 + $0x40] sm:$0x7]
  %v5018 = vpack.c.bf16 %v5017, %v5017
  %v5019 = vpack.c.bf16 %v4945, %v4942
  %v5020 = vpack.c.bf16 %v4953, %v4950
  %v5021 = vpack.c.bf16 %v4961, %v4958
  %v5022 = vpack.c.bf16 %v4969, %v4966
  %v5023 = vpack.c.bf16 %v4977, %v4974
  %v5024 = vpack.c.bf16 %v4985, %v4982
  %v5025 = vpack.c.bf16 %v4993, %v4990
  %v5026 = vpack.c.bf16 %v5001, %v4998
  %v5027 = vpack.c.bf16 %v5004, %v5004
  %5029 = vset.pattern.permute.xlu0 0
  %5030 = vperm.xlu0 %5029, %v61
  %v5031 = vpop.permute.xlu0 %5030
  %5034 = vset.pattern.permute.xlu0 0
  %5035 = vperm.xlu0 %5034, %v62
  %v5036 = vpop.permute.xlu0 %5035
  %5039 = vset.pattern.permute.xlu0 0
  %5040 = vperm.xlu0 %5039, %v63
  %v5041 = vpop.permute.xlu0 %5040
  %5044 = vset.pattern.permute.xlu0 0
  %5045 = vperm.xlu0 %5044, %v64
  %v5046 = vpop.permute.xlu0 %5045
  %vm5048 = vcmask 64512
  %v5050 = vsel %vm5048, %v5014, 0
  %v5053 = vsel %vm5048, %v5016, 0
  %v5056 = vsel %vm479, %v5027, 0
  %5058 = vmatprep.subr.bf16.mxu0 0
  %5059 = vmatpush1.bf16.msra.mxu0 %v5026
  %5060 = vmatprep.subr.bf16.mxu0 0
  %5061 = vmatpush1.bf16.msra.mxu0 %v5025
  %5062 = vmatprep.subr.bf16.mxu0 0
  %5063 = vmatpush1.bf16.msra.mxu0 %v5024
  %5064 = vmatprep.subr.bf16.mxu0 0
  %5065 = vmatpush1.bf16.msra.mxu0 %v5023
  %5066 = vmatprep.subr.bf16.mxu0 0
  %5067 = vmatpush1.bf16.msra.mxu0 %v5022
  %5068 = vmatprep.subr.bf16.mxu0 0
  %5069 = vmatpush1.bf16.msra.mxu0 %v5021
  %5070 = vmatprep.subr.bf16.mxu0 0
  %5071 = vmatpush1.bf16.msra.mxu0 %v5020
  %5072 = vmatprep.subr.bf16.mxu0 0
  %5073 = vmatpush1.bf16.msra.mxu0 %v5019
  %5074 = vmatprep.subr.bf16.mxu0 0
  %5075 = vmatpush2.bf16.msra.mxu0 0
  %5076 = vmatprep.subr.bf16.mxu0 0
  %5077 = vmatpush2.bf16.msra.mxu0 0
  %5078 = vmatprep.subr.bf16.mxu0 0
  %5079 = vmatpush2.bf16.msra.mxu0 0
  %5080 = vmatprep.subr.bf16.mxu0 0
  %5081 = vmatpush2.bf16.msra.mxu0 0
  %5082 = vmatprep.subr.bf16.mxu0 0
  %5083 = vmatpush2.bf16.msra.mxu0 0
  %5084 = vmatprep.subr.bf16.mxu0 0
  %5085 = vmatpush2.bf16.msra.mxu0 0
  %5086 = vmatprep.subr.bf16.mxu0 0
  %5087 = vmatpush2.bf16.msra.mxu0 0
  %5088 = vmatprep.subr.bf16.mxu0 0
  %5089 = vmatpush2.bf16.msra.mxu0 %v5056
  %5090 = vmatprep.mubr.bf16.mxu0 %v5050
  %5091 = vmatmul.mubr.bf16.gmra.mxu0 %v5013
  %v5092 = vpop.f32.mrf.mxu0
  %v5093 = vadd.f32 %v5031, %v5092
  %v5094 = vpop.f32.mrf.mxu0
  %v5095 = vpop.f32.mrf.mxu0
  %v5096 = vadd.f32 %v5036, %v5095
  %v5097 = vpop.f32.mrf.mxu0
  %5098 = vmatprep.mubr.bf16.mxu0 %v5053
  %5099 = vmatmul.mubr.bf16.gmra.mxu0 %v5015
  %v5100 = vpop.f32.mrf.mxu0
  %v5101 = vadd.f32 %v5041, %v5100
  %v5102 = vpop.f32.mrf.mxu0
  %v5103 = vpop.f32.mrf.mxu0
  %v5104 = vadd.f32 %v5046, %v5103
  %v5105 = vpop.f32.mrf.mxu0
  %5106 = vdwg.mxu0
  %v5107 = vmax.f32 %v5093, 0.0
  %v5108 = vmax.f32 %v5096, 0.0
  %v5109 = vmax.f32 %v5101, 0.0
  %v5110 = vmax.f32 %v5104, 0.0
  %v5111 = vpack.c.bf16 %v5108, %v5107
  %v5112 = vpack.c.bf16 %v5110, %v5109
  %5114 = vset.pattern.permute.xlu0 0
  %5115 = vperm.xlu0 %5114, %v65
  %v5116 = vpop.permute.xlu0 %5115
  %v5119 = vsel %vm1410, %v5018, 0
  %5121 = vmatprep.subr.bf16.mxu0 0
  %5122 = vmatpush1.bf16.msra.mxu0 0
  %5123 = vmatprep.subr.bf16.mxu0 0
  %5124 = vmatpush1.bf16.msra.mxu0 0
  %5125 = vmatprep.subr.bf16.mxu0 0
  %5126 = vmatpush1.bf16.msra.mxu0 0
  %5127 = vmatprep.subr.bf16.mxu0 0
  %5128 = vmatpush1.bf16.msra.mxu0 0
  %5129 = vmatprep.subr.bf16.mxu0 0
  %5130 = vmatpush1.bf16.msra.mxu0 0
  %5131 = vmatprep.subr.bf16.mxu0 0
  %5132 = vmatpush1.bf16.msra.mxu0 0
  %5133 = vmatprep.subr.bf16.mxu0 0
  %5134 = vmatpush1.bf16.msra.mxu0 %v5112
  %5135 = vmatprep.subr.bf16.mxu0 0
  %5136 = vmatpush1.bf16.msra.mxu0 %v5111
  %5137 = vmatprep.subr.bf16.mxu0 0
  %5138 = vmatpush2.bf16.msra.mxu0 0
  %5139 = vmatprep.subr.bf16.mxu0 0
  %5140 = vmatpush2.bf16.msra.mxu0 0
  %5141 = vmatprep.subr.bf16.mxu0 0
  %5142 = vmatpush2.bf16.msra.mxu0 0
  %5143 = vmatprep.subr.bf16.mxu0 0
  %5144 = vmatpush2.bf16.msra.mxu0 0
  %5145 = vmatprep.subr.bf16.mxu0 0
  %5146 = vmatpush2.bf16.msra.mxu0 0
  %5147 = vmatprep.subr.bf16.mxu0 0
  %5148 = vmatpush2.bf16.msra.mxu0 0
  %5149 = vmatprep.subr.bf16.mxu0 0
  %5150 = vmatpush2.bf16.msra.mxu0 0
  %5151 = vmatprep.subr.bf16.mxu0 0
  %5152 = vmatpush2.bf16.msra.mxu0 0
  %5153 = vmatprep.mubr.bf16.mxu0 0
  %5154 = vmatmul.mubr.bf16.gmra.mxu0 %v5119
  %v5155 = vpop.f32.mrf.mxu0
  %v5156 = vadd.f32 %v5116, %v5155
  %v5157 = vpop.f32.mrf.mxu0
  %v5158 = vpop.f32.mrf.mxu0
  %v5159 = vpop.f32.mrf.mxu0
  %5160 = vdwg.mxu0
  %vm5161 = vcmask 10240
  %5162 = vst.msk [vmem:[%s9] sm:$0x7] %vm5161, %v5156
  // Predicated region
  $region38: #{picture_net_forward.1} parent=0 // pred_check
    _
  $region39: #{picture_net_forward.1} parent=0 // pred_check_branch
    %5164 = sbr.rel (0) target = $region41
  $region40: #{picture_net_forward.1} parent=0 // pred_region
    _
  $region41: #{picture_net_forward.1} parent=0 // pred_fallthru
    _
  // Predicated region
  $region42: #{picture_net_forward.1} parent=0 // pred_check
    _
  $region43: #{picture_net_forward.1} parent=0 // pred_check_branch
    %5166 = sbr.rel (0) target = $region45
  $region44: #{picture_net_forward.1} parent=0 // pred_region
    _
  $region45: #{picture_net_forward.1} parent=0 // pred_fallthru
    _

</llo_original>
